<compile_context>
chip_gen: v6e
topology: v6e:2x2x1
jax: 0.10.0
libtpu: 0.0.40
codegen_flags: <defaults>
</compile_context>

<pallas_src>
import math
import jax
import jax.numpy as jnp
from jax.experimental import pallas as pl
from jax.experimental.pallas import tpu as pltpu

# --- module config (small, consistent with the PyTorch module) -------------
EMB = 32          # embedding_dimension (channels of the image)
HEAD_DIM = 8      # head_dim
NUM_HEADS = EMB // HEAD_DIM
B, C, H, W = 2, EMB, 8, 8
S = H * W         # num_patches (seq len)


def attention_kernel(x_ref, w_ref, b_ref, o_ref):
    """One batch element per grid step (batch axis is 'parallel' -> megacore).

    x_ref: (1, C, S)  channel-major input slice (img2seq transpose in-kernel)
    w_ref: (C, 4*C)   [Wq^T*scale | Wk^T | Wv^T | Wo^T]  (scale pre-folded)
    b_ref: (4, C)     [bq*scale ; bk ; bv ; bo]
    o_ref: (1, S, C)  '1D' output slice, residual added
    """
    Ck = x_ref.shape[1]
    Sk = x_ref.shape[2]

    # img2seq for this batch element; also serves as the residual operand.
    xt = x_ref[0].T                                              # (S, C)

    # Fused Q/K/V projection: one MXU push, M=S, K=C, N=3C.
    qkv = jnp.dot(xt, w_ref[:, :3 * Ck],
                  preferred_element_type=jnp.float32)            # (S, 3C)
    q = qkv[:, 0:Ck] + b_ref[0:1, :]                 # scale already folded in
    k = qkv[:, Ck:2 * Ck] + b_ref[1:2, :]
    v = qkv[:, 2 * Ck:3 * Ck] + b_ref[2:3, :]

    # One relayout per tensor to head-major (H, S, D), then batched dots.
    qh = jnp.transpose(q.reshape(Sk, NUM_HEADS, HEAD_DIM), (1, 0, 2))
    kh = jnp.transpose(k.reshape(Sk, NUM_HEADS, HEAD_DIM), (1, 0, 2))
    vh = jnp.transpose(v.reshape(Sk, NUM_HEADS, HEAD_DIM), (1, 0, 2))

    # Batched attention over all heads at once; dot_general contracts over D
    # directly (no materialized transpose fed to the MXU).
    s = jnp.einsum('hqd,hkd->hqk', qh, kh,
                   preferred_element_type=jnp.float32)           # (H, S, S)
    s = s - jnp.max(s, axis=-1, keepdims=True)
    p = jnp.exp(s)
    p = p / jnp.sum(p, axis=-1, keepdims=True)                   # exact softmax
    o = jnp.einsum('hqk,hkd->hqd', p, vh,
                   preferred_element_type=jnp.float32)           # (H, S, D)

    # Concatenate heads back to (S, C) and do ONE fused output projection,
    # then bias + residual, and a single contiguous (S, C) store.
    o2 = jnp.transpose(o, (1, 0, 2)).reshape(Sk, Ck)             # (S, C)
    out = (jnp.dot(o2, w_ref[:, 3 * Ck:4 * Ck],
                   preferred_element_type=jnp.float32)
           + b_ref[3:4, :] + xt)
    o_ref[0] = out.astype(o_ref.dtype)


def fuse_params(params):
    """One-time weight transform (outside the per-call jitted path).

    PyTorch nn.Linear weights are (out, in); pre-transpose so the kernel does
    x @ W, and fold 1/sqrt(head_dim) into Wq / bq.
    """
    wq, bq, wk, bk, wv, bv, wo, bo = params
    scale = 1.0 / math.sqrt(HEAD_DIM)
    w_fused = jnp.concatenate([wq.T * scale, wk.T, wv.T, wo.T], axis=1)  # (C, 4C)
    b_fused = jnp.stack([bq * scale, bk, bv, bo], axis=0)                # (4, C)
    return w_fused, b_fused


def attention_forward(x_img, w_fused, b_fused):
    """x_img: (B, C, H, W) float32 NCHW (PyTorch layout). Returns (B, H*W, C)."""
    B_, C_, H_, W_ = x_img.shape
    S_ = H_ * W_

    # Layout-free collapse of trailing dims only (no transpose, no HBM copy).
    x_cs = x_img.reshape(B_, C_, S_)

    return pl.pallas_call(
        attention_kernel,
        out_shape=jax.ShapeDtypeStruct((B_, S_, C_), x_img.dtype),
        grid_spec=pltpu.PrefetchScalarGridSpec(
            num_scalar_prefetch=0,
            grid=(B_,),   # batch on a parallel grid axis (both TCs on v7x)
            in_specs=[
                pl.BlockSpec((1, C_, S_), lambda b: (b, 0, 0)),   # x (channel-major)
                pl.BlockSpec((C_, 4 * C_), lambda b: (0, 0)),     # fused weights
                pl.BlockSpec((4, C_), lambda b: (0, 0)),          # fused biases
            ],
            out_specs=pl.BlockSpec((1, S_, C_), lambda b: (b, 0, 0)),
        ),
        compiler_params=pltpu.CompilerParams(
            dimension_semantics=("parallel",)),
    )(x_cs, w_fused, b_fused)


def reference_forward(x_img, params):
    """Pure-JAX reference replicating the PyTorch forward (self-attn, eval)."""
    wq, bq, wk, bk, wv, bv, wo, bo = params
    B_, C_, H_, W_ = x_img.shape
    S_ = H_ * W_
    x = x_img.reshape(B_, C_, S_).transpose(0, 2, 1)               # (B, S, C)
    q = (x @ wq.T + bq).reshape(B_, S_, NUM_HEADS, HEAD_DIM).transpose(0, 2, 1, 3)
    k = (x @ wk.T + bk).reshape(B_, S_, NUM_HEADS, HEAD_DIM).transpose(0, 2, 1, 3)
    v = (x @ wv.T + bv).reshape(B_, S_, NUM_HEADS, HEAD_DIM).transpose(0, 2, 1, 3)
    s = jnp.einsum('bhqd,bhkd->bhqk', q, k) / math.sqrt(HEAD_DIM)
    p = jax.nn.softmax(s, axis=-1)
    o = jnp.einsum('bhqk,bhkd->bhqd', p, v)
    o = o.transpose(0, 2, 1, 3).reshape(B_, S_, C_)
    o = o @ wo.T + bo
    return o + x


def init_params(key):
    """Deterministic PyTorch-Linear-style init: U(-1/sqrt(in), 1/sqrt(in))."""
    ks = jax.random.split(key, 8)
    def lin(kw, kb, fan_in, fan_out):
        bound = 1.0 / math.sqrt(fan_in)
        w = jax.random.uniform(kw, (fan_out, fan_in), jnp.float32, -bound, bound)
        b = jax.random.uniform(kb, (fan_out,), jnp.float32, -bound, bound)
        return w, b
    wq, bq = lin(ks[0], ks[1], EMB, EMB)
    wk, bk = lin(ks[2], ks[3], EMB, EMB)
    wv, bv = lin(ks[4], ks[5], EMB, EMB)
    wo, bo = lin(ks[6], ks[7], EMB, EMB)
    return (wq, bq, wk, bk, wv, bv, wo, bo)


if __name__ == "__main__":
    key = jax.random.PRNGKey(0)
    kx, kp = jax.random.split(key)
    x = jax.random.normal(kx, (B, C, H, W), jnp.float32)   # NCHW like PyTorch
    params = init_params(kp)

    # Fuse weights once, outside the jitted forward.
    w_fused, b_fused = fuse_params(params)

    out = jax.jit(attention_forward)(x, w_fused, b_fused)
    out = jax.block_until_ready(out)

    ref = reference_forward(x, params)
    assert out.shape == (B, S, C)
    assert jnp.allclose(out, ref, atol=1e-4, rtol=1e-4)

    print("KERNEL_OK")
</pallas_src>

<mosaic_0001>
module attributes {stable_mosaic.version = 11 : i64} {
  func.func @attention_kernel(%arg0: i32, %arg1: memref<1x32x64xf32, #tpu.memory_space<vmem>>, %arg2: memref<32x128xf32, #tpu.memory_space<vmem>>, %arg3: memref<4x32xf32, #tpu.memory_space<vmem>>, %arg4: memref<1x64x32xf32, #tpu.memory_space<vmem>>) attributes {dimension_semantics = [#tpu.dimension_semantics<parallel>], iteration_bounds = array<i64: 2>, scalar_prefetch = 0 : i64, scratch_operands = 0 : i64, tpu.core_type = #tpu.core_type<tc>, window_params = [{transform_indices = @transform_0, window_bounds = array<i64: 1, 32, 64>}, {pipeline_mode = #tpu.pipeline_mode<synchronous>, transform_indices = @transform_1, window_bounds = array<i64: 32, 128>}, {pipeline_mode = #tpu.pipeline_mode<synchronous>, transform_indices = @transform_2, window_bounds = array<i64: 4, 32>}, {transform_indices = @transform_3, window_bounds = array<i64: 1, 64, 32>}]} {
    %c0 = arith.constant 0 : index
    %c0_0 = arith.constant 0 : index
    %c0_1 = arith.constant 0 : index
    %0 = vector.load %arg1[%c0, %c0_0, %c0_1] : memref<1x32x64xf32, #tpu.memory_space<vmem>>, vector<1x32x64xf32>
    %1 = vector.shape_cast %0 : vector<1x32x64xf32> to vector<32x64xf32>
    %2 = tpu.transpose %1, [1, 0] : vector<32x64xf32> -> vector<64x32xf32>
    %c0_2 = arith.constant 0 : index
    %c0_3 = arith.constant 0 : index
    %3 = vector.load %arg2[%c0_2, %c0_3] : memref<32x128xf32, #tpu.memory_space<vmem>>, vector<32x96xf32>
    %cst = arith.constant dense<0.000000e+00> : vector<64x96xf32>
    %4 = tpu.matmul %2, %3, %cst {dimension_numbers = #tpu.dot_dimension_numbers<[1], [0], [0], [1], [0, 0, 1, 1], [], []>} : vector<64x32xf32>, vector<32x96xf32>, vector<64x96xf32> -> vector<64x96xf32>
    %5 = vector.extract_strided_slice %4 {offsets = [0, 0], sizes = [64, 32], strides = [1, 1]} : vector<64x96xf32> to vector<64x32xf32>
    %c0_4 = arith.constant 0 : index
    %c0_5 = arith.constant 0 : index
    %6 = vector.load %arg3[%c0_4, %c0_5] : memref<4x32xf32, #tpu.memory_space<vmem>>, vector<1x32xf32>
    %7 = vector.broadcast %6 : vector<1x32xf32> to vector<64x32xf32>
    %8 = arith.addf %5, %7 : vector<64x32xf32>
    %9 = vector.extract_strided_slice %4 {offsets = [0, 32], sizes = [64, 32], strides = [1, 1]} : vector<64x96xf32> to vector<64x32xf32>
    %c1 = arith.constant 1 : index
    %c0_6 = arith.constant 0 : index
    %10 = vector.load %arg3[%c1, %c0_6] : memref<4x32xf32, #tpu.memory_space<vmem>>, vector<1x32xf32>
    %11 = vector.broadcast %10 : vector<1x32xf32> to vector<64x32xf32>
    %12 = arith.addf %9, %11 : vector<64x32xf32>
    %13 = vector.extract_strided_slice %4 {offsets = [0, 64], sizes = [64, 32], strides = [1, 1]} : vector<64x96xf32> to vector<64x32xf32>
    %c2 = arith.constant 2 : index
    %c0_7 = arith.constant 0 : index
    %14 = vector.load %arg3[%c2, %c0_7] : memref<4x32xf32, #tpu.memory_space<vmem>>, vector<1x32xf32>
    %15 = vector.broadcast %14 : vector<1x32xf32> to vector<64x32xf32>
    %16 = arith.addf %13, %15 : vector<64x32xf32>
    %17 = vector.shape_cast %8 : vector<64x32xf32> to vector<64x4x8xf32>
    %18 = tpu.transpose %17, [1, 0, 2] : vector<64x4x8xf32> -> vector<4x64x8xf32>
    %19 = vector.shape_cast %12 : vector<64x32xf32> to vector<64x4x8xf32>
    %20 = tpu.transpose %19, [1, 0, 2] : vector<64x4x8xf32> -> vector<4x64x8xf32>
    %21 = vector.shape_cast %16 : vector<64x32xf32> to vector<64x4x8xf32>
    %22 = tpu.transpose %21, [1, 0, 2] : vector<64x4x8xf32> -> vector<4x64x8xf32>
    "tpu.trace_start"() <{level = 10 : i32, message = "hqd,hkd->hqk"}> : () -> ()
    %cst_8 = arith.constant dense<0.000000e+00> : vector<4x64x64xf32>
    %23 = tpu.matmul %18, %20, %cst_8 {dimension_numbers = #tpu.dot_dimension_numbers<[2], [2], [1], [1], [0, 0, 0, 1, 1, 1], [0], [0]>} : vector<4x64x8xf32>, vector<4x64x8xf32>, vector<4x64x64xf32> -> vector<4x64x64xf32>
    "tpu.trace_stop"() : () -> ()
    %cst_9 = arith.constant dense<0xFF800000> : vector<4x64xf32>
    %24 = vector.multi_reduction <maximumf>, %23, %cst_9 [2] : vector<4x64x64xf32> to vector<4x64xf32>
    %25 = vector.shape_cast %24 : vector<4x64xf32> to vector<4x64x1xf32>
    %26 = vector.broadcast %25 : vector<4x64x1xf32> to vector<4x64x64xf32>
    %27 = arith.subf %23, %26 : vector<4x64x64xf32>
    %28 = math.exp %27 : vector<4x64x64xf32>
    %cst_10 = arith.constant dense<0.000000e+00> : vector<4x64xf32>
    %29 = vector.multi_reduction <add>, %28, %cst_10 [2] : vector<4x64x64xf32> to vector<4x64xf32>
    %30 = vector.shape_cast %29 : vector<4x64xf32> to vector<4x64x1xf32>
    %31 = vector.broadcast %30 : vector<4x64x1xf32> to vector<4x64x64xf32>
    %32 = arith.divf %28, %31 : vector<4x64x64xf32>
    "tpu.trace_start"() <{level = 10 : i32, message = "hqk,hkd->hqd"}> : () -> ()
    %cst_11 = arith.constant dense<0.000000e+00> : vector<4x64x8xf32>
    %33 = tpu.matmul %32, %22, %cst_11 {dimension_numbers = #tpu.dot_dimension_numbers<[2], [1], [1], [2], [0, 0, 0, 1, 1, 2], [0], [0]>} : vector<4x64x64xf32>, vector<4x64x8xf32>, vector<4x64x8xf32> -> vector<4x64x8xf32>
    "tpu.trace_stop"() : () -> ()
    %34 = tpu.transpose %33, [1, 0, 2] : vector<4x64x8xf32> -> vector<64x4x8xf32>
    %35 = vector.shape_cast %34 : vector<64x4x8xf32> to vector<64x32xf32>
    %c0_12 = arith.constant 0 : index
    %c96 = arith.constant 96 : index
    %36 = vector.load %arg2[%c0_12, %c96] : memref<32x128xf32, #tpu.memory_space<vmem>>, vector<32x32xf32>
    %cst_13 = arith.constant dense<0.000000e+00> : vector<64x32xf32>
    %37 = tpu.matmul %35, %36, %cst_13 {dimension_numbers = #tpu.dot_dimension_numbers<[1], [0], [0], [1], [0, 0, 1, 1], [], []>} : vector<64x32xf32>, vector<32x32xf32>, vector<64x32xf32> -> vector<64x32xf32>
    %c3 = arith.constant 3 : index
    %c0_14 = arith.constant 0 : index
    %38 = vector.load %arg3[%c3, %c0_14] : memref<4x32xf32, #tpu.memory_space<vmem>>, vector<1x32xf32>
    %39 = vector.broadcast %38 : vector<1x32xf32> to vector<64x32xf32>
    %40 = arith.addf %37, %39 : vector<64x32xf32>
    %41 = arith.addf %40, %2 : vector<64x32xf32>
    %c0_15 = arith.constant 0 : index
    %c0_16 = arith.constant 0 : index
    %c0_17 = arith.constant 0 : index
    %42 = vector.load %arg4[%c0_15, %c0_16, %c0_17] : memref<1x64x32xf32, #tpu.memory_space<vmem>>, vector<1x64x32xf32>
    %43 = vector.shape_cast %42 : vector<1x64x32xf32> to vector<64x32xf32>
    %44 = vector.shape_cast %41 : vector<64x32xf32> to vector<1x64x32xf32>
    tpu.vector_store %arg4[%c0_15, %c0_16, %c0_17], %44 {strides = array<i32>} : memref<1x64x32xf32, #tpu.memory_space<vmem>>, vector<1x64x32xf32>,
    return
  }
  func.func @transform_0(%arg0: i32) -> (i32, i32, i32) {
    %c0_i32 = arith.constant 0 : i32
    %c0_i32_0 = arith.constant 0 : i32
    %c0_i32_1 = arith.constant 0 : i32
    return %arg0, %c0_i32, %c0_i32_0 : i32, i32, i32
  }
  func.func @transform_1(%arg0: i32) -> (i32, i32) {
    %c0_i32 = arith.constant 0 : i32
    %c0_i32_0 = arith.constant 0 : i32
    %c0_i32_1 = arith.constant 0 : i32
    return %c0_i32, %c0_i32_0 : i32, i32
  }
  func.func @transform_2(%arg0: i32) -> (i32, i32) {
    %c0_i32 = arith.constant 0 : i32
    %c0_i32_0 = arith.constant 0 : i32
    %c0_i32_1 = arith.constant 0 : i32
    return %c0_i32, %c0_i32_0 : i32, i32
  }
  func.func @transform_3(%arg0: i32) -> (i32, i32, i32) {
    %c0_i32 = arith.constant 0 : i32
    %c0_i32_0 = arith.constant 0 : i32
    %c0_i32_1 = arith.constant 0 : i32
    return %arg0, %c0_i32, %c0_i32_0 : i32, i32, i32
  }
}

</mosaic_0001>

<llo_original>
// kernel: attention_forward.1
$region0: #{attention_forward.1}
  #allocation0 [shape = 'u32[]', space=smem, size = 0x4, offset = 0x4, fixed_abs, tag = 'smem constant byte address 0x4 - core index']
  #allocation1 [shape = 'u32[144,128]{1,0:T(1,128)}', space=vmem, size = 0x12000, scoped, tag = 'internal scratch']
  %s0 = inlined_call_operand.vmem [shape: f32[2,32,64], index: 0, kind: input, shape index: {}]
  %s1 = inlined_call_operand.vmem [shape: f32[32,128], index: 1, kind: input, shape index: {}]
  %s2 = inlined_call_operand.vmem [shape: f32[4,32], index: 2, kind: input, shape index: {}]
  %s3 = inlined_call_operand.vmem [shape: f32[2,64,32], index: 3, kind: output, shape index: {}]
  %s4 = sld [smem:[#allocation0]]
  $region45: #{attention_forward.1} parent=0
    _
  %s6 = ssub.s32 1, %s4
  %s7 = scalar_select 0, %s6, %s4
  loop: start=0, step=1, limit=4
  $region2: #{attention_forward.1} parent=0 // loop_pre_header
    _
  $region3: #{attention_forward.1} parent=0 // loop_header
    %s9 = sphi 0, %s13
    %p10 = scmp.ge.s32.totalorder %s9, 4
    %s19 = sphi 0, %s21
    %s22 = sphi 0, %s19
    %s23 = sphi 0, %s22
    %s39 = sphi 0, %s23
    %s43 = sphi 0, %s43
    %s45 = sphi 0, %s43
    %s46 = sphi 0, %s45
    %s60 = sphi 0, %s46
    %s64 = sphi 0, %s64
    %s66 = sphi 0, %s64
    %s67 = sphi 0, %s66
    %s81 = sphi 0, %s67
    %s87 = sphi 0, %s89
    %s90 = sphi 0, %s87
    %s91 = sphi 0, %s90
    %s107 = sphi 0, %s91
  $region4: #{attention_forward.1} parent=0 // loop_header_branch
    %12 = sbr.rel (%p10) target = $region8
  $region5: #{attention_forward.1} parent=0 // loop_body
    %s14 = ssub.s32 %s9, 1
    %s15 = ssub.s32 %s9, 2
    %s16 = sadd.s32 %s9, 1
    %s17 = ssub.s32 %s9, %s16
    %p18 = scmp.eq.s32.totalorder %s17, 0
    %s20 = sadd.s32 %s19, 1
    %s21 = scalar_select %p18, %s19, %s20
    %p24 = pneg %p18
    %p25 = scmp.eq.s32.totalorder %s9, 1
    %p26 = por %p24, %p25
    %p27 = scmp.ne.s32.totalorder %s19, %s22
    %p28 = scmp.eq.s32.totalorder %s9, 0
    %p29 = por %p27, %p28
    %p30 = scmp.ne.s32.totalorder %s19, %s22
    %p31 = scmp.eq.s32.totalorder %s14, 1
    %p32 = por %p30, %p31
    %p33 = scmp.ne.s32.totalorder %s22, %s23
    %p34 = scmp.eq.s32.totalorder %s14, 0
    %p35 = por %p33, %p34
    %p36 = scmp.ne.s32.totalorder %s22, %s23
    %p37 = scmp.eq.s32.totalorder %s15, 1
    %p38 = por %p36, %p37
    %p40 = scmp.ne.s32.totalorder %s23, %s39
    %p41 = scmp.eq.s32.totalorder %s15, 0
    %p42 = por %p40, %p41
    %s44 = sadd.s32 %s43, 1
    %p47 = scmp.eq.s32.totalorder %s9, 1
    %p48 = scmp.ne.s32.totalorder %s43, %s45
    %p49 = scmp.eq.s32.totalorder %s9, 0
    %p50 = por %p48, %p49
    %p51 = scmp.ne.s32.totalorder %s43, %s45
    %p52 = scmp.eq.s32.totalorder %s14, 1
    %p53 = por %p51, %p52
    %p54 = scmp.ne.s32.totalorder %s45, %s46
    %p55 = scmp.eq.s32.totalorder %s14, 0
    %p56 = por %p54, %p55
    %p57 = scmp.ne.s32.totalorder %s45, %s46
    %p58 = scmp.eq.s32.totalorder %s15, 1
    %p59 = por %p57, %p58
    %p61 = scmp.ne.s32.totalorder %s46, %s60
    %p62 = scmp.eq.s32.totalorder %s15, 0
    %p63 = por %p61, %p62
    %s65 = sadd.s32 %s64, 1
    %p68 = scmp.eq.s32.totalorder %s9, 1
    %p69 = scmp.ne.s32.totalorder %s64, %s66
    %p70 = scmp.eq.s32.totalorder %s9, 0
    %p71 = por %p69, %p70
    %p72 = scmp.ne.s32.totalorder %s64, %s66
    %p73 = scmp.eq.s32.totalorder %s14, 1
    %p74 = por %p72, %p73
    %p75 = scmp.ne.s32.totalorder %s66, %s67
    %p76 = scmp.eq.s32.totalorder %s14, 0
    %p77 = por %p75, %p76
    %p78 = scmp.ne.s32.totalorder %s66, %s67
    %p79 = scmp.eq.s32.totalorder %s15, 1
    %p80 = por %p78, %p79
    %p82 = scmp.ne.s32.totalorder %s67, %s81
    %p83 = scmp.eq.s32.totalorder %s15, 0
    %p84 = por %p82, %p83
    %s85 = ssub.s32 %s9, %s16
    %p86 = scmp.eq.s32.totalorder %s85, 0
    %s88 = sadd.s32 %s87, 1
    %s89 = scalar_select %p86, %s87, %s88
    %p92 = pneg %p86
    %p93 = scmp.eq.s32.totalorder %s9, 1
    %p94 = por %p92, %p93
    %p95 = scmp.ne.s32.totalorder %s87, %s90
    %p96 = scmp.eq.s32.totalorder %s9, 0
    %p97 = por %p95, %p96
    %p98 = scmp.ne.s32.totalorder %s87, %s90
    %p99 = scmp.eq.s32.totalorder %s14, 1
    %p100 = por %p98, %p99
    %p101 = scmp.ne.s32.totalorder %s90, %s91
    %p102 = scmp.eq.s32.totalorder %s14, 0
    %p103 = por %p101, %p102
    %p104 = scmp.ne.s32.totalorder %s90, %s91
    %p105 = scmp.eq.s32.totalorder %s15, 1
    %p106 = por %p104, %p105
    %p108 = scmp.ne.s32.totalorder %s91, %s107
    %p109 = scmp.eq.s32.totalorder %s15, 0
    %p110 = por %p108, %p109
    %p111 = scmp.le.s32.totalorder 1, %s9
    %p112 = scmp.lt.s32.totalorder %s9, 3
    %p113 = pnand %p111, %p112
    %p114 = pneg %p113
    // Predicated region
    $region9: #{attention_forward.1} parent=5 // pred_check
      _
    $region10: #{attention_forward.1} parent=5 // pred_check_branch
      %116 = sbr.rel (%p113) target = $region12
    $region11: #{attention_forward.1} parent=5 // pred_region
      %s117 = ssub.s32 %s9, 1
      // Predicated region
      $region13: #{attention_forward.1} parent=11 // pred_check
        %p118 = pneg %p56
      $region14: #{attention_forward.1} parent=11 // pred_check_branch
        %120 = sbr.rel (%p118) target = $region16
      $region15: #{attention_forward.1} parent=11 // pred_region
        _
      $region16: #{attention_forward.1} parent=11 // pred_fallthru
        _
      // Predicated region
      $region17: #{attention_forward.1} parent=11 // pred_check
        %p121 = pneg %p77
      $region18: #{attention_forward.1} parent=11 // pred_check_branch
        %123 = sbr.rel (%p121) target = $region20
      $region19: #{attention_forward.1} parent=11 // pred_region
        _
      $region20: #{attention_forward.1} parent=11 // pred_fallthru
        _
    $region12: #{attention_forward.1} parent=5 // pred_fallthru
      _
    %p124 = scmp.lt.s32.totalorder %s9, 2
    // Predicated region
    $region21: #{attention_forward.1} parent=5 // pred_check
      %p125 = pneg %p124
    $region22: #{attention_forward.1} parent=5 // pred_check_branch
      %127 = sbr.rel (%p125) target = $region24
    $region23: #{attention_forward.1} parent=5 // pred_region
      // Predicated region
      $region25: #{attention_forward.1} parent=23 // pred_check
        %p128 = pneg %p29
      $region26: #{attention_forward.1} parent=23 // pred_check_branch
        %130 = sbr.rel (%p128) target = $region28
      $region27: #{attention_forward.1} parent=23 // pred_region
        %p131 = scmp.lt.s32.totalorder %s9, 1
        %s132 = scalar_select %p131, %s9, 1
        %s133 = smul.addr %s132, 4
        %s134 = smul.addr %s133, 8
        %s135 = scalar_lea.vmem %s0, %s134
      $region28: #{attention_forward.1} parent=23 // pred_fallthru
        _
    $region24: #{attention_forward.1} parent=5 // pred_fallthru
      _
    %p136 = scmp.le.s32.totalorder 1, %s9
    %p137 = scmp.lt.s32.totalorder %s9, 3
    %p138 = pnand %p136, %p137
    %p139 = pneg %p138
    // Predicated region
    $region29: #{attention_forward.1} parent=5 // pred_check
      _
    $region30: #{attention_forward.1} parent=5 // pred_check_branch
      %141 = sbr.rel (%p138) target = $region32
    $region31: #{attention_forward.1} parent=5 // pred_region
      %s142 = ssub.s32 %s9, 1
      %p143 = scmp.lt.s32.totalorder %s14, 1
      %s144 = scalar_select %p143, %s14, 1
      %s145 = smul.addr %s144, 4
      %s146 = smul.addr %s145, 8
      %s147 = scalar_lea.vmem %s0, %s146
      %p148 = pneg %p35
      %p149 = pneg %p32
      %p150 = pneg %p56
      %p151 = pneg %p53
      %p152 = pneg %p77
      %p153 = pneg %p74
      %p154 = pneg %p103
      %p155 = pneg %p100
      %p156 = scmp.lt.s32.totalorder %s14, 1
      %s157 = scalar_select %p156, %s14, 1
      %s158 = smul.addr %s157, 8
      %s159 = smul.addr %s158, 8
      %s160 = scalar_lea.vmem %s3, %s159
      %p161 = scmp.lt.s32.totalorder %s14, 1
      %s162 = scalar_select %p161, %s14, 1
      %s163 = smul.addr %s162, 4
      %s164 = smul.addr %s163, 8
      %s165 = scalar_lea.vmem %s0, %s164
      %p166 = scmp.lt.s32.totalorder %s14, 1
      %s167 = scalar_select %p166, %s14, 1
      %s168 = smul.addr %s167, 8
      %s169 = smul.addr %s168, 8
      %s170 = scalar_lea.vmem %s3, %s169
      %v171 = vld [vmem:[%s165] sm:$0xff]
      %v172 = vld [vmem:[%s165 + $0x8] sm:$0xff]
      %v173 = vld [vmem:[%s165 + $0x10] sm:$0xff]
      %v174 = vld [vmem:[%s165 + $0x18] sm:$0xff]
      %175 = vxpose.xlu0.b32.start [1/16] %v171, 128
      %176 = vxpose.xlu0.b32.cont [2/16] %v172, 128
      %177 = vxpose.xlu0.b32.cont [3/16] %v173, 128
      %178 = vxpose.xlu0.b32.cont [4/16] %v174, 128
      %179 = vxpose.xlu0.b32.cont [5/16] 0.0, 128
      %180 = vxpose.xlu0.b32.cont [6/16] 0.0, 128
      %181 = vxpose.xlu0.b32.cont [7/16] 0.0, 128
      %182 = vxpose.xlu0.b32.cont [8/16] 0.0, 128
      %183 = vxpose.xlu0.b32.cont [9/16] 0.0, 128
      %184 = vxpose.xlu0.b32.cont [10/16] 0.0, 128
      %185 = vxpose.xlu0.b32.cont [11/16] 0.0, 128
      %186 = vxpose.xlu0.b32.cont [12/16] 0.0, 128
      %187 = vxpose.xlu0.b32.cont [13/16] 0.0, 128
      %188 = vxpose.xlu0.b32.cont [14/16] 0.0, 128
      %189 = vxpose.xlu0.b32.cont [15/16] 0.0, 128
      %190 = vxpose.xlu0.b32.end [16/16] 0.0, 128
      %v191 = vpop.trf.xlu0
      %v192 = vpop.trf.xlu0
      %v193 = vpop.trf.xlu0
      %v194 = vpop.trf.xlu0
      %v195 = vpop.trf.xlu0
      %v196 = vpop.trf.xlu0
      %v197 = vpop.trf.xlu0
      %v198 = vpop.trf.xlu0
      %v199 = vpop.trf.xlu0
      %v200 = vpop.trf.xlu0
      %v201 = vpop.trf.xlu0
      %v202 = vpop.trf.xlu0
      %v203 = vpop.trf.xlu0
      %v204 = vpop.trf.xlu0
      %v205 = vpop.trf.xlu0
      %v206 = vpop.trf.xlu0
      %v207 = vld [vmem:[%s1] sm:$0xff]
      %v208 = vld [vmem:[%s1 + $0x8] sm:$0xff]
      %v209 = vld [vmem:[%s1 + $0x10] sm:$0xff]
      %v210 = vld [vmem:[%s1 + $0x18] sm:$0xff]
      %vm211 = vcmask 261120
      %v213 = vsel %vm211, %v191, 0
      %v216 = vsel %vm211, %v192, 0
      %v219 = vsel %vm211, %v193, 0
      %v222 = vsel %vm211, %v194, 0
      %v225 = vsel %vm211, %v195, 0
      %v228 = vsel %vm211, %v196, 0
      %v231 = vsel %vm211, %v197, 0
      %v234 = vsel %vm211, %v198, 0
      %236 = vmatprep.subr.mxu0 0.0
      %237 = vmatpush1.msra.mxu0 0.0
      %238 = vmatprep.subr.mxu0 0.0
      %239 = vmatpush1.msra.mxu0 0.0
      %240 = vmatprep.subr.mxu0 0.0
      %241 = vmatpush1.msra.mxu0 0.0
      %242 = vmatprep.subr.mxu0 0.0
      %243 = vmatpush1.msra.mxu0 0.0
      %244 = vmatprep.subr.mxu0 0.0
      %245 = vmatpush1.msra.mxu0 0.0
      %246 = vmatprep.subr.mxu0 0.0
      %247 = vmatpush1.msra.mxu0 0.0
      %248 = vmatprep.subr.mxu0 0.0
      %249 = vmatpush1.msra.mxu0 0.0
      %250 = vmatprep.subr.mxu0 0.0
      %251 = vmatpush1.msra.mxu0 0.0
      %252 = vmatprep.subr.mxu0 0.0
      %253 = vmatpush1.msra.mxu0 0.0
      %254 = vmatprep.subr.mxu0 0.0
      %255 = vmatpush1.msra.mxu0 0.0
      %256 = vmatprep.subr.mxu0 0.0
      %257 = vmatpush1.msra.mxu0 0.0
      %258 = vmatprep.subr.mxu0 0.0
      %259 = vmatpush1.msra.mxu0 0.0
      %260 = vmatprep.subr.mxu0 0.0
      %261 = vmatpush1.msra.mxu0 %v210
      %262 = vmatprep.subr.mxu0 0.0
      %263 = vmatpush1.msra.mxu0 %v209
      %264 = vmatprep.subr.mxu0 0.0
      %265 = vmatpush1.msra.mxu0 %v208
      %266 = vmatprep.subr.mxu0 0.0
      %267 = vmatpush1.msra.mxu0 %v207
      %268 = vmatprep.subr.mxu0 0.0
      %269 = vmatpush2.msra.mxu0 0.0
      %270 = vmatprep.subr.mxu0 0.0
      %271 = vmatpush2.msra.mxu0 0.0
      %272 = vmatprep.subr.mxu0 0.0
      %273 = vmatpush2.msra.mxu0 0.0
      %274 = vmatprep.subr.mxu0 0.0
      %275 = vmatpush2.msra.mxu0 0.0
      %276 = vmatprep.subr.mxu0 0.0
      %277 = vmatpush2.msra.mxu0 0.0
      %278 = vmatprep.subr.mxu0 0.0
      %279 = vmatpush2.msra.mxu0 0.0
      %280 = vmatprep.subr.mxu0 0.0
      %281 = vmatpush2.msra.mxu0 0.0
      %282 = vmatprep.subr.mxu0 0.0
      %283 = vmatpush2.msra.mxu0 0.0
      %284 = vmatprep.subr.mxu0 0.0
      %285 = vmatpush2.msra.mxu0 0.0
      %286 = vmatprep.subr.mxu0 0.0
      %287 = vmatpush2.msra.mxu0 0.0
      %288 = vmatprep.subr.mxu0 0.0
      %289 = vmatpush2.msra.mxu0 0.0
      %290 = vmatprep.subr.mxu0 0.0
      %291 = vmatpush2.msra.mxu0 0.0
      %292 = vmatprep.subr.mxu0 0.0
      %293 = vmatpush2.msra.mxu0 0.0
      %294 = vmatprep.subr.mxu0 0.0
      %295 = vmatpush2.msra.mxu0 0.0
      %296 = vmatprep.subr.mxu0 0.0
      %297 = vmatpush2.msra.mxu0 0.0
      %298 = vmatprep.subr.mxu0 0.0
      %299 = vmatpush2.msra.mxu0 0.0
      %300 = vmatprep.mubr.f32.mxu0 0.0
      %301 = vmatmul.mubr.f32.gmra.mxu0 %v213
      %v302 = vpop.f32.mrf.mxu0
      %v303 = vadd.f32 0.0, %v302
      %v304 = vpop.f32.mrf.mxu0
      %305 = vmatprep.mubr.f32.mxu0 0.0
      %306 = vmatmul.mubr.f32.gmra.mxu0 %v216
      %v307 = vpop.f32.mrf.mxu0
      %v308 = vadd.f32 0.0, %v307
      %v309 = vpop.f32.mrf.mxu0
      %310 = vmatprep.mubr.f32.mxu0 0.0
      %311 = vmatmul.mubr.f32.gmra.mxu0 %v219
      %v312 = vpop.f32.mrf.mxu0
      %v313 = vadd.f32 0.0, %v312
      %v314 = vpop.f32.mrf.mxu0
      %315 = vmatprep.mubr.f32.mxu0 0.0
      %316 = vmatmul.mubr.f32.gmra.mxu0 %v222
      %v317 = vpop.f32.mrf.mxu0
      %v318 = vadd.f32 0.0, %v317
      %v319 = vpop.f32.mrf.mxu0
      %320 = vmatprep.mubr.f32.mxu0 0.0
      %321 = vmatmul.mubr.f32.gmra.mxu0 %v225
      %v322 = vpop.f32.mrf.mxu0
      %v323 = vadd.f32 0.0, %v322
      %v324 = vpop.f32.mrf.mxu0
      %325 = vmatprep.mubr.f32.mxu0 0.0
      %326 = vmatmul.mubr.f32.gmra.mxu0 %v228
      %v327 = vpop.f32.mrf.mxu0
      %v328 = vadd.f32 0.0, %v327
      %v329 = vpop.f32.mrf.mxu0
      %330 = vmatprep.mubr.f32.mxu0 0.0
      %331 = vmatmul.mubr.f32.gmra.mxu0 %v231
      %v332 = vpop.f32.mrf.mxu0
      %v333 = vadd.f32 0.0, %v332
      %v334 = vpop.f32.mrf.mxu0
      %335 = vmatprep.mubr.f32.mxu0 0.0
      %336 = vmatmul.mubr.f32.gmra.mxu0 %v234
      %v337 = vpop.f32.mrf.mxu0
      %v338 = vadd.f32 0.0, %v337
      %v339 = vpop.f32.mrf.mxu0
      %340 = vdwg.mxu0
      %v341 = vld [vmem:[%s2] sm:$0x1]
      %v342 = vlaneseq
      %v343 = vshrl.u32 %v342, 7
      %v344 = vsub.s32 0, %v343
      %v345 = vrot.slane %v341, %v344
      %v346 = vadd.f32 %v303, %v345
      %v347 = vadd.f32 %v308, %v345
      %v348 = vadd.f32 %v313, %v345
      %v349 = vadd.f32 %v318, %v345
      %v350 = vadd.f32 %v323, %v345
      %v351 = vadd.f32 %v328, %v345
      %v352 = vadd.f32 %v333, %v345
      %v353 = vadd.f32 %v338, %v345
      %v354 = vld [vmem:[%s2 + $0x1] sm:$0x1]
      %v355 = vlaneseq
      %v356 = vshrl.u32 %v355, 7
      %v357 = vsub.s32 0, %v356
      %v358 = vrot.slane %v354, %v357
      %360 = vrot.lane.b32.xlu0 %v358, 32
      %v361 = vpop.permute.xlu0 %360
      %v363 = vadd.f32 %v303, %v361
      %v364 = vadd.f32 %v308, %v361
      %v365 = vadd.f32 %v313, %v361
      %v366 = vadd.f32 %v318, %v361
      %v367 = vadd.f32 %v323, %v361
      %v368 = vadd.f32 %v328, %v361
      %v369 = vadd.f32 %v333, %v361
      %v370 = vadd.f32 %v338, %v361
      %v371 = vld [vmem:[%s2 + $0x2] sm:$0x1]
      %v372 = vlaneseq
      %v373 = vshrl.u32 %v372, 7
      %v374 = vsub.s32 0, %v373
      %v375 = vrot.slane %v371, %v374
      %377 = vrot.lane.b32.xlu0 %v375, 64
      %v378 = vpop.permute.xlu0 %377
      %v380 = vadd.f32 %v303, %v378
      %v381 = vadd.f32 %v308, %v378
      %v382 = vadd.f32 %v313, %v378
      %v383 = vadd.f32 %v318, %v378
      %v384 = vadd.f32 %v323, %v378
      %v385 = vadd.f32 %v328, %v378
      %v386 = vadd.f32 %v333, %v378
      %v387 = vadd.f32 %v338, %v378
      %396 = vrot.lane.b32.xlu0 %v346, 120
      %v397 = vpop.permute.xlu0 %396
      %398 = vrot.lane.b32.xlu0 %v347, 120
      %v399 = vpop.permute.xlu0 %398
      %400 = vrot.lane.b32.xlu0 %v348, 120
      %v401 = vpop.permute.xlu0 %400
      %402 = vrot.lane.b32.xlu0 %v349, 120
      %v403 = vpop.permute.xlu0 %402
      %404 = vrot.lane.b32.xlu0 %v350, 120
      %v405 = vpop.permute.xlu0 %404
      %406 = vrot.lane.b32.xlu0 %v351, 120
      %v407 = vpop.permute.xlu0 %406
      %408 = vrot.lane.b32.xlu0 %v352, 120
      %v409 = vpop.permute.xlu0 %408
      %410 = vrot.lane.b32.xlu0 %v353, 120
      %v411 = vpop.permute.xlu0 %410
      %420 = vrot.lane.b32.xlu0 %v346, 112
      %v421 = vpop.permute.xlu0 %420
      %422 = vrot.lane.b32.xlu0 %v347, 112
      %v423 = vpop.permute.xlu0 %422
      %424 = vrot.lane.b32.xlu0 %v348, 112
      %v425 = vpop.permute.xlu0 %424
      %426 = vrot.lane.b32.xlu0 %v349, 112
      %v427 = vpop.permute.xlu0 %426
      %428 = vrot.lane.b32.xlu0 %v350, 112
      %v429 = vpop.permute.xlu0 %428
      %430 = vrot.lane.b32.xlu0 %v351, 112
      %v431 = vpop.permute.xlu0 %430
      %432 = vrot.lane.b32.xlu0 %v352, 112
      %v433 = vpop.permute.xlu0 %432
      %434 = vrot.lane.b32.xlu0 %v353, 112
      %v435 = vpop.permute.xlu0 %434
      %444 = vrot.lane.b32.xlu0 %v346, 104
      %v445 = vpop.permute.xlu0 %444
      %446 = vrot.lane.b32.xlu0 %v347, 104
      %v447 = vpop.permute.xlu0 %446
      %448 = vrot.lane.b32.xlu0 %v348, 104
      %v449 = vpop.permute.xlu0 %448
      %450 = vrot.lane.b32.xlu0 %v349, 104
      %v451 = vpop.permute.xlu0 %450
      %452 = vrot.lane.b32.xlu0 %v350, 104
      %v453 = vpop.permute.xlu0 %452
      %454 = vrot.lane.b32.xlu0 %v351, 104
      %v455 = vpop.permute.xlu0 %454
      %456 = vrot.lane.b32.xlu0 %v352, 104
      %v457 = vpop.permute.xlu0 %456
      %458 = vrot.lane.b32.xlu0 %v353, 104
      %v459 = vpop.permute.xlu0 %458
      %v468 = vcombine.low %v346, %v421
      %v469 = vcombine.high %v346, %v421
      %v471 = vunpack.c.l.s4 1983009808
      %v472 = vunpack.c.0.s8 %v471
      %v473 = vlaneseq
      %v474 = vshrl.u32 %v473, 7
      %v475 = vsub.s32 %v472, %v474
      %v476 = vrot.slane %v468, %v475
      %v478 = vunpack.c.l.s4 1983009808
      %v479 = vunpack.c.0.s8 %v478
      %v480 = vlaneseq
      %v481 = vshrl.u32 %v480, 7
      %v482 = vsub.s32 %v479, %v481
      %v483 = vrot.slane %v469, %v482
      %v484 = vcombine.low %v397, %v445
      %v485 = vcombine.high %v397, %v445
      %v487 = vunpack.c.l.s4 1983009808
      %v488 = vunpack.c.0.s8 %v487
      %v489 = vlaneseq
      %v490 = vshrl.u32 %v489, 7
      %v491 = vsub.s32 %v488, %v490
      %v492 = vrot.slane %v484, %v491
      %v494 = vunpack.c.l.s4 1983009808
      %v495 = vunpack.c.0.s8 %v494
      %v496 = vlaneseq
      %v497 = vshrl.u32 %v496, 7
      %v498 = vsub.s32 %v495, %v497
      %v499 = vrot.slane %v485, %v498
      %v500 = vcombine.low %v476, %v492
      %v501 = vcombine.high %v476, %v492
      %v503 = vunpack.c.l.s4 1934713408
      %v504 = vunpack.c.0.s8 %v503
      %v505 = vlaneseq
      %v506 = vshrl.u32 %v505, 7
      %v507 = vsub.s32 %v504, %v506
      %v508 = vrot.slane %v500, %v507
      %v510 = vunpack.c.l.s4 1934713408
      %v511 = vunpack.c.0.s8 %v510
      %v512 = vlaneseq
      %v513 = vshrl.u32 %v512, 7
      %v514 = vsub.s32 %v511, %v513
      %v515 = vrot.slane %v501, %v514
      %v516 = vcombine.low %v483, %v499
      %v517 = vcombine.high %v483, %v499
      %v519 = vunpack.c.l.s4 1934713408
      %v520 = vunpack.c.0.s8 %v519
      %v521 = vlaneseq
      %v522 = vshrl.u32 %v521, 7
      %v523 = vsub.s32 %v520, %v522
      %v524 = vrot.slane %v516, %v523
      %v526 = vunpack.c.l.s4 1934713408
      %v527 = vunpack.c.0.s8 %v526
      %v528 = vlaneseq
      %v529 = vshrl.u32 %v528, 7
      %v530 = vsub.s32 %v527, %v529
      %v531 = vrot.slane %v517, %v530
      %v532 = vcombine.high %v508, 0.0
      %v533 = vcombine.high %v515, 0.0
      %v534 = vcombine.high %v524, 0.0
      %v535 = vcombine.high %v531, 0.0
      %v536 = vcombine.low %v347, %v423
      %v537 = vcombine.high %v347, %v423
      %v539 = vunpack.c.l.s4 1983009808
      %v540 = vunpack.c.0.s8 %v539
      %v541 = vlaneseq
      %v542 = vshrl.u32 %v541, 7
      %v543 = vsub.s32 %v540, %v542
      %v544 = vrot.slane %v536, %v543
      %v546 = vunpack.c.l.s4 1983009808
      %v547 = vunpack.c.0.s8 %v546
      %v548 = vlaneseq
      %v549 = vshrl.u32 %v548, 7
      %v550 = vsub.s32 %v547, %v549
      %v551 = vrot.slane %v537, %v550
      %v552 = vcombine.low %v399, %v447
      %v553 = vcombine.high %v399, %v447
      %v555 = vunpack.c.l.s4 1983009808
      %v556 = vunpack.c.0.s8 %v555
      %v557 = vlaneseq
      %v558 = vshrl.u32 %v557, 7
      %v559 = vsub.s32 %v556, %v558
      %v560 = vrot.slane %v552, %v559
      %v562 = vunpack.c.l.s4 1983009808
      %v563 = vunpack.c.0.s8 %v562
      %v564 = vlaneseq
      %v565 = vshrl.u32 %v564, 7
      %v566 = vsub.s32 %v563, %v565
      %v567 = vrot.slane %v553, %v566
      %v568 = vcombine.low %v544, %v560
      %v569 = vcombine.high %v544, %v560
      %v571 = vunpack.c.l.s4 1934713408
      %v572 = vunpack.c.0.s8 %v571
      %v573 = vlaneseq
      %v574 = vshrl.u32 %v573, 7
      %v575 = vsub.s32 %v572, %v574
      %v576 = vrot.slane %v568, %v575
      %v578 = vunpack.c.l.s4 1934713408
      %v579 = vunpack.c.0.s8 %v578
      %v580 = vlaneseq
      %v581 = vshrl.u32 %v580, 7
      %v582 = vsub.s32 %v579, %v581
      %v583 = vrot.slane %v569, %v582
      %v584 = vcombine.low %v551, %v567
      %v585 = vcombine.high %v551, %v567
      %v587 = vunpack.c.l.s4 1934713408
      %v588 = vunpack.c.0.s8 %v587
      %v589 = vlaneseq
      %v590 = vshrl.u32 %v589, 7
      %v591 = vsub.s32 %v588, %v590
      %v592 = vrot.slane %v584, %v591
      %v594 = vunpack.c.l.s4 1934713408
      %v595 = vunpack.c.0.s8 %v594
      %v596 = vlaneseq
      %v597 = vshrl.u32 %v596, 7
      %v598 = vsub.s32 %v595, %v597
      %v599 = vrot.slane %v585, %v598
      %v600 = vcombine.high %v576, 0.0
      %v601 = vcombine.high %v583, 0.0
      %v602 = vcombine.high %v592, 0.0
      %v603 = vcombine.high %v599, 0.0
      %v604 = vcombine.low %v348, %v425
      %v605 = vcombine.high %v348, %v425
      %v607 = vunpack.c.l.s4 1983009808
      %v608 = vunpack.c.0.s8 %v607
      %v609 = vlaneseq
      %v610 = vshrl.u32 %v609, 7
      %v611 = vsub.s32 %v608, %v610
      %v612 = vrot.slane %v604, %v611
      %v614 = vunpack.c.l.s4 1983009808
      %v615 = vunpack.c.0.s8 %v614
      %v616 = vlaneseq
      %v617 = vshrl.u32 %v616, 7
      %v618 = vsub.s32 %v615, %v617
      %v619 = vrot.slane %v605, %v618
      %v620 = vcombine.low %v401, %v449
      %v621 = vcombine.high %v401, %v449
      %v623 = vunpack.c.l.s4 1983009808
      %v624 = vunpack.c.0.s8 %v623
      %v625 = vlaneseq
      %v626 = vshrl.u32 %v625, 7
      %v627 = vsub.s32 %v624, %v626
      %v628 = vrot.slane %v620, %v627
      %v630 = vunpack.c.l.s4 1983009808
      %v631 = vunpack.c.0.s8 %v630
      %v632 = vlaneseq
      %v633 = vshrl.u32 %v632, 7
      %v634 = vsub.s32 %v631, %v633
      %v635 = vrot.slane %v621, %v634
      %v636 = vcombine.low %v612, %v628
      %v637 = vcombine.high %v612, %v628
      %v639 = vunpack.c.l.s4 1934713408
      %v640 = vunpack.c.0.s8 %v639
      %v641 = vlaneseq
      %v642 = vshrl.u32 %v641, 7
      %v643 = vsub.s32 %v640, %v642
      %v644 = vrot.slane %v636, %v643
      %v646 = vunpack.c.l.s4 1934713408
      %v647 = vunpack.c.0.s8 %v646
      %v648 = vlaneseq
      %v649 = vshrl.u32 %v648, 7
      %v650 = vsub.s32 %v647, %v649
      %v651 = vrot.slane %v637, %v650
      %v652 = vcombine.low %v619, %v635
      %v653 = vcombine.high %v619, %v635
      %v655 = vunpack.c.l.s4 1934713408
      %v656 = vunpack.c.0.s8 %v655
      %v657 = vlaneseq
      %v658 = vshrl.u32 %v657, 7
      %v659 = vsub.s32 %v656, %v658
      %v660 = vrot.slane %v652, %v659
      %v662 = vunpack.c.l.s4 1934713408
      %v663 = vunpack.c.0.s8 %v662
      %v664 = vlaneseq
      %v665 = vshrl.u32 %v664, 7
      %v666 = vsub.s32 %v663, %v665
      %v667 = vrot.slane %v653, %v666
      %v668 = vcombine.high %v644, 0.0
      %v669 = vcombine.high %v651, 0.0
      %v670 = vcombine.high %v660, 0.0
      %v671 = vcombine.high %v667, 0.0
      %v672 = vcombine.low %v349, %v427
      %v673 = vcombine.high %v349, %v427
      %v675 = vunpack.c.l.s4 1983009808
      %v676 = vunpack.c.0.s8 %v675
      %v677 = vlaneseq
      %v678 = vshrl.u32 %v677, 7
      %v679 = vsub.s32 %v676, %v678
      %v680 = vrot.slane %v672, %v679
      %v682 = vunpack.c.l.s4 1983009808
      %v683 = vunpack.c.0.s8 %v682
      %v684 = vlaneseq
      %v685 = vshrl.u32 %v684, 7
      %v686 = vsub.s32 %v683, %v685
      %v687 = vrot.slane %v673, %v686
      %v688 = vcombine.low %v403, %v451
      %v689 = vcombine.high %v403, %v451
      %v691 = vunpack.c.l.s4 1983009808
      %v692 = vunpack.c.0.s8 %v691
      %v693 = vlaneseq
      %v694 = vshrl.u32 %v693, 7
      %v695 = vsub.s32 %v692, %v694
      %v696 = vrot.slane %v688, %v695
      %v698 = vunpack.c.l.s4 1983009808
      %v699 = vunpack.c.0.s8 %v698
      %v700 = vlaneseq
      %v701 = vshrl.u32 %v700, 7
      %v702 = vsub.s32 %v699, %v701
      %v703 = vrot.slane %v689, %v702
      %v704 = vcombine.low %v680, %v696
      %v705 = vcombine.high %v680, %v696
      %v707 = vunpack.c.l.s4 1934713408
      %v708 = vunpack.c.0.s8 %v707
      %v709 = vlaneseq
      %v710 = vshrl.u32 %v709, 7
      %v711 = vsub.s32 %v708, %v710
      %v712 = vrot.slane %v704, %v711
      %v714 = vunpack.c.l.s4 1934713408
      %v715 = vunpack.c.0.s8 %v714
      %v716 = vlaneseq
      %v717 = vshrl.u32 %v716, 7
      %v718 = vsub.s32 %v715, %v717
      %v719 = vrot.slane %v705, %v718
      %v720 = vcombine.low %v687, %v703
      %v721 = vcombine.high %v687, %v703
      %v723 = vunpack.c.l.s4 1934713408
      %v724 = vunpack.c.0.s8 %v723
      %v725 = vlaneseq
      %v726 = vshrl.u32 %v725, 7
      %v727 = vsub.s32 %v724, %v726
      %v728 = vrot.slane %v720, %v727
      %v730 = vunpack.c.l.s4 1934713408
      %v731 = vunpack.c.0.s8 %v730
      %v732 = vlaneseq
      %v733 = vshrl.u32 %v732, 7
      %v734 = vsub.s32 %v731, %v733
      %v735 = vrot.slane %v721, %v734
      %v736 = vcombine.high %v712, 0.0
      %v737 = vcombine.high %v719, 0.0
      %v738 = vcombine.high %v728, 0.0
      %v739 = vcombine.high %v735, 0.0
      %v740 = vcombine.low %v350, %v429
      %v741 = vcombine.high %v350, %v429
      %v743 = vunpack.c.l.s4 1983009808
      %v744 = vunpack.c.0.s8 %v743
      %v745 = vlaneseq
      %v746 = vshrl.u32 %v745, 7
      %v747 = vsub.s32 %v744, %v746
      %v748 = vrot.slane %v740, %v747
      %v750 = vunpack.c.l.s4 1983009808
      %v751 = vunpack.c.0.s8 %v750
      %v752 = vlaneseq
      %v753 = vshrl.u32 %v752, 7
      %v754 = vsub.s32 %v751, %v753
      %v755 = vrot.slane %v741, %v754
      %v756 = vcombine.low %v405, %v453
      %v757 = vcombine.high %v405, %v453
      %v759 = vunpack.c.l.s4 1983009808
      %v760 = vunpack.c.0.s8 %v759
      %v761 = vlaneseq
      %v762 = vshrl.u32 %v761, 7
      %v763 = vsub.s32 %v760, %v762
      %v764 = vrot.slane %v756, %v763
      %v766 = vunpack.c.l.s4 1983009808
      %v767 = vunpack.c.0.s8 %v766
      %v768 = vlaneseq
      %v769 = vshrl.u32 %v768, 7
      %v770 = vsub.s32 %v767, %v769
      %v771 = vrot.slane %v757, %v770
      %v772 = vcombine.low %v748, %v764
      %v773 = vcombine.high %v748, %v764
      %v775 = vunpack.c.l.s4 1934713408
      %v776 = vunpack.c.0.s8 %v775
      %v777 = vlaneseq
      %v778 = vshrl.u32 %v777, 7
      %v779 = vsub.s32 %v776, %v778
      %v780 = vrot.slane %v772, %v779
      %v782 = vunpack.c.l.s4 1934713408
      %v783 = vunpack.c.0.s8 %v782
      %v784 = vlaneseq
      %v785 = vshrl.u32 %v784, 7
      %v786 = vsub.s32 %v783, %v785
      %v787 = vrot.slane %v773, %v786
      %v788 = vcombine.low %v755, %v771
      %v789 = vcombine.high %v755, %v771
      %v791 = vunpack.c.l.s4 1934713408
      %v792 = vunpack.c.0.s8 %v791
      %v793 = vlaneseq
      %v794 = vshrl.u32 %v793, 7
      %v795 = vsub.s32 %v792, %v794
      %v796 = vrot.slane %v788, %v795
      %v798 = vunpack.c.l.s4 1934713408
      %v799 = vunpack.c.0.s8 %v798
      %v800 = vlaneseq
      %v801 = vshrl.u32 %v800, 7
      %v802 = vsub.s32 %v799, %v801
      %v803 = vrot.slane %v789, %v802
      %v804 = vcombine.high %v780, 0.0
      %v805 = vcombine.high %v787, 0.0
      %v806 = vcombine.high %v796, 0.0
      %v807 = vcombine.high %v803, 0.0
      %v808 = vcombine.low %v351, %v431
      %v809 = vcombine.high %v351, %v431
      %v811 = vunpack.c.l.s4 1983009808
      %v812 = vunpack.c.0.s8 %v811
      %v813 = vlaneseq
      %v814 = vshrl.u32 %v813, 7
      %v815 = vsub.s32 %v812, %v814
      %v816 = vrot.slane %v808, %v815
      %v818 = vunpack.c.l.s4 1983009808
      %v819 = vunpack.c.0.s8 %v818
      %v820 = vlaneseq
      %v821 = vshrl.u32 %v820, 7
      %v822 = vsub.s32 %v819, %v821
      %v823 = vrot.slane %v809, %v822
      %v824 = vcombine.low %v407, %v455
      %v825 = vcombine.high %v407, %v455
      %v827 = vunpack.c.l.s4 1983009808
      %v828 = vunpack.c.0.s8 %v827
      %v829 = vlaneseq
      %v830 = vshrl.u32 %v829, 7
      %v831 = vsub.s32 %v828, %v830
      %v832 = vrot.slane %v824, %v831
      %v834 = vunpack.c.l.s4 1983009808
      %v835 = vunpack.c.0.s8 %v834
      %v836 = vlaneseq
      %v837 = vshrl.u32 %v836, 7
      %v838 = vsub.s32 %v835, %v837
      %v839 = vrot.slane %v825, %v838
      %v840 = vcombine.low %v816, %v832
      %v841 = vcombine.high %v816, %v832
      %v843 = vunpack.c.l.s4 1934713408
      %v844 = vunpack.c.0.s8 %v843
      %v845 = vlaneseq
      %v846 = vshrl.u32 %v845, 7
      %v847 = vsub.s32 %v844, %v846
      %v848 = vrot.slane %v840, %v847
      %v850 = vunpack.c.l.s4 1934713408
      %v851 = vunpack.c.0.s8 %v850
      %v852 = vlaneseq
      %v853 = vshrl.u32 %v852, 7
      %v854 = vsub.s32 %v851, %v853
      %v855 = vrot.slane %v841, %v854
      %v856 = vcombine.low %v823, %v839
      %v857 = vcombine.high %v823, %v839
      %v859 = vunpack.c.l.s4 1934713408
      %v860 = vunpack.c.0.s8 %v859
      %v861 = vlaneseq
      %v862 = vshrl.u32 %v861, 7
      %v863 = vsub.s32 %v860, %v862
      %v864 = vrot.slane %v856, %v863
      %v866 = vunpack.c.l.s4 1934713408
      %v867 = vunpack.c.0.s8 %v866
      %v868 = vlaneseq
      %v869 = vshrl.u32 %v868, 7
      %v870 = vsub.s32 %v867, %v869
      %v871 = vrot.slane %v857, %v870
      %v872 = vcombine.high %v848, 0.0
      %v873 = vcombine.high %v855, 0.0
      %v874 = vcombine.high %v864, 0.0
      %v875 = vcombine.high %v871, 0.0
      %v876 = vcombine.low %v352, %v433
      %v877 = vcombine.high %v352, %v433
      %v879 = vunpack.c.l.s4 1983009808
      %v880 = vunpack.c.0.s8 %v879
      %v881 = vlaneseq
      %v882 = vshrl.u32 %v881, 7
      %v883 = vsub.s32 %v880, %v882
      %v884 = vrot.slane %v876, %v883
      %v886 = vunpack.c.l.s4 1983009808
      %v887 = vunpack.c.0.s8 %v886
      %v888 = vlaneseq
      %v889 = vshrl.u32 %v888, 7
      %v890 = vsub.s32 %v887, %v889
      %v891 = vrot.slane %v877, %v890
      %v892 = vcombine.low %v409, %v457
      %v893 = vcombine.high %v409, %v457
      %v895 = vunpack.c.l.s4 1983009808
      %v896 = vunpack.c.0.s8 %v895
      %v897 = vlaneseq
      %v898 = vshrl.u32 %v897, 7
      %v899 = vsub.s32 %v896, %v898
      %v900 = vrot.slane %v892, %v899
      %v902 = vunpack.c.l.s4 1983009808
      %v903 = vunpack.c.0.s8 %v902
      %v904 = vlaneseq
      %v905 = vshrl.u32 %v904, 7
      %v906 = vsub.s32 %v903, %v905
      %v907 = vrot.slane %v893, %v906
      %v908 = vcombine.low %v884, %v900
      %v909 = vcombine.high %v884, %v900
      %v911 = vunpack.c.l.s4 1934713408
      %v912 = vunpack.c.0.s8 %v911
      %v913 = vlaneseq
      %v914 = vshrl.u32 %v913, 7
      %v915 = vsub.s32 %v912, %v914
      %v916 = vrot.slane %v908, %v915
      %v918 = vunpack.c.l.s4 1934713408
      %v919 = vunpack.c.0.s8 %v918
      %v920 = vlaneseq
      %v921 = vshrl.u32 %v920, 7
      %v922 = vsub.s32 %v919, %v921
      %v923 = vrot.slane %v909, %v922
      %v924 = vcombine.low %v891, %v907
      %v925 = vcombine.high %v891, %v907
      %v927 = vunpack.c.l.s4 1934713408
      %v928 = vunpack.c.0.s8 %v927
      %v929 = vlaneseq
      %v930 = vshrl.u32 %v929, 7
      %v931 = vsub.s32 %v928, %v930
      %v932 = vrot.slane %v924, %v931
      %v934 = vunpack.c.l.s4 1934713408
      %v935 = vunpack.c.0.s8 %v934
      %v936 = vlaneseq
      %v937 = vshrl.u32 %v936, 7
      %v938 = vsub.s32 %v935, %v937
      %v939 = vrot.slane %v925, %v938
      %v940 = vcombine.high %v916, 0.0
      %v941 = vcombine.high %v923, 0.0
      %v942 = vcombine.high %v932, 0.0
      %v943 = vcombine.high %v939, 0.0
      %v944 = vcombine.low %v353, %v435
      %v945 = vcombine.high %v353, %v435
      %v947 = vunpack.c.l.s4 1983009808
      %v948 = vunpack.c.0.s8 %v947
      %v949 = vlaneseq
      %v950 = vshrl.u32 %v949, 7
      %v951 = vsub.s32 %v948, %v950
      %v952 = vrot.slane %v944, %v951
      %v954 = vunpack.c.l.s4 1983009808
      %v955 = vunpack.c.0.s8 %v954
      %v956 = vlaneseq
      %v957 = vshrl.u32 %v956, 7
      %v958 = vsub.s32 %v955, %v957
      %v959 = vrot.slane %v945, %v958
      %v960 = vcombine.low %v411, %v459
      %v961 = vcombine.high %v411, %v459
      %v963 = vunpack.c.l.s4 1983009808
      %v964 = vunpack.c.0.s8 %v963
      %v965 = vlaneseq
      %v966 = vshrl.u32 %v965, 7
      %v967 = vsub.s32 %v964, %v966
      %v968 = vrot.slane %v960, %v967
      %v970 = vunpack.c.l.s4 1983009808
      %v971 = vunpack.c.0.s8 %v970
      %v972 = vlaneseq
      %v973 = vshrl.u32 %v972, 7
      %v974 = vsub.s32 %v971, %v973
      %v975 = vrot.slane %v961, %v974
      %v976 = vcombine.low %v952, %v968
      %v977 = vcombine.high %v952, %v968
      %v979 = vunpack.c.l.s4 1934713408
      %v980 = vunpack.c.0.s8 %v979
      %v981 = vlaneseq
      %v982 = vshrl.u32 %v981, 7
      %v983 = vsub.s32 %v980, %v982
      %v984 = vrot.slane %v976, %v983
      %v986 = vunpack.c.l.s4 1934713408
      %v987 = vunpack.c.0.s8 %v986
      %v988 = vlaneseq
      %v989 = vshrl.u32 %v988, 7
      %v990 = vsub.s32 %v987, %v989
      %v991 = vrot.slane %v977, %v990
      %v992 = vcombine.low %v959, %v975
      %v993 = vcombine.high %v959, %v975
      %v995 = vunpack.c.l.s4 1934713408
      %v996 = vunpack.c.0.s8 %v995
      %v997 = vlaneseq
      %v998 = vshrl.u32 %v997, 7
      %v999 = vsub.s32 %v996, %v998
      %v1000 = vrot.slane %v992, %v999
      %v1002 = vunpack.c.l.s4 1934713408
      %v1003 = vunpack.c.0.s8 %v1002
      %v1004 = vlaneseq
      %v1005 = vshrl.u32 %v1004, 7
      %v1006 = vsub.s32 %v1003, %v1005
      %v1007 = vrot.slane %v993, %v1006
      %v1008 = vcombine.high %v984, 0.0
      %v1009 = vcombine.high %v991, 0.0
      %v1010 = vcombine.high %v1000, 0.0
      %v1011 = vcombine.high %v1007, 0.0
      %v1012 = vcombine.low %v508, %v515
      %v1014 = vunpack.c.l.s4 1983009808
      %v1015 = vunpack.c.0.s8 %v1014
      %v1016 = vlaneseq
      %v1017 = vshrl.u32 %v1016, 7
      %v1018 = vsub.s32 %v1015, %v1017
      %v1019 = vrot.slane %v1012, %v1018
      %v1020 = vcombine.low %v532, %v533
      %v1022 = vunpack.c.l.s4 1983009808
      %v1023 = vunpack.c.0.s8 %v1022
      %v1024 = vlaneseq
      %v1025 = vshrl.u32 %v1024, 7
      %v1026 = vsub.s32 %v1023, %v1025
      %v1027 = vrot.slane %v1020, %v1026
      %v1028 = vcombine.low %v524, %v531
      %v1030 = vunpack.c.l.s4 1983009808
      %v1031 = vunpack.c.0.s8 %v1030
      %v1032 = vlaneseq
      %v1033 = vshrl.u32 %v1032, 7
      %v1034 = vsub.s32 %v1031, %v1033
      %v1035 = vrot.slane %v1028, %v1034
      %v1036 = vcombine.low %v534, %v535
      %v1038 = vunpack.c.l.s4 1983009808
      %v1039 = vunpack.c.0.s8 %v1038
      %v1040 = vlaneseq
      %v1041 = vshrl.u32 %v1040, 7
      %v1042 = vsub.s32 %v1039, %v1041
      %v1043 = vrot.slane %v1036, %v1042
      %v1044 = vcombine.low %v1019, %v1027
      %v1045 = vcombine.high %v1019, %v1027
      %v1047 = vunpack.c.l.s4 1934713408
      %v1048 = vunpack.c.0.s8 %v1047
      %v1049 = vlaneseq
      %v1050 = vshrl.u32 %v1049, 7
      %v1051 = vsub.s32 %v1048, %v1050
      %v1052 = vrot.slane %v1044, %v1051
      %v1054 = vunpack.c.l.s4 1934713408
      %v1055 = vunpack.c.0.s8 %v1054
      %v1056 = vlaneseq
      %v1057 = vshrl.u32 %v1056, 7
      %v1058 = vsub.s32 %v1055, %v1057
      %v1059 = vrot.slane %v1045, %v1058
      %v1060 = vcombine.low %v1035, %v1043
      %v1061 = vcombine.high %v1035, %v1043
      %v1063 = vunpack.c.l.s4 1934713408
      %v1064 = vunpack.c.0.s8 %v1063
      %v1065 = vlaneseq
      %v1066 = vshrl.u32 %v1065, 7
      %v1067 = vsub.s32 %v1064, %v1066
      %v1068 = vrot.slane %v1060, %v1067
      %v1070 = vunpack.c.l.s4 1934713408
      %v1071 = vunpack.c.0.s8 %v1070
      %v1072 = vlaneseq
      %v1073 = vshrl.u32 %v1072, 7
      %v1074 = vsub.s32 %v1071, %v1073
      %v1075 = vrot.slane %v1061, %v1074
      %v1076 = vcombine.low %v1052, %v1068
      %v1077 = vcombine.high %v1052, %v1068
      %v1078 = vcombine.low %v1059, %v1075
      %v1079 = vcombine.high %v1059, %v1075
      %v1080 = vcombine.low %v576, %v583
      %v1082 = vunpack.c.l.s4 1983009808
      %v1083 = vunpack.c.0.s8 %v1082
      %v1084 = vlaneseq
      %v1085 = vshrl.u32 %v1084, 7
      %v1086 = vsub.s32 %v1083, %v1085
      %v1087 = vrot.slane %v1080, %v1086
      %v1088 = vcombine.low %v600, %v601
      %v1090 = vunpack.c.l.s4 1983009808
      %v1091 = vunpack.c.0.s8 %v1090
      %v1092 = vlaneseq
      %v1093 = vshrl.u32 %v1092, 7
      %v1094 = vsub.s32 %v1091, %v1093
      %v1095 = vrot.slane %v1088, %v1094
      %v1096 = vcombine.low %v592, %v599
      %v1098 = vunpack.c.l.s4 1983009808
      %v1099 = vunpack.c.0.s8 %v1098
      %v1100 = vlaneseq
      %v1101 = vshrl.u32 %v1100, 7
      %v1102 = vsub.s32 %v1099, %v1101
      %v1103 = vrot.slane %v1096, %v1102
      %v1104 = vcombine.low %v602, %v603
      %v1106 = vunpack.c.l.s4 1983009808
      %v1107 = vunpack.c.0.s8 %v1106
      %v1108 = vlaneseq
      %v1109 = vshrl.u32 %v1108, 7
      %v1110 = vsub.s32 %v1107, %v1109
      %v1111 = vrot.slane %v1104, %v1110
      %v1112 = vcombine.low %v1087, %v1095
      %v1113 = vcombine.high %v1087, %v1095
      %v1115 = vunpack.c.l.s4 1934713408
      %v1116 = vunpack.c.0.s8 %v1115
      %v1117 = vlaneseq
      %v1118 = vshrl.u32 %v1117, 7
      %v1119 = vsub.s32 %v1116, %v1118
      %v1120 = vrot.slane %v1112, %v1119
      %v1122 = vunpack.c.l.s4 1934713408
      %v1123 = vunpack.c.0.s8 %v1122
      %v1124 = vlaneseq
      %v1125 = vshrl.u32 %v1124, 7
      %v1126 = vsub.s32 %v1123, %v1125
      %v1127 = vrot.slane %v1113, %v1126
      %v1128 = vcombine.low %v1103, %v1111
      %v1129 = vcombine.high %v1103, %v1111
      %v1131 = vunpack.c.l.s4 1934713408
      %v1132 = vunpack.c.0.s8 %v1131
      %v1133 = vlaneseq
      %v1134 = vshrl.u32 %v1133, 7
      %v1135 = vsub.s32 %v1132, %v1134
      %v1136 = vrot.slane %v1128, %v1135
      %v1138 = vunpack.c.l.s4 1934713408
      %v1139 = vunpack.c.0.s8 %v1138
      %v1140 = vlaneseq
      %v1141 = vshrl.u32 %v1140, 7
      %v1142 = vsub.s32 %v1139, %v1141
      %v1143 = vrot.slane %v1129, %v1142
      %v1144 = vcombine.low %v1120, %v1136
      %v1145 = vcombine.high %v1120, %v1136
      %v1146 = vcombine.low %v1127, %v1143
      %v1147 = vcombine.high %v1127, %v1143
      %v1148 = vcombine.low %v644, %v651
      %v1150 = vunpack.c.l.s4 1983009808
      %v1151 = vunpack.c.0.s8 %v1150
      %v1152 = vlaneseq
      %v1153 = vshrl.u32 %v1152, 7
      %v1154 = vsub.s32 %v1151, %v1153
      %v1155 = vrot.slane %v1148, %v1154
      %v1156 = vcombine.low %v668, %v669
      %v1158 = vunpack.c.l.s4 1983009808
      %v1159 = vunpack.c.0.s8 %v1158
      %v1160 = vlaneseq
      %v1161 = vshrl.u32 %v1160, 7
      %v1162 = vsub.s32 %v1159, %v1161
      %v1163 = vrot.slane %v1156, %v1162
      %v1164 = vcombine.low %v660, %v667
      %v1166 = vunpack.c.l.s4 1983009808
      %v1167 = vunpack.c.0.s8 %v1166
      %v1168 = vlaneseq
      %v1169 = vshrl.u32 %v1168, 7
      %v1170 = vsub.s32 %v1167, %v1169
      %v1171 = vrot.slane %v1164, %v1170
      %v1172 = vcombine.low %v670, %v671
      %v1174 = vunpack.c.l.s4 1983009808
      %v1175 = vunpack.c.0.s8 %v1174
      %v1176 = vlaneseq
      %v1177 = vshrl.u32 %v1176, 7
      %v1178 = vsub.s32 %v1175, %v1177
      %v1179 = vrot.slane %v1172, %v1178
      %v1180 = vcombine.low %v1155, %v1163
      %v1181 = vcombine.high %v1155, %v1163
      %v1183 = vunpack.c.l.s4 1934713408
      %v1184 = vunpack.c.0.s8 %v1183
      %v1185 = vlaneseq
      %v1186 = vshrl.u32 %v1185, 7
      %v1187 = vsub.s32 %v1184, %v1186
      %v1188 = vrot.slane %v1180, %v1187
      %v1190 = vunpack.c.l.s4 1934713408
      %v1191 = vunpack.c.0.s8 %v1190
      %v1192 = vlaneseq
      %v1193 = vshrl.u32 %v1192, 7
      %v1194 = vsub.s32 %v1191, %v1193
      %v1195 = vrot.slane %v1181, %v1194
      %v1196 = vcombine.low %v1171, %v1179
      %v1197 = vcombine.high %v1171, %v1179
      %v1199 = vunpack.c.l.s4 1934713408
      %v1200 = vunpack.c.0.s8 %v1199
      %v1201 = vlaneseq
      %v1202 = vshrl.u32 %v1201, 7
      %v1203 = vsub.s32 %v1200, %v1202
      %v1204 = vrot.slane %v1196, %v1203
      %v1206 = vunpack.c.l.s4 1934713408
      %v1207 = vunpack.c.0.s8 %v1206
      %v1208 = vlaneseq
      %v1209 = vshrl.u32 %v1208, 7
      %v1210 = vsub.s32 %v1207, %v1209
      %v1211 = vrot.slane %v1197, %v1210
      %v1212 = vcombine.low %v1188, %v1204
      %v1213 = vcombine.high %v1188, %v1204
      %v1214 = vcombine.low %v1195, %v1211
      %v1215 = vcombine.high %v1195, %v1211
      %v1216 = vcombine.low %v712, %v719
      %v1218 = vunpack.c.l.s4 1983009808
      %v1219 = vunpack.c.0.s8 %v1218
      %v1220 = vlaneseq
      %v1221 = vshrl.u32 %v1220, 7
      %v1222 = vsub.s32 %v1219, %v1221
      %v1223 = vrot.slane %v1216, %v1222
      %v1224 = vcombine.low %v736, %v737
      %v1226 = vunpack.c.l.s4 1983009808
      %v1227 = vunpack.c.0.s8 %v1226
      %v1228 = vlaneseq
      %v1229 = vshrl.u32 %v1228, 7
      %v1230 = vsub.s32 %v1227, %v1229
      %v1231 = vrot.slane %v1224, %v1230
      %v1232 = vcombine.low %v728, %v735
      %v1234 = vunpack.c.l.s4 1983009808
      %v1235 = vunpack.c.0.s8 %v1234
      %v1236 = vlaneseq
      %v1237 = vshrl.u32 %v1236, 7
      %v1238 = vsub.s32 %v1235, %v1237
      %v1239 = vrot.slane %v1232, %v1238
      %v1240 = vcombine.low %v738, %v739
      %v1242 = vunpack.c.l.s4 1983009808
      %v1243 = vunpack.c.0.s8 %v1242
      %v1244 = vlaneseq
      %v1245 = vshrl.u32 %v1244, 7
      %v1246 = vsub.s32 %v1243, %v1245
      %v1247 = vrot.slane %v1240, %v1246
      %v1248 = vcombine.low %v1223, %v1231
      %v1249 = vcombine.high %v1223, %v1231
      %v1251 = vunpack.c.l.s4 1934713408
      %v1252 = vunpack.c.0.s8 %v1251
      %v1253 = vlaneseq
      %v1254 = vshrl.u32 %v1253, 7
      %v1255 = vsub.s32 %v1252, %v1254
      %v1256 = vrot.slane %v1248, %v1255
      %v1258 = vunpack.c.l.s4 1934713408
      %v1259 = vunpack.c.0.s8 %v1258
      %v1260 = vlaneseq
      %v1261 = vshrl.u32 %v1260, 7
      %v1262 = vsub.s32 %v1259, %v1261
      %v1263 = vrot.slane %v1249, %v1262
      %v1264 = vcombine.low %v1239, %v1247
      %v1265 = vcombine.high %v1239, %v1247
      %v1267 = vunpack.c.l.s4 1934713408
      %v1268 = vunpack.c.0.s8 %v1267
      %v1269 = vlaneseq
      %v1270 = vshrl.u32 %v1269, 7
      %v1271 = vsub.s32 %v1268, %v1270
      %v1272 = vrot.slane %v1264, %v1271
      %v1274 = vunpack.c.l.s4 1934713408
      %v1275 = vunpack.c.0.s8 %v1274
      %v1276 = vlaneseq
      %v1277 = vshrl.u32 %v1276, 7
      %v1278 = vsub.s32 %v1275, %v1277
      %v1279 = vrot.slane %v1265, %v1278
      %v1280 = vcombine.low %v1256, %v1272
      %v1281 = vcombine.high %v1256, %v1272
      %v1282 = vcombine.low %v1263, %v1279
      %v1283 = vcombine.high %v1263, %v1279
      %v1284 = vcombine.low %v780, %v787
      %v1286 = vunpack.c.l.s4 1983009808
      %v1287 = vunpack.c.0.s8 %v1286
      %v1288 = vlaneseq
      %v1289 = vshrl.u32 %v1288, 7
      %v1290 = vsub.s32 %v1287, %v1289
      %v1291 = vrot.slane %v1284, %v1290
      %v1292 = vcombine.low %v804, %v805
      %v1294 = vunpack.c.l.s4 1983009808
      %v1295 = vunpack.c.0.s8 %v1294
      %v1296 = vlaneseq
      %v1297 = vshrl.u32 %v1296, 7
      %v1298 = vsub.s32 %v1295, %v1297
      %v1299 = vrot.slane %v1292, %v1298
      %v1300 = vcombine.low %v796, %v803
      %v1302 = vunpack.c.l.s4 1983009808
      %v1303 = vunpack.c.0.s8 %v1302
      %v1304 = vlaneseq
      %v1305 = vshrl.u32 %v1304, 7
      %v1306 = vsub.s32 %v1303, %v1305
      %v1307 = vrot.slane %v1300, %v1306
      %v1308 = vcombine.low %v806, %v807
      %v1310 = vunpack.c.l.s4 1983009808
      %v1311 = vunpack.c.0.s8 %v1310
      %v1312 = vlaneseq
      %v1313 = vshrl.u32 %v1312, 7
      %v1314 = vsub.s32 %v1311, %v1313
      %v1315 = vrot.slane %v1308, %v1314
      %v1316 = vcombine.low %v1291, %v1299
      %v1317 = vcombine.high %v1291, %v1299
      %v1319 = vunpack.c.l.s4 1934713408
      %v1320 = vunpack.c.0.s8 %v1319
      %v1321 = vlaneseq
      %v1322 = vshrl.u32 %v1321, 7
      %v1323 = vsub.s32 %v1320, %v1322
      %v1324 = vrot.slane %v1316, %v1323
      %v1326 = vunpack.c.l.s4 1934713408
      %v1327 = vunpack.c.0.s8 %v1326
      %v1328 = vlaneseq
      %v1329 = vshrl.u32 %v1328, 7
      %v1330 = vsub.s32 %v1327, %v1329
      %v1331 = vrot.slane %v1317, %v1330
      %v1332 = vcombine.low %v1307, %v1315
      %v1333 = vcombine.high %v1307, %v1315
      %v1335 = vunpack.c.l.s4 1934713408
      %v1336 = vunpack.c.0.s8 %v1335
      %v1337 = vlaneseq
      %v1338 = vshrl.u32 %v1337, 7
      %v1339 = vsub.s32 %v1336, %v1338
      %v1340 = vrot.slane %v1332, %v1339
      %v1342 = vunpack.c.l.s4 1934713408
      %v1343 = vunpack.c.0.s8 %v1342
      %v1344 = vlaneseq
      %v1345 = vshrl.u32 %v1344, 7
      %v1346 = vsub.s32 %v1343, %v1345
      %v1347 = vrot.slane %v1333, %v1346
      %v1348 = vcombine.low %v1324, %v1340
      %v1349 = vcombine.high %v1324, %v1340
      %v1350 = vcombine.low %v1331, %v1347
      %v1351 = vcombine.high %v1331, %v1347
      %v1352 = vcombine.low %v848, %v855
      %v1354 = vunpack.c.l.s4 1983009808
      %v1355 = vunpack.c.0.s8 %v1354
      %v1356 = vlaneseq
      %v1357 = vshrl.u32 %v1356, 7
      %v1358 = vsub.s32 %v1355, %v1357
      %v1359 = vrot.slane %v1352, %v1358
      %v1360 = vcombine.low %v872, %v873
      %v1362 = vunpack.c.l.s4 1983009808
      %v1363 = vunpack.c.0.s8 %v1362
      %v1364 = vlaneseq
      %v1365 = vshrl.u32 %v1364, 7
      %v1366 = vsub.s32 %v1363, %v1365
      %v1367 = vrot.slane %v1360, %v1366
      %v1368 = vcombine.low %v864, %v871
      %v1370 = vunpack.c.l.s4 1983009808
      %v1371 = vunpack.c.0.s8 %v1370
      %v1372 = vlaneseq
      %v1373 = vshrl.u32 %v1372, 7
      %v1374 = vsub.s32 %v1371, %v1373
      %v1375 = vrot.slane %v1368, %v1374
      %v1376 = vcombine.low %v874, %v875
      %v1378 = vunpack.c.l.s4 1983009808
      %v1379 = vunpack.c.0.s8 %v1378
      %v1380 = vlaneseq
      %v1381 = vshrl.u32 %v1380, 7
      %v1382 = vsub.s32 %v1379, %v1381
      %v1383 = vrot.slane %v1376, %v1382
      %v1384 = vcombine.low %v1359, %v1367
      %v1385 = vcombine.high %v1359, %v1367
      %v1387 = vunpack.c.l.s4 1934713408
      %v1388 = vunpack.c.0.s8 %v1387
      %v1389 = vlaneseq
      %v1390 = vshrl.u32 %v1389, 7
      %v1391 = vsub.s32 %v1388, %v1390
      %v1392 = vrot.slane %v1384, %v1391
      %v1394 = vunpack.c.l.s4 1934713408
      %v1395 = vunpack.c.0.s8 %v1394
      %v1396 = vlaneseq
      %v1397 = vshrl.u32 %v1396, 7
      %v1398 = vsub.s32 %v1395, %v1397
      %v1399 = vrot.slane %v1385, %v1398
      %v1400 = vcombine.low %v1375, %v1383
      %v1401 = vcombine.high %v1375, %v1383
      %v1403 = vunpack.c.l.s4 1934713408
      %v1404 = vunpack.c.0.s8 %v1403
      %v1405 = vlaneseq
      %v1406 = vshrl.u32 %v1405, 7
      %v1407 = vsub.s32 %v1404, %v1406
      %v1408 = vrot.slane %v1400, %v1407
      %v1410 = vunpack.c.l.s4 1934713408
      %v1411 = vunpack.c.0.s8 %v1410
      %v1412 = vlaneseq
      %v1413 = vshrl.u32 %v1412, 7
      %v1414 = vsub.s32 %v1411, %v1413
      %v1415 = vrot.slane %v1401, %v1414
      %v1416 = vcombine.low %v1392, %v1408
      %v1417 = vcombine.high %v1392, %v1408
      %v1418 = vcombine.low %v1399, %v1415
      %v1419 = vcombine.high %v1399, %v1415
      %v1420 = vcombine.low %v916, %v923
      %v1422 = vunpack.c.l.s4 1983009808
      %v1423 = vunpack.c.0.s8 %v1422
      %v1424 = vlaneseq
      %v1425 = vshrl.u32 %v1424, 7
      %v1426 = vsub.s32 %v1423, %v1425
      %v1427 = vrot.slane %v1420, %v1426
      %v1428 = vcombine.low %v940, %v941
      %v1430 = vunpack.c.l.s4 1983009808
      %v1431 = vunpack.c.0.s8 %v1430
      %v1432 = vlaneseq
      %v1433 = vshrl.u32 %v1432, 7
      %v1434 = vsub.s32 %v1431, %v1433
      %v1435 = vrot.slane %v1428, %v1434
      %v1436 = vcombine.low %v932, %v939
      %v1438 = vunpack.c.l.s4 1983009808
      %v1439 = vunpack.c.0.s8 %v1438
      %v1440 = vlaneseq
      %v1441 = vshrl.u32 %v1440, 7
      %v1442 = vsub.s32 %v1439, %v1441
      %v1443 = vrot.slane %v1436, %v1442
      %v1444 = vcombine.low %v942, %v943
      %v1446 = vunpack.c.l.s4 1983009808
      %v1447 = vunpack.c.0.s8 %v1446
      %v1448 = vlaneseq
      %v1449 = vshrl.u32 %v1448, 7
      %v1450 = vsub.s32 %v1447, %v1449
      %v1451 = vrot.slane %v1444, %v1450
      %v1452 = vcombine.low %v1427, %v1435
      %v1453 = vcombine.high %v1427, %v1435
      %v1455 = vunpack.c.l.s4 1934713408
      %v1456 = vunpack.c.0.s8 %v1455
      %v1457 = vlaneseq
      %v1458 = vshrl.u32 %v1457, 7
      %v1459 = vsub.s32 %v1456, %v1458
      %v1460 = vrot.slane %v1452, %v1459
      %v1462 = vunpack.c.l.s4 1934713408
      %v1463 = vunpack.c.0.s8 %v1462
      %v1464 = vlaneseq
      %v1465 = vshrl.u32 %v1464, 7
      %v1466 = vsub.s32 %v1463, %v1465
      %v1467 = vrot.slane %v1453, %v1466
      %v1468 = vcombine.low %v1443, %v1451
      %v1469 = vcombine.high %v1443, %v1451
      %v1471 = vunpack.c.l.s4 1934713408
      %v1472 = vunpack.c.0.s8 %v1471
      %v1473 = vlaneseq
      %v1474 = vshrl.u32 %v1473, 7
      %v1475 = vsub.s32 %v1472, %v1474
      %v1476 = vrot.slane %v1468, %v1475
      %v1478 = vunpack.c.l.s4 1934713408
      %v1479 = vunpack.c.0.s8 %v1478
      %v1480 = vlaneseq
      %v1481 = vshrl.u32 %v1480, 7
      %v1482 = vsub.s32 %v1479, %v1481
      %v1483 = vrot.slane %v1469, %v1482
      %v1484 = vcombine.low %v1460, %v1476
      %v1485 = vcombine.high %v1460, %v1476
      %v1486 = vcombine.low %v1467, %v1483
      %v1487 = vcombine.high %v1467, %v1483
      %v1488 = vcombine.low %v984, %v991
      %v1490 = vunpack.c.l.s4 1983009808
      %v1491 = vunpack.c.0.s8 %v1490
      %v1492 = vlaneseq
      %v1493 = vshrl.u32 %v1492, 7
      %v1494 = vsub.s32 %v1491, %v1493
      %v1495 = vrot.slane %v1488, %v1494
      %v1496 = vcombine.low %v1008, %v1009
      %v1498 = vunpack.c.l.s4 1983009808
      %v1499 = vunpack.c.0.s8 %v1498
      %v1500 = vlaneseq
      %v1501 = vshrl.u32 %v1500, 7
      %v1502 = vsub.s32 %v1499, %v1501
      %v1503 = vrot.slane %v1496, %v1502
      %v1504 = vcombine.low %v1000, %v1007
      %v1506 = vunpack.c.l.s4 1983009808
      %v1507 = vunpack.c.0.s8 %v1506
      %v1508 = vlaneseq
      %v1509 = vshrl.u32 %v1508, 7
      %v1510 = vsub.s32 %v1507, %v1509
      %v1511 = vrot.slane %v1504, %v1510
      %v1512 = vcombine.low %v1010, %v1011
      %v1514 = vunpack.c.l.s4 1983009808
      %v1515 = vunpack.c.0.s8 %v1514
      %v1516 = vlaneseq
      %v1517 = vshrl.u32 %v1516, 7
      %v1518 = vsub.s32 %v1515, %v1517
      %v1519 = vrot.slane %v1512, %v1518
      %v1520 = vcombine.low %v1495, %v1503
      %v1521 = vcombine.high %v1495, %v1503
      %v1523 = vunpack.c.l.s4 1934713408
      %v1524 = vunpack.c.0.s8 %v1523
      %v1525 = vlaneseq
      %v1526 = vshrl.u32 %v1525, 7
      %v1527 = vsub.s32 %v1524, %v1526
      %v1528 = vrot.slane %v1520, %v1527
      %v1530 = vunpack.c.l.s4 1934713408
      %v1531 = vunpack.c.0.s8 %v1530
      %v1532 = vlaneseq
      %v1533 = vshrl.u32 %v1532, 7
      %v1534 = vsub.s32 %v1531, %v1533
      %v1535 = vrot.slane %v1521, %v1534
      %v1536 = vcombine.low %v1511, %v1519
      %v1537 = vcombine.high %v1511, %v1519
      %v1539 = vunpack.c.l.s4 1934713408
      %v1540 = vunpack.c.0.s8 %v1539
      %v1541 = vlaneseq
      %v1542 = vshrl.u32 %v1541, 7
      %v1543 = vsub.s32 %v1540, %v1542
      %v1544 = vrot.slane %v1536, %v1543
      %v1546 = vunpack.c.l.s4 1934713408
      %v1547 = vunpack.c.0.s8 %v1546
      %v1548 = vlaneseq
      %v1549 = vshrl.u32 %v1548, 7
      %v1550 = vsub.s32 %v1547, %v1549
      %v1551 = vrot.slane %v1537, %v1550
      %v1552 = vcombine.low %v1528, %v1544
      %v1553 = vcombine.high %v1528, %v1544
      %v1554 = vcombine.low %v1535, %v1551
      %v1555 = vcombine.high %v1535, %v1551
      %1564 = vrot.lane.b32.xlu0 %v363, 120
      %v1565 = vpop.permute.xlu0 %1564
      %1566 = vrot.lane.b32.xlu0 %v364, 120
      %v1567 = vpop.permute.xlu0 %1566
      %1568 = vrot.lane.b32.xlu0 %v365, 120
      %v1569 = vpop.permute.xlu0 %1568
      %1570 = vrot.lane.b32.xlu0 %v366, 120
      %v1571 = vpop.permute.xlu0 %1570
      %1572 = vrot.lane.b32.xlu0 %v367, 120
      %v1573 = vpop.permute.xlu0 %1572
      %1574 = vrot.lane.b32.xlu0 %v368, 120
      %v1575 = vpop.permute.xlu0 %1574
      %1576 = vrot.lane.b32.xlu0 %v369, 120
      %v1577 = vpop.permute.xlu0 %1576
      %1578 = vrot.lane.b32.xlu0 %v370, 120
      %v1579 = vpop.permute.xlu0 %1578
      %1580 = vrot.lane.b32.xlu0 %v363, 112
      %v1581 = vpop.permute.xlu0 %1580
      %1582 = vrot.lane.b32.xlu0 %v364, 112
      %v1583 = vpop.permute.xlu0 %1582
      %1584 = vrot.lane.b32.xlu0 %v365, 112
      %v1585 = vpop.permute.xlu0 %1584
      %1586 = vrot.lane.b32.xlu0 %v366, 112
      %v1587 = vpop.permute.xlu0 %1586
      %1588 = vrot.lane.b32.xlu0 %v367, 112
      %v1589 = vpop.permute.xlu0 %1588
      %1590 = vrot.lane.b32.xlu0 %v368, 112
      %v1591 = vpop.permute.xlu0 %1590
      %1592 = vrot.lane.b32.xlu0 %v369, 112
      %v1593 = vpop.permute.xlu0 %1592
      %1594 = vrot.lane.b32.xlu0 %v370, 112
      %v1595 = vpop.permute.xlu0 %1594
      %1596 = vrot.lane.b32.xlu0 %v363, 104
      %v1597 = vpop.permute.xlu0 %1596
      %1598 = vrot.lane.b32.xlu0 %v364, 104
      %v1599 = vpop.permute.xlu0 %1598
      %1600 = vrot.lane.b32.xlu0 %v365, 104
      %v1601 = vpop.permute.xlu0 %1600
      %1602 = vrot.lane.b32.xlu0 %v366, 104
      %v1603 = vpop.permute.xlu0 %1602
      %1604 = vrot.lane.b32.xlu0 %v367, 104
      %v1605 = vpop.permute.xlu0 %1604
      %1606 = vrot.lane.b32.xlu0 %v368, 104
      %v1607 = vpop.permute.xlu0 %1606
      %1608 = vrot.lane.b32.xlu0 %v369, 104
      %v1609 = vpop.permute.xlu0 %1608
      %1610 = vrot.lane.b32.xlu0 %v370, 104
      %v1611 = vpop.permute.xlu0 %1610
      %1612 = vrot.lane.b32.xlu0 %v363, 96
      %v1613 = vpop.permute.xlu0 %1612
      %1614 = vrot.lane.b32.xlu0 %v364, 96
      %v1615 = vpop.permute.xlu0 %1614
      %1616 = vrot.lane.b32.xlu0 %v365, 96
      %v1617 = vpop.permute.xlu0 %1616
      %1618 = vrot.lane.b32.xlu0 %v366, 96
      %v1619 = vpop.permute.xlu0 %1618
      %1620 = vrot.lane.b32.xlu0 %v367, 96
      %v1621 = vpop.permute.xlu0 %1620
      %1622 = vrot.lane.b32.xlu0 %v368, 96
      %v1623 = vpop.permute.xlu0 %1622
      %1624 = vrot.lane.b32.xlu0 %v369, 96
      %v1625 = vpop.permute.xlu0 %1624
      %1626 = vrot.lane.b32.xlu0 %v370, 96
      %v1627 = vpop.permute.xlu0 %1626
      %1628 = vrot.lane.b32.xlu0 %v1565, 96
      %v1629 = vpop.permute.xlu0 %1628
      %1630 = vrot.lane.b32.xlu0 %v1567, 96
      %v1631 = vpop.permute.xlu0 %1630
      %1632 = vrot.lane.b32.xlu0 %v1569, 96
      %v1633 = vpop.permute.xlu0 %1632
      %1634 = vrot.lane.b32.xlu0 %v1571, 96
      %v1635 = vpop.permute.xlu0 %1634
      %1636 = vrot.lane.b32.xlu0 %v1573, 96
      %v1637 = vpop.permute.xlu0 %1636
      %1638 = vrot.lane.b32.xlu0 %v1575, 96
      %v1639 = vpop.permute.xlu0 %1638
      %1640 = vrot.lane.b32.xlu0 %v1577, 96
      %v1641 = vpop.permute.xlu0 %1640
      %1642 = vrot.lane.b32.xlu0 %v1579, 96
      %v1643 = vpop.permute.xlu0 %1642
      %1644 = vrot.lane.b32.xlu0 %v1581, 96
      %v1645 = vpop.permute.xlu0 %1644
      %1646 = vrot.lane.b32.xlu0 %v1583, 96
      %v1647 = vpop.permute.xlu0 %1646
      %1648 = vrot.lane.b32.xlu0 %v1585, 96
      %v1649 = vpop.permute.xlu0 %1648
      %1650 = vrot.lane.b32.xlu0 %v1587, 96
      %v1651 = vpop.permute.xlu0 %1650
      %1652 = vrot.lane.b32.xlu0 %v1589, 96
      %v1653 = vpop.permute.xlu0 %1652
      %1654 = vrot.lane.b32.xlu0 %v1591, 96
      %v1655 = vpop.permute.xlu0 %1654
      %1656 = vrot.lane.b32.xlu0 %v1593, 96
      %v1657 = vpop.permute.xlu0 %1656
      %1658 = vrot.lane.b32.xlu0 %v1595, 96
      %v1659 = vpop.permute.xlu0 %1658
      %1660 = vrot.lane.b32.xlu0 %v1597, 96
      %v1661 = vpop.permute.xlu0 %1660
      %1662 = vrot.lane.b32.xlu0 %v1599, 96
      %v1663 = vpop.permute.xlu0 %1662
      %1664 = vrot.lane.b32.xlu0 %v1601, 96
      %v1665 = vpop.permute.xlu0 %1664
      %1666 = vrot.lane.b32.xlu0 %v1603, 96
      %v1667 = vpop.permute.xlu0 %1666
      %1668 = vrot.lane.b32.xlu0 %v1605, 96
      %v1669 = vpop.permute.xlu0 %1668
      %1670 = vrot.lane.b32.xlu0 %v1607, 96
      %v1671 = vpop.permute.xlu0 %1670
      %1672 = vrot.lane.b32.xlu0 %v1609, 96
      %v1673 = vpop.permute.xlu0 %1672
      %1674 = vrot.lane.b32.xlu0 %v1611, 96
      %v1675 = vpop.permute.xlu0 %1674
      %v1708 = vcombine.low %v1613, %v1645
      %v1709 = vcombine.high %v1613, %v1645
      %v1711 = vunpack.c.l.s4 1983009808
      %v1712 = vunpack.c.0.s8 %v1711
      %v1713 = vlaneseq
      %v1714 = vshrl.u32 %v1713, 7
      %v1715 = vsub.s32 %v1712, %v1714
      %v1716 = vrot.slane %v1708, %v1715
      %v1718 = vunpack.c.l.s4 1983009808
      %v1719 = vunpack.c.0.s8 %v1718
      %v1720 = vlaneseq
      %v1721 = vshrl.u32 %v1720, 7
      %v1722 = vsub.s32 %v1719, %v1721
      %v1723 = vrot.slane %v1709, %v1722
      %v1724 = vcombine.low %v1629, %v1661
      %v1725 = vcombine.high %v1629, %v1661
      %v1727 = vunpack.c.l.s4 1983009808
      %v1728 = vunpack.c.0.s8 %v1727
      %v1729 = vlaneseq
      %v1730 = vshrl.u32 %v1729, 7
      %v1731 = vsub.s32 %v1728, %v1730
      %v1732 = vrot.slane %v1724, %v1731
      %v1734 = vunpack.c.l.s4 1983009808
      %v1735 = vunpack.c.0.s8 %v1734
      %v1736 = vlaneseq
      %v1737 = vshrl.u32 %v1736, 7
      %v1738 = vsub.s32 %v1735, %v1737
      %v1739 = vrot.slane %v1725, %v1738
      %v1740 = vcombine.low %v1716, %v1732
      %v1741 = vcombine.high %v1716, %v1732
      %v1743 = vunpack.c.l.s4 1934713408
      %v1744 = vunpack.c.0.s8 %v1743
      %v1745 = vlaneseq
      %v1746 = vshrl.u32 %v1745, 7
      %v1747 = vsub.s32 %v1744, %v1746
      %v1748 = vrot.slane %v1740, %v1747
      %v1750 = vunpack.c.l.s4 1934713408
      %v1751 = vunpack.c.0.s8 %v1750
      %v1752 = vlaneseq
      %v1753 = vshrl.u32 %v1752, 7
      %v1754 = vsub.s32 %v1751, %v1753
      %v1755 = vrot.slane %v1741, %v1754
      %v1756 = vcombine.low %v1723, %v1739
      %v1757 = vcombine.high %v1723, %v1739
      %v1759 = vunpack.c.l.s4 1934713408
      %v1760 = vunpack.c.0.s8 %v1759
      %v1761 = vlaneseq
      %v1762 = vshrl.u32 %v1761, 7
      %v1763 = vsub.s32 %v1760, %v1762
      %v1764 = vrot.slane %v1756, %v1763
      %v1766 = vunpack.c.l.s4 1934713408
      %v1767 = vunpack.c.0.s8 %v1766
      %v1768 = vlaneseq
      %v1769 = vshrl.u32 %v1768, 7
      %v1770 = vsub.s32 %v1767, %v1769
      %v1771 = vrot.slane %v1757, %v1770
      %v1772 = vcombine.high %v1748, 0.0
      %v1773 = vcombine.high %v1755, 0.0
      %v1774 = vcombine.high %v1764, 0.0
      %v1775 = vcombine.high %v1771, 0.0
      %v1776 = vcombine.low %v1615, %v1647
      %v1777 = vcombine.high %v1615, %v1647
      %v1779 = vunpack.c.l.s4 1983009808
      %v1780 = vunpack.c.0.s8 %v1779
      %v1781 = vlaneseq
      %v1782 = vshrl.u32 %v1781, 7
      %v1783 = vsub.s32 %v1780, %v1782
      %v1784 = vrot.slane %v1776, %v1783
      %v1786 = vunpack.c.l.s4 1983009808
      %v1787 = vunpack.c.0.s8 %v1786
      %v1788 = vlaneseq
      %v1789 = vshrl.u32 %v1788, 7
      %v1790 = vsub.s32 %v1787, %v1789
      %v1791 = vrot.slane %v1777, %v1790
      %v1792 = vcombine.low %v1631, %v1663
      %v1793 = vcombine.high %v1631, %v1663
      %v1795 = vunpack.c.l.s4 1983009808
      %v1796 = vunpack.c.0.s8 %v1795
      %v1797 = vlaneseq
      %v1798 = vshrl.u32 %v1797, 7
      %v1799 = vsub.s32 %v1796, %v1798
      %v1800 = vrot.slane %v1792, %v1799
      %v1802 = vunpack.c.l.s4 1983009808
      %v1803 = vunpack.c.0.s8 %v1802
      %v1804 = vlaneseq
      %v1805 = vshrl.u32 %v1804, 7
      %v1806 = vsub.s32 %v1803, %v1805
      %v1807 = vrot.slane %v1793, %v1806
      %v1808 = vcombine.low %v1784, %v1800
      %v1809 = vcombine.high %v1784, %v1800
      %v1811 = vunpack.c.l.s4 1934713408
      %v1812 = vunpack.c.0.s8 %v1811
      %v1813 = vlaneseq
      %v1814 = vshrl.u32 %v1813, 7
      %v1815 = vsub.s32 %v1812, %v1814
      %v1816 = vrot.slane %v1808, %v1815
      %v1818 = vunpack.c.l.s4 1934713408
      %v1819 = vunpack.c.0.s8 %v1818
      %v1820 = vlaneseq
      %v1821 = vshrl.u32 %v1820, 7
      %v1822 = vsub.s32 %v1819, %v1821
      %v1823 = vrot.slane %v1809, %v1822
      %v1824 = vcombine.low %v1791, %v1807
      %v1825 = vcombine.high %v1791, %v1807
      %v1827 = vunpack.c.l.s4 1934713408
      %v1828 = vunpack.c.0.s8 %v1827
      %v1829 = vlaneseq
      %v1830 = vshrl.u32 %v1829, 7
      %v1831 = vsub.s32 %v1828, %v1830
      %v1832 = vrot.slane %v1824, %v1831
      %v1834 = vunpack.c.l.s4 1934713408
      %v1835 = vunpack.c.0.s8 %v1834
      %v1836 = vlaneseq
      %v1837 = vshrl.u32 %v1836, 7
      %v1838 = vsub.s32 %v1835, %v1837
      %v1839 = vrot.slane %v1825, %v1838
      %v1840 = vcombine.high %v1816, 0.0
      %v1841 = vcombine.high %v1823, 0.0
      %v1842 = vcombine.high %v1832, 0.0
      %v1843 = vcombine.high %v1839, 0.0
      %v1844 = vcombine.low %v1617, %v1649
      %v1845 = vcombine.high %v1617, %v1649
      %v1847 = vunpack.c.l.s4 1983009808
      %v1848 = vunpack.c.0.s8 %v1847
      %v1849 = vlaneseq
      %v1850 = vshrl.u32 %v1849, 7
      %v1851 = vsub.s32 %v1848, %v1850
      %v1852 = vrot.slane %v1844, %v1851
      %v1854 = vunpack.c.l.s4 1983009808
      %v1855 = vunpack.c.0.s8 %v1854
      %v1856 = vlaneseq
      %v1857 = vshrl.u32 %v1856, 7
      %v1858 = vsub.s32 %v1855, %v1857
      %v1859 = vrot.slane %v1845, %v1858
      %v1860 = vcombine.low %v1633, %v1665
      %v1861 = vcombine.high %v1633, %v1665
      %v1863 = vunpack.c.l.s4 1983009808
      %v1864 = vunpack.c.0.s8 %v1863
      %v1865 = vlaneseq
      %v1866 = vshrl.u32 %v1865, 7
      %v1867 = vsub.s32 %v1864, %v1866
      %v1868 = vrot.slane %v1860, %v1867
      %v1870 = vunpack.c.l.s4 1983009808
      %v1871 = vunpack.c.0.s8 %v1870
      %v1872 = vlaneseq
      %v1873 = vshrl.u32 %v1872, 7
      %v1874 = vsub.s32 %v1871, %v1873
      %v1875 = vrot.slane %v1861, %v1874
      %v1876 = vcombine.low %v1852, %v1868
      %v1877 = vcombine.high %v1852, %v1868
      %v1879 = vunpack.c.l.s4 1934713408
      %v1880 = vunpack.c.0.s8 %v1879
      %v1881 = vlaneseq
      %v1882 = vshrl.u32 %v1881, 7
      %v1883 = vsub.s32 %v1880, %v1882
      %v1884 = vrot.slane %v1876, %v1883
      %v1886 = vunpack.c.l.s4 1934713408
      %v1887 = vunpack.c.0.s8 %v1886
      %v1888 = vlaneseq
      %v1889 = vshrl.u32 %v1888, 7
      %v1890 = vsub.s32 %v1887, %v1889
      %v1891 = vrot.slane %v1877, %v1890
      %v1892 = vcombine.low %v1859, %v1875
      %v1893 = vcombine.high %v1859, %v1875
      %v1895 = vunpack.c.l.s4 1934713408
      %v1896 = vunpack.c.0.s8 %v1895
      %v1897 = vlaneseq
      %v1898 = vshrl.u32 %v1897, 7
      %v1899 = vsub.s32 %v1896, %v1898
      %v1900 = vrot.slane %v1892, %v1899
      %v1902 = vunpack.c.l.s4 1934713408
      %v1903 = vunpack.c.0.s8 %v1902
      %v1904 = vlaneseq
      %v1905 = vshrl.u32 %v1904, 7
      %v1906 = vsub.s32 %v1903, %v1905
      %v1907 = vrot.slane %v1893, %v1906
      %v1908 = vcombine.high %v1884, 0.0
      %v1909 = vcombine.high %v1891, 0.0
      %v1910 = vcombine.high %v1900, 0.0
      %v1911 = vcombine.high %v1907, 0.0
      %v1912 = vcombine.low %v1619, %v1651
      %v1913 = vcombine.high %v1619, %v1651
      %v1915 = vunpack.c.l.s4 1983009808
      %v1916 = vunpack.c.0.s8 %v1915
      %v1917 = vlaneseq
      %v1918 = vshrl.u32 %v1917, 7
      %v1919 = vsub.s32 %v1916, %v1918
      %v1920 = vrot.slane %v1912, %v1919
      %v1922 = vunpack.c.l.s4 1983009808
      %v1923 = vunpack.c.0.s8 %v1922
      %v1924 = vlaneseq
      %v1925 = vshrl.u32 %v1924, 7
      %v1926 = vsub.s32 %v1923, %v1925
      %v1927 = vrot.slane %v1913, %v1926
      %v1928 = vcombine.low %v1635, %v1667
      %v1929 = vcombine.high %v1635, %v1667
      %v1931 = vunpack.c.l.s4 1983009808
      %v1932 = vunpack.c.0.s8 %v1931
      %v1933 = vlaneseq
      %v1934 = vshrl.u32 %v1933, 7
      %v1935 = vsub.s32 %v1932, %v1934
      %v1936 = vrot.slane %v1928, %v1935
      %v1938 = vunpack.c.l.s4 1983009808
      %v1939 = vunpack.c.0.s8 %v1938
      %v1940 = vlaneseq
      %v1941 = vshrl.u32 %v1940, 7
      %v1942 = vsub.s32 %v1939, %v1941
      %v1943 = vrot.slane %v1929, %v1942
      %v1944 = vcombine.low %v1920, %v1936
      %v1945 = vcombine.high %v1920, %v1936
      %v1947 = vunpack.c.l.s4 1934713408
      %v1948 = vunpack.c.0.s8 %v1947
      %v1949 = vlaneseq
      %v1950 = vshrl.u32 %v1949, 7
      %v1951 = vsub.s32 %v1948, %v1950
      %v1952 = vrot.slane %v1944, %v1951
      %v1954 = vunpack.c.l.s4 1934713408
      %v1955 = vunpack.c.0.s8 %v1954
      %v1956 = vlaneseq
      %v1957 = vshrl.u32 %v1956, 7
      %v1958 = vsub.s32 %v1955, %v1957
      %v1959 = vrot.slane %v1945, %v1958
      %v1960 = vcombine.low %v1927, %v1943
      %v1961 = vcombine.high %v1927, %v1943
      %v1963 = vunpack.c.l.s4 1934713408
      %v1964 = vunpack.c.0.s8 %v1963
      %v1965 = vlaneseq
      %v1966 = vshrl.u32 %v1965, 7
      %v1967 = vsub.s32 %v1964, %v1966
      %v1968 = vrot.slane %v1960, %v1967
      %v1970 = vunpack.c.l.s4 1934713408
      %v1971 = vunpack.c.0.s8 %v1970
      %v1972 = vlaneseq
      %v1973 = vshrl.u32 %v1972, 7
      %v1974 = vsub.s32 %v1971, %v1973
      %v1975 = vrot.slane %v1961, %v1974
      %v1976 = vcombine.high %v1952, 0.0
      %v1977 = vcombine.high %v1959, 0.0
      %v1978 = vcombine.high %v1968, 0.0
      %v1979 = vcombine.high %v1975, 0.0
      %v1980 = vcombine.low %v1621, %v1653
      %v1981 = vcombine.high %v1621, %v1653
      %v1983 = vunpack.c.l.s4 1983009808
      %v1984 = vunpack.c.0.s8 %v1983
      %v1985 = vlaneseq
      %v1986 = vshrl.u32 %v1985, 7
      %v1987 = vsub.s32 %v1984, %v1986
      %v1988 = vrot.slane %v1980, %v1987
      %v1990 = vunpack.c.l.s4 1983009808
      %v1991 = vunpack.c.0.s8 %v1990
      %v1992 = vlaneseq
      %v1993 = vshrl.u32 %v1992, 7
      %v1994 = vsub.s32 %v1991, %v1993
      %v1995 = vrot.slane %v1981, %v1994
      %v1996 = vcombine.low %v1637, %v1669
      %v1997 = vcombine.high %v1637, %v1669
      %v1999 = vunpack.c.l.s4 1983009808
      %v2000 = vunpack.c.0.s8 %v1999
      %v2001 = vlaneseq
      %v2002 = vshrl.u32 %v2001, 7
      %v2003 = vsub.s32 %v2000, %v2002
      %v2004 = vrot.slane %v1996, %v2003
      %v2006 = vunpack.c.l.s4 1983009808
      %v2007 = vunpack.c.0.s8 %v2006
      %v2008 = vlaneseq
      %v2009 = vshrl.u32 %v2008, 7
      %v2010 = vsub.s32 %v2007, %v2009
      %v2011 = vrot.slane %v1997, %v2010
      %v2012 = vcombine.low %v1988, %v2004
      %v2013 = vcombine.high %v1988, %v2004
      %v2015 = vunpack.c.l.s4 1934713408
      %v2016 = vunpack.c.0.s8 %v2015
      %v2017 = vlaneseq
      %v2018 = vshrl.u32 %v2017, 7
      %v2019 = vsub.s32 %v2016, %v2018
      %v2020 = vrot.slane %v2012, %v2019
      %v2022 = vunpack.c.l.s4 1934713408
      %v2023 = vunpack.c.0.s8 %v2022
      %v2024 = vlaneseq
      %v2025 = vshrl.u32 %v2024, 7
      %v2026 = vsub.s32 %v2023, %v2025
      %v2027 = vrot.slane %v2013, %v2026
      %v2028 = vcombine.low %v1995, %v2011
      %v2029 = vcombine.high %v1995, %v2011
      %v2031 = vunpack.c.l.s4 1934713408
      %v2032 = vunpack.c.0.s8 %v2031
      %v2033 = vlaneseq
      %v2034 = vshrl.u32 %v2033, 7
      %v2035 = vsub.s32 %v2032, %v2034
      %v2036 = vrot.slane %v2028, %v2035
      %v2038 = vunpack.c.l.s4 1934713408
      %v2039 = vunpack.c.0.s8 %v2038
      %v2040 = vlaneseq
      %v2041 = vshrl.u32 %v2040, 7
      %v2042 = vsub.s32 %v2039, %v2041
      %v2043 = vrot.slane %v2029, %v2042
      %v2044 = vcombine.high %v2020, 0.0
      %v2045 = vcombine.high %v2027, 0.0
      %v2046 = vcombine.high %v2036, 0.0
      %v2047 = vcombine.high %v2043, 0.0
      %v2048 = vcombine.low %v1623, %v1655
      %v2049 = vcombine.high %v1623, %v1655
      %v2051 = vunpack.c.l.s4 1983009808
      %v2052 = vunpack.c.0.s8 %v2051
      %v2053 = vlaneseq
      %v2054 = vshrl.u32 %v2053, 7
      %v2055 = vsub.s32 %v2052, %v2054
      %v2056 = vrot.slane %v2048, %v2055
      %v2058 = vunpack.c.l.s4 1983009808
      %v2059 = vunpack.c.0.s8 %v2058
      %v2060 = vlaneseq
      %v2061 = vshrl.u32 %v2060, 7
      %v2062 = vsub.s32 %v2059, %v2061
      %v2063 = vrot.slane %v2049, %v2062
      %v2064 = vcombine.low %v1639, %v1671
      %v2065 = vcombine.high %v1639, %v1671
      %v2067 = vunpack.c.l.s4 1983009808
      %v2068 = vunpack.c.0.s8 %v2067
      %v2069 = vlaneseq
      %v2070 = vshrl.u32 %v2069, 7
      %v2071 = vsub.s32 %v2068, %v2070
      %v2072 = vrot.slane %v2064, %v2071
      %v2074 = vunpack.c.l.s4 1983009808
      %v2075 = vunpack.c.0.s8 %v2074
      %v2076 = vlaneseq
      %v2077 = vshrl.u32 %v2076, 7
      %v2078 = vsub.s32 %v2075, %v2077
      %v2079 = vrot.slane %v2065, %v2078
      %v2080 = vcombine.low %v2056, %v2072
      %v2081 = vcombine.high %v2056, %v2072
      %v2083 = vunpack.c.l.s4 1934713408
      %v2084 = vunpack.c.0.s8 %v2083
      %v2085 = vlaneseq
      %v2086 = vshrl.u32 %v2085, 7
      %v2087 = vsub.s32 %v2084, %v2086
      %v2088 = vrot.slane %v2080, %v2087
      %v2090 = vunpack.c.l.s4 1934713408
      %v2091 = vunpack.c.0.s8 %v2090
      %v2092 = vlaneseq
      %v2093 = vshrl.u32 %v2092, 7
      %v2094 = vsub.s32 %v2091, %v2093
      %v2095 = vrot.slane %v2081, %v2094
      %v2096 = vcombine.low %v2063, %v2079
      %v2097 = vcombine.high %v2063, %v2079
      %v2099 = vunpack.c.l.s4 1934713408
      %v2100 = vunpack.c.0.s8 %v2099
      %v2101 = vlaneseq
      %v2102 = vshrl.u32 %v2101, 7
      %v2103 = vsub.s32 %v2100, %v2102
      %v2104 = vrot.slane %v2096, %v2103
      %v2106 = vunpack.c.l.s4 1934713408
      %v2107 = vunpack.c.0.s8 %v2106
      %v2108 = vlaneseq
      %v2109 = vshrl.u32 %v2108, 7
      %v2110 = vsub.s32 %v2107, %v2109
      %v2111 = vrot.slane %v2097, %v2110
      %v2112 = vcombine.high %v2088, 0.0
      %v2113 = vcombine.high %v2095, 0.0
      %v2114 = vcombine.high %v2104, 0.0
      %v2115 = vcombine.high %v2111, 0.0
      %v2116 = vcombine.low %v1625, %v1657
      %v2117 = vcombine.high %v1625, %v1657
      %v2119 = vunpack.c.l.s4 1983009808
      %v2120 = vunpack.c.0.s8 %v2119
      %v2121 = vlaneseq
      %v2122 = vshrl.u32 %v2121, 7
      %v2123 = vsub.s32 %v2120, %v2122
      %v2124 = vrot.slane %v2116, %v2123
      %v2126 = vunpack.c.l.s4 1983009808
      %v2127 = vunpack.c.0.s8 %v2126
      %v2128 = vlaneseq
      %v2129 = vshrl.u32 %v2128, 7
      %v2130 = vsub.s32 %v2127, %v2129
      %v2131 = vrot.slane %v2117, %v2130
      %v2132 = vcombine.low %v1641, %v1673
      %v2133 = vcombine.high %v1641, %v1673
      %v2135 = vunpack.c.l.s4 1983009808
      %v2136 = vunpack.c.0.s8 %v2135
      %v2137 = vlaneseq
      %v2138 = vshrl.u32 %v2137, 7
      %v2139 = vsub.s32 %v2136, %v2138
      %v2140 = vrot.slane %v2132, %v2139
      %v2142 = vunpack.c.l.s4 1983009808
      %v2143 = vunpack.c.0.s8 %v2142
      %v2144 = vlaneseq
      %v2145 = vshrl.u32 %v2144, 7
      %v2146 = vsub.s32 %v2143, %v2145
      %v2147 = vrot.slane %v2133, %v2146
      %v2148 = vcombine.low %v2124, %v2140
      %v2149 = vcombine.high %v2124, %v2140
      %v2151 = vunpack.c.l.s4 1934713408
      %v2152 = vunpack.c.0.s8 %v2151
      %v2153 = vlaneseq
      %v2154 = vshrl.u32 %v2153, 7
      %v2155 = vsub.s32 %v2152, %v2154
      %v2156 = vrot.slane %v2148, %v2155
      %v2158 = vunpack.c.l.s4 1934713408
      %v2159 = vunpack.c.0.s8 %v2158
      %v2160 = vlaneseq
      %v2161 = vshrl.u32 %v2160, 7
      %v2162 = vsub.s32 %v2159, %v2161
      %v2163 = vrot.slane %v2149, %v2162
      %v2164 = vcombine.low %v2131, %v2147
      %v2165 = vcombine.high %v2131, %v2147
      %v2167 = vunpack.c.l.s4 1934713408
      %v2168 = vunpack.c.0.s8 %v2167
      %v2169 = vlaneseq
      %v2170 = vshrl.u32 %v2169, 7
      %v2171 = vsub.s32 %v2168, %v2170
      %v2172 = vrot.slane %v2164, %v2171
      %v2174 = vunpack.c.l.s4 1934713408
      %v2175 = vunpack.c.0.s8 %v2174
      %v2176 = vlaneseq
      %v2177 = vshrl.u32 %v2176, 7
      %v2178 = vsub.s32 %v2175, %v2177
      %v2179 = vrot.slane %v2165, %v2178
      %v2180 = vcombine.high %v2156, 0.0
      %v2181 = vcombine.high %v2163, 0.0
      %v2182 = vcombine.high %v2172, 0.0
      %v2183 = vcombine.high %v2179, 0.0
      %v2184 = vcombine.low %v1627, %v1659
      %v2185 = vcombine.high %v1627, %v1659
      %v2187 = vunpack.c.l.s4 1983009808
      %v2188 = vunpack.c.0.s8 %v2187
      %v2189 = vlaneseq
      %v2190 = vshrl.u32 %v2189, 7
      %v2191 = vsub.s32 %v2188, %v2190
      %v2192 = vrot.slane %v2184, %v2191
      %v2194 = vunpack.c.l.s4 1983009808
      %v2195 = vunpack.c.0.s8 %v2194
      %v2196 = vlaneseq
      %v2197 = vshrl.u32 %v2196, 7
      %v2198 = vsub.s32 %v2195, %v2197
      %v2199 = vrot.slane %v2185, %v2198
      %v2200 = vcombine.low %v1643, %v1675
      %v2201 = vcombine.high %v1643, %v1675
      %v2203 = vunpack.c.l.s4 1983009808
      %v2204 = vunpack.c.0.s8 %v2203
      %v2205 = vlaneseq
      %v2206 = vshrl.u32 %v2205, 7
      %v2207 = vsub.s32 %v2204, %v2206
      %v2208 = vrot.slane %v2200, %v2207
      %v2210 = vunpack.c.l.s4 1983009808
      %v2211 = vunpack.c.0.s8 %v2210
      %v2212 = vlaneseq
      %v2213 = vshrl.u32 %v2212, 7
      %v2214 = vsub.s32 %v2211, %v2213
      %v2215 = vrot.slane %v2201, %v2214
      %v2216 = vcombine.low %v2192, %v2208
      %v2217 = vcombine.high %v2192, %v2208
      %v2219 = vunpack.c.l.s4 1934713408
      %v2220 = vunpack.c.0.s8 %v2219
      %v2221 = vlaneseq
      %v2222 = vshrl.u32 %v2221, 7
      %v2223 = vsub.s32 %v2220, %v2222
      %v2224 = vrot.slane %v2216, %v2223
      %v2226 = vunpack.c.l.s4 1934713408
      %v2227 = vunpack.c.0.s8 %v2226
      %v2228 = vlaneseq
      %v2229 = vshrl.u32 %v2228, 7
      %v2230 = vsub.s32 %v2227, %v2229
      %v2231 = vrot.slane %v2217, %v2230
      %v2232 = vcombine.low %v2199, %v2215
      %v2233 = vcombine.high %v2199, %v2215
      %v2235 = vunpack.c.l.s4 1934713408
      %v2236 = vunpack.c.0.s8 %v2235
      %v2237 = vlaneseq
      %v2238 = vshrl.u32 %v2237, 7
      %v2239 = vsub.s32 %v2236, %v2238
      %v2240 = vrot.slane %v2232, %v2239
      %v2242 = vunpack.c.l.s4 1934713408
      %v2243 = vunpack.c.0.s8 %v2242
      %v2244 = vlaneseq
      %v2245 = vshrl.u32 %v2244, 7
      %v2246 = vsub.s32 %v2243, %v2245
      %v2247 = vrot.slane %v2233, %v2246
      %v2248 = vcombine.high %v2224, 0.0
      %v2249 = vcombine.high %v2231, 0.0
      %v2250 = vcombine.high %v2240, 0.0
      %v2251 = vcombine.high %v2247, 0.0
      %v2252 = vcombine.low %v1748, %v1755
      %v2254 = vunpack.c.l.s4 1983009808
      %v2255 = vunpack.c.0.s8 %v2254
      %v2256 = vlaneseq
      %v2257 = vshrl.u32 %v2256, 7
      %v2258 = vsub.s32 %v2255, %v2257
      %v2259 = vrot.slane %v2252, %v2258
      %v2260 = vcombine.low %v1772, %v1773
      %v2262 = vunpack.c.l.s4 1983009808
      %v2263 = vunpack.c.0.s8 %v2262
      %v2264 = vlaneseq
      %v2265 = vshrl.u32 %v2264, 7
      %v2266 = vsub.s32 %v2263, %v2265
      %v2267 = vrot.slane %v2260, %v2266
      %v2268 = vcombine.low %v1764, %v1771
      %v2270 = vunpack.c.l.s4 1983009808
      %v2271 = vunpack.c.0.s8 %v2270
      %v2272 = vlaneseq
      %v2273 = vshrl.u32 %v2272, 7
      %v2274 = vsub.s32 %v2271, %v2273
      %v2275 = vrot.slane %v2268, %v2274
      %v2276 = vcombine.low %v1774, %v1775
      %v2278 = vunpack.c.l.s4 1983009808
      %v2279 = vunpack.c.0.s8 %v2278
      %v2280 = vlaneseq
      %v2281 = vshrl.u32 %v2280, 7
      %v2282 = vsub.s32 %v2279, %v2281
      %v2283 = vrot.slane %v2276, %v2282
      %v2284 = vcombine.low %v2259, %v2267
      %v2285 = vcombine.high %v2259, %v2267
      %v2287 = vunpack.c.l.s4 1934713408
      %v2288 = vunpack.c.0.s8 %v2287
      %v2289 = vlaneseq
      %v2290 = vshrl.u32 %v2289, 7
      %v2291 = vsub.s32 %v2288, %v2290
      %v2292 = vrot.slane %v2284, %v2291
      %v2294 = vunpack.c.l.s4 1934713408
      %v2295 = vunpack.c.0.s8 %v2294
      %v2296 = vlaneseq
      %v2297 = vshrl.u32 %v2296, 7
      %v2298 = vsub.s32 %v2295, %v2297
      %v2299 = vrot.slane %v2285, %v2298
      %v2300 = vcombine.low %v2275, %v2283
      %v2301 = vcombine.high %v2275, %v2283
      %v2303 = vunpack.c.l.s4 1934713408
      %v2304 = vunpack.c.0.s8 %v2303
      %v2305 = vlaneseq
      %v2306 = vshrl.u32 %v2305, 7
      %v2307 = vsub.s32 %v2304, %v2306
      %v2308 = vrot.slane %v2300, %v2307
      %v2310 = vunpack.c.l.s4 1934713408
      %v2311 = vunpack.c.0.s8 %v2310
      %v2312 = vlaneseq
      %v2313 = vshrl.u32 %v2312, 7
      %v2314 = vsub.s32 %v2311, %v2313
      %v2315 = vrot.slane %v2301, %v2314
      %v2316 = vcombine.low %v2292, %v2308
      %v2317 = vcombine.high %v2292, %v2308
      %v2318 = vcombine.low %v2299, %v2315
      %v2319 = vcombine.high %v2299, %v2315
      %v2320 = vcombine.low %v1816, %v1823
      %v2322 = vunpack.c.l.s4 1983009808
      %v2323 = vunpack.c.0.s8 %v2322
      %v2324 = vlaneseq
      %v2325 = vshrl.u32 %v2324, 7
      %v2326 = vsub.s32 %v2323, %v2325
      %v2327 = vrot.slane %v2320, %v2326
      %v2328 = vcombine.low %v1840, %v1841
      %v2330 = vunpack.c.l.s4 1983009808
      %v2331 = vunpack.c.0.s8 %v2330
      %v2332 = vlaneseq
      %v2333 = vshrl.u32 %v2332, 7
      %v2334 = vsub.s32 %v2331, %v2333
      %v2335 = vrot.slane %v2328, %v2334
      %v2336 = vcombine.low %v1832, %v1839
      %v2338 = vunpack.c.l.s4 1983009808
      %v2339 = vunpack.c.0.s8 %v2338
      %v2340 = vlaneseq
      %v2341 = vshrl.u32 %v2340, 7
      %v2342 = vsub.s32 %v2339, %v2341
      %v2343 = vrot.slane %v2336, %v2342
      %v2344 = vcombine.low %v1842, %v1843
      %v2346 = vunpack.c.l.s4 1983009808
      %v2347 = vunpack.c.0.s8 %v2346
      %v2348 = vlaneseq
      %v2349 = vshrl.u32 %v2348, 7
      %v2350 = vsub.s32 %v2347, %v2349
      %v2351 = vrot.slane %v2344, %v2350
      %v2352 = vcombine.low %v2327, %v2335
      %v2353 = vcombine.high %v2327, %v2335
      %v2355 = vunpack.c.l.s4 1934713408
      %v2356 = vunpack.c.0.s8 %v2355
      %v2357 = vlaneseq
      %v2358 = vshrl.u32 %v2357, 7
      %v2359 = vsub.s32 %v2356, %v2358
      %v2360 = vrot.slane %v2352, %v2359
      %v2362 = vunpack.c.l.s4 1934713408
      %v2363 = vunpack.c.0.s8 %v2362
      %v2364 = vlaneseq
      %v2365 = vshrl.u32 %v2364, 7
      %v2366 = vsub.s32 %v2363, %v2365
      %v2367 = vrot.slane %v2353, %v2366
      %v2368 = vcombine.low %v2343, %v2351
      %v2369 = vcombine.high %v2343, %v2351
      %v2371 = vunpack.c.l.s4 1934713408
      %v2372 = vunpack.c.0.s8 %v2371
      %v2373 = vlaneseq
      %v2374 = vshrl.u32 %v2373, 7
      %v2375 = vsub.s32 %v2372, %v2374
      %v2376 = vrot.slane %v2368, %v2375
      %v2378 = vunpack.c.l.s4 1934713408
      %v2379 = vunpack.c.0.s8 %v2378
      %v2380 = vlaneseq
      %v2381 = vshrl.u32 %v2380, 7
      %v2382 = vsub.s32 %v2379, %v2381
      %v2383 = vrot.slane %v2369, %v2382
      %v2384 = vcombine.low %v2360, %v2376
      %v2385 = vcombine.high %v2360, %v2376
      %v2386 = vcombine.low %v2367, %v2383
      %v2387 = vcombine.high %v2367, %v2383
      %v2388 = vcombine.low %v1884, %v1891
      %v2390 = vunpack.c.l.s4 1983009808
      %v2391 = vunpack.c.0.s8 %v2390
      %v2392 = vlaneseq
      %v2393 = vshrl.u32 %v2392, 7
      %v2394 = vsub.s32 %v2391, %v2393
      %v2395 = vrot.slane %v2388, %v2394
      %v2396 = vcombine.low %v1908, %v1909
      %v2398 = vunpack.c.l.s4 1983009808
      %v2399 = vunpack.c.0.s8 %v2398
      %v2400 = vlaneseq
      %v2401 = vshrl.u32 %v2400, 7
      %v2402 = vsub.s32 %v2399, %v2401
      %v2403 = vrot.slane %v2396, %v2402
      %v2404 = vcombine.low %v1900, %v1907
      %v2406 = vunpack.c.l.s4 1983009808
      %v2407 = vunpack.c.0.s8 %v2406
      %v2408 = vlaneseq
      %v2409 = vshrl.u32 %v2408, 7
      %v2410 = vsub.s32 %v2407, %v2409
      %v2411 = vrot.slane %v2404, %v2410
      %v2412 = vcombine.low %v1910, %v1911
      %v2414 = vunpack.c.l.s4 1983009808
      %v2415 = vunpack.c.0.s8 %v2414
      %v2416 = vlaneseq
      %v2417 = vshrl.u32 %v2416, 7
      %v2418 = vsub.s32 %v2415, %v2417
      %v2419 = vrot.slane %v2412, %v2418
      %v2420 = vcombine.low %v2395, %v2403
      %v2421 = vcombine.high %v2395, %v2403
      %v2423 = vunpack.c.l.s4 1934713408
      %v2424 = vunpack.c.0.s8 %v2423
      %v2425 = vlaneseq
      %v2426 = vshrl.u32 %v2425, 7
      %v2427 = vsub.s32 %v2424, %v2426
      %v2428 = vrot.slane %v2420, %v2427
      %v2430 = vunpack.c.l.s4 1934713408
      %v2431 = vunpack.c.0.s8 %v2430
      %v2432 = vlaneseq
      %v2433 = vshrl.u32 %v2432, 7
      %v2434 = vsub.s32 %v2431, %v2433
      %v2435 = vrot.slane %v2421, %v2434
      %v2436 = vcombine.low %v2411, %v2419
      %v2437 = vcombine.high %v2411, %v2419
      %v2439 = vunpack.c.l.s4 1934713408
      %v2440 = vunpack.c.0.s8 %v2439
      %v2441 = vlaneseq
      %v2442 = vshrl.u32 %v2441, 7
      %v2443 = vsub.s32 %v2440, %v2442
      %v2444 = vrot.slane %v2436, %v2443
      %v2446 = vunpack.c.l.s4 1934713408
      %v2447 = vunpack.c.0.s8 %v2446
      %v2448 = vlaneseq
      %v2449 = vshrl.u32 %v2448, 7
      %v2450 = vsub.s32 %v2447, %v2449
      %v2451 = vrot.slane %v2437, %v2450
      %v2452 = vcombine.low %v2428, %v2444
      %v2453 = vcombine.high %v2428, %v2444
      %v2454 = vcombine.low %v2435, %v2451
      %v2455 = vcombine.high %v2435, %v2451
      %v2456 = vcombine.low %v1952, %v1959
      %v2458 = vunpack.c.l.s4 1983009808
      %v2459 = vunpack.c.0.s8 %v2458
      %v2460 = vlaneseq
      %v2461 = vshrl.u32 %v2460, 7
      %v2462 = vsub.s32 %v2459, %v2461
      %v2463 = vrot.slane %v2456, %v2462
      %v2464 = vcombine.low %v1976, %v1977
      %v2466 = vunpack.c.l.s4 1983009808
      %v2467 = vunpack.c.0.s8 %v2466
      %v2468 = vlaneseq
      %v2469 = vshrl.u32 %v2468, 7
      %v2470 = vsub.s32 %v2467, %v2469
      %v2471 = vrot.slane %v2464, %v2470
      %v2472 = vcombine.low %v1968, %v1975
      %v2474 = vunpack.c.l.s4 1983009808
      %v2475 = vunpack.c.0.s8 %v2474
      %v2476 = vlaneseq
      %v2477 = vshrl.u32 %v2476, 7
      %v2478 = vsub.s32 %v2475, %v2477
      %v2479 = vrot.slane %v2472, %v2478
      %v2480 = vcombine.low %v1978, %v1979
      %v2482 = vunpack.c.l.s4 1983009808
      %v2483 = vunpack.c.0.s8 %v2482
      %v2484 = vlaneseq
      %v2485 = vshrl.u32 %v2484, 7
      %v2486 = vsub.s32 %v2483, %v2485
      %v2487 = vrot.slane %v2480, %v2486
      %v2488 = vcombine.low %v2463, %v2471
      %v2489 = vcombine.high %v2463, %v2471
      %v2491 = vunpack.c.l.s4 1934713408
      %v2492 = vunpack.c.0.s8 %v2491
      %v2493 = vlaneseq
      %v2494 = vshrl.u32 %v2493, 7
      %v2495 = vsub.s32 %v2492, %v2494
      %v2496 = vrot.slane %v2488, %v2495
      %v2498 = vunpack.c.l.s4 1934713408
      %v2499 = vunpack.c.0.s8 %v2498
      %v2500 = vlaneseq
      %v2501 = vshrl.u32 %v2500, 7
      %v2502 = vsub.s32 %v2499, %v2501
      %v2503 = vrot.slane %v2489, %v2502
      %v2504 = vcombine.low %v2479, %v2487
      %v2505 = vcombine.high %v2479, %v2487
      %v2507 = vunpack.c.l.s4 1934713408
      %v2508 = vunpack.c.0.s8 %v2507
      %v2509 = vlaneseq
      %v2510 = vshrl.u32 %v2509, 7
      %v2511 = vsub.s32 %v2508, %v2510
      %v2512 = vrot.slane %v2504, %v2511
      %v2514 = vunpack.c.l.s4 1934713408
      %v2515 = vunpack.c.0.s8 %v2514
      %v2516 = vlaneseq
      %v2517 = vshrl.u32 %v2516, 7
      %v2518 = vsub.s32 %v2515, %v2517
      %v2519 = vrot.slane %v2505, %v2518
      %v2520 = vcombine.low %v2496, %v2512
      %v2521 = vcombine.high %v2496, %v2512
      %v2522 = vcombine.low %v2503, %v2519
      %v2523 = vcombine.high %v2503, %v2519
      %v2524 = vcombine.low %v2020, %v2027
      %v2526 = vunpack.c.l.s4 1983009808
      %v2527 = vunpack.c.0.s8 %v2526
      %v2528 = vlaneseq
      %v2529 = vshrl.u32 %v2528, 7
      %v2530 = vsub.s32 %v2527, %v2529
      %v2531 = vrot.slane %v2524, %v2530
      %v2532 = vcombine.low %v2044, %v2045
      %v2534 = vunpack.c.l.s4 1983009808
      %v2535 = vunpack.c.0.s8 %v2534
      %v2536 = vlaneseq
      %v2537 = vshrl.u32 %v2536, 7
      %v2538 = vsub.s32 %v2535, %v2537
      %v2539 = vrot.slane %v2532, %v2538
      %v2540 = vcombine.low %v2036, %v2043
      %v2542 = vunpack.c.l.s4 1983009808
      %v2543 = vunpack.c.0.s8 %v2542
      %v2544 = vlaneseq
      %v2545 = vshrl.u32 %v2544, 7
      %v2546 = vsub.s32 %v2543, %v2545
      %v2547 = vrot.slane %v2540, %v2546
      %v2548 = vcombine.low %v2046, %v2047
      %v2550 = vunpack.c.l.s4 1983009808
      %v2551 = vunpack.c.0.s8 %v2550
      %v2552 = vlaneseq
      %v2553 = vshrl.u32 %v2552, 7
      %v2554 = vsub.s32 %v2551, %v2553
      %v2555 = vrot.slane %v2548, %v2554
      %v2556 = vcombine.low %v2531, %v2539
      %v2557 = vcombine.high %v2531, %v2539
      %v2559 = vunpack.c.l.s4 1934713408
      %v2560 = vunpack.c.0.s8 %v2559
      %v2561 = vlaneseq
      %v2562 = vshrl.u32 %v2561, 7
      %v2563 = vsub.s32 %v2560, %v2562
      %v2564 = vrot.slane %v2556, %v2563
      %v2566 = vunpack.c.l.s4 1934713408
      %v2567 = vunpack.c.0.s8 %v2566
      %v2568 = vlaneseq
      %v2569 = vshrl.u32 %v2568, 7
      %v2570 = vsub.s32 %v2567, %v2569
      %v2571 = vrot.slane %v2557, %v2570
      %v2572 = vcombine.low %v2547, %v2555
      %v2573 = vcombine.high %v2547, %v2555
      %v2575 = vunpack.c.l.s4 1934713408
      %v2576 = vunpack.c.0.s8 %v2575
      %v2577 = vlaneseq
      %v2578 = vshrl.u32 %v2577, 7
      %v2579 = vsub.s32 %v2576, %v2578
      %v2580 = vrot.slane %v2572, %v2579
      %v2582 = vunpack.c.l.s4 1934713408
      %v2583 = vunpack.c.0.s8 %v2582
      %v2584 = vlaneseq
      %v2585 = vshrl.u32 %v2584, 7
      %v2586 = vsub.s32 %v2583, %v2585
      %v2587 = vrot.slane %v2573, %v2586
      %v2588 = vcombine.low %v2564, %v2580
      %v2589 = vcombine.high %v2564, %v2580
      %v2590 = vcombine.low %v2571, %v2587
      %v2591 = vcombine.high %v2571, %v2587
      %v2592 = vcombine.low %v2088, %v2095
      %v2594 = vunpack.c.l.s4 1983009808
      %v2595 = vunpack.c.0.s8 %v2594
      %v2596 = vlaneseq
      %v2597 = vshrl.u32 %v2596, 7
      %v2598 = vsub.s32 %v2595, %v2597
      %v2599 = vrot.slane %v2592, %v2598
      %v2600 = vcombine.low %v2112, %v2113
      %v2602 = vunpack.c.l.s4 1983009808
      %v2603 = vunpack.c.0.s8 %v2602
      %v2604 = vlaneseq
      %v2605 = vshrl.u32 %v2604, 7
      %v2606 = vsub.s32 %v2603, %v2605
      %v2607 = vrot.slane %v2600, %v2606
      %v2608 = vcombine.low %v2104, %v2111
      %v2610 = vunpack.c.l.s4 1983009808
      %v2611 = vunpack.c.0.s8 %v2610
      %v2612 = vlaneseq
      %v2613 = vshrl.u32 %v2612, 7
      %v2614 = vsub.s32 %v2611, %v2613
      %v2615 = vrot.slane %v2608, %v2614
      %v2616 = vcombine.low %v2114, %v2115
      %v2618 = vunpack.c.l.s4 1983009808
      %v2619 = vunpack.c.0.s8 %v2618
      %v2620 = vlaneseq
      %v2621 = vshrl.u32 %v2620, 7
      %v2622 = vsub.s32 %v2619, %v2621
      %v2623 = vrot.slane %v2616, %v2622
      %v2624 = vcombine.low %v2599, %v2607
      %v2625 = vcombine.high %v2599, %v2607
      %v2627 = vunpack.c.l.s4 1934713408
      %v2628 = vunpack.c.0.s8 %v2627
      %v2629 = vlaneseq
      %v2630 = vshrl.u32 %v2629, 7
      %v2631 = vsub.s32 %v2628, %v2630
      %v2632 = vrot.slane %v2624, %v2631
      %v2634 = vunpack.c.l.s4 1934713408
      %v2635 = vunpack.c.0.s8 %v2634
      %v2636 = vlaneseq
      %v2637 = vshrl.u32 %v2636, 7
      %v2638 = vsub.s32 %v2635, %v2637
      %v2639 = vrot.slane %v2625, %v2638
      %v2640 = vcombine.low %v2615, %v2623
      %v2641 = vcombine.high %v2615, %v2623
      %v2643 = vunpack.c.l.s4 1934713408
      %v2644 = vunpack.c.0.s8 %v2643
      %v2645 = vlaneseq
      %v2646 = vshrl.u32 %v2645, 7
      %v2647 = vsub.s32 %v2644, %v2646
      %v2648 = vrot.slane %v2640, %v2647
      %v2650 = vunpack.c.l.s4 1934713408
      %v2651 = vunpack.c.0.s8 %v2650
      %v2652 = vlaneseq
      %v2653 = vshrl.u32 %v2652, 7
      %v2654 = vsub.s32 %v2651, %v2653
      %v2655 = vrot.slane %v2641, %v2654
      %v2656 = vcombine.low %v2632, %v2648
      %v2657 = vcombine.high %v2632, %v2648
      %v2658 = vcombine.low %v2639, %v2655
      %v2659 = vcombine.high %v2639, %v2655
      %v2660 = vcombine.low %v2156, %v2163
      %v2662 = vunpack.c.l.s4 1983009808
      %v2663 = vunpack.c.0.s8 %v2662
      %v2664 = vlaneseq
      %v2665 = vshrl.u32 %v2664, 7
      %v2666 = vsub.s32 %v2663, %v2665
      %v2667 = vrot.slane %v2660, %v2666
      %v2668 = vcombine.low %v2180, %v2181
      %v2670 = vunpack.c.l.s4 1983009808
      %v2671 = vunpack.c.0.s8 %v2670
      %v2672 = vlaneseq
      %v2673 = vshrl.u32 %v2672, 7
      %v2674 = vsub.s32 %v2671, %v2673
      %v2675 = vrot.slane %v2668, %v2674
      %v2676 = vcombine.low %v2172, %v2179
      %v2678 = vunpack.c.l.s4 1983009808
      %v2679 = vunpack.c.0.s8 %v2678
      %v2680 = vlaneseq
      %v2681 = vshrl.u32 %v2680, 7
      %v2682 = vsub.s32 %v2679, %v2681
      %v2683 = vrot.slane %v2676, %v2682
      %v2684 = vcombine.low %v2182, %v2183
      %v2686 = vunpack.c.l.s4 1983009808
      %v2687 = vunpack.c.0.s8 %v2686
      %v2688 = vlaneseq
      %v2689 = vshrl.u32 %v2688, 7
      %v2690 = vsub.s32 %v2687, %v2689
      %v2691 = vrot.slane %v2684, %v2690
      %v2692 = vcombine.low %v2667, %v2675
      %v2693 = vcombine.high %v2667, %v2675
      %v2695 = vunpack.c.l.s4 1934713408
      %v2696 = vunpack.c.0.s8 %v2695
      %v2697 = vlaneseq
      %v2698 = vshrl.u32 %v2697, 7
      %v2699 = vsub.s32 %v2696, %v2698
      %v2700 = vrot.slane %v2692, %v2699
      %v2702 = vunpack.c.l.s4 1934713408
      %v2703 = vunpack.c.0.s8 %v2702
      %v2704 = vlaneseq
      %v2705 = vshrl.u32 %v2704, 7
      %v2706 = vsub.s32 %v2703, %v2705
      %v2707 = vrot.slane %v2693, %v2706
      %v2708 = vcombine.low %v2683, %v2691
      %v2709 = vcombine.high %v2683, %v2691
      %v2711 = vunpack.c.l.s4 1934713408
      %v2712 = vunpack.c.0.s8 %v2711
      %v2713 = vlaneseq
      %v2714 = vshrl.u32 %v2713, 7
      %v2715 = vsub.s32 %v2712, %v2714
      %v2716 = vrot.slane %v2708, %v2715
      %v2718 = vunpack.c.l.s4 1934713408
      %v2719 = vunpack.c.0.s8 %v2718
      %v2720 = vlaneseq
      %v2721 = vshrl.u32 %v2720, 7
      %v2722 = vsub.s32 %v2719, %v2721
      %v2723 = vrot.slane %v2709, %v2722
      %v2724 = vcombine.low %v2700, %v2716
      %v2725 = vcombine.high %v2700, %v2716
      %v2726 = vcombine.low %v2707, %v2723
      %v2727 = vcombine.high %v2707, %v2723
      %v2728 = vcombine.low %v2224, %v2231
      %v2730 = vunpack.c.l.s4 1983009808
      %v2731 = vunpack.c.0.s8 %v2730
      %v2732 = vlaneseq
      %v2733 = vshrl.u32 %v2732, 7
      %v2734 = vsub.s32 %v2731, %v2733
      %v2735 = vrot.slane %v2728, %v2734
      %v2736 = vcombine.low %v2248, %v2249
      %v2738 = vunpack.c.l.s4 1983009808
      %v2739 = vunpack.c.0.s8 %v2738
      %v2740 = vlaneseq
      %v2741 = vshrl.u32 %v2740, 7
      %v2742 = vsub.s32 %v2739, %v2741
      %v2743 = vrot.slane %v2736, %v2742
      %v2744 = vcombine.low %v2240, %v2247
      %v2746 = vunpack.c.l.s4 1983009808
      %v2747 = vunpack.c.0.s8 %v2746
      %v2748 = vlaneseq
      %v2749 = vshrl.u32 %v2748, 7
      %v2750 = vsub.s32 %v2747, %v2749
      %v2751 = vrot.slane %v2744, %v2750
      %v2752 = vcombine.low %v2250, %v2251
      %v2754 = vunpack.c.l.s4 1983009808
      %v2755 = vunpack.c.0.s8 %v2754
      %v2756 = vlaneseq
      %v2757 = vshrl.u32 %v2756, 7
      %v2758 = vsub.s32 %v2755, %v2757
      %v2759 = vrot.slane %v2752, %v2758
      %v2760 = vcombine.low %v2735, %v2743
      %v2761 = vcombine.high %v2735, %v2743
      %v2763 = vunpack.c.l.s4 1934713408
      %v2764 = vunpack.c.0.s8 %v2763
      %v2765 = vlaneseq
      %v2766 = vshrl.u32 %v2765, 7
      %v2767 = vsub.s32 %v2764, %v2766
      %v2768 = vrot.slane %v2760, %v2767
      %v2770 = vunpack.c.l.s4 1934713408
      %v2771 = vunpack.c.0.s8 %v2770
      %v2772 = vlaneseq
      %v2773 = vshrl.u32 %v2772, 7
      %v2774 = vsub.s32 %v2771, %v2773
      %v2775 = vrot.slane %v2761, %v2774
      %v2776 = vcombine.low %v2751, %v2759
      %v2777 = vcombine.high %v2751, %v2759
      %v2779 = vunpack.c.l.s4 1934713408
      %v2780 = vunpack.c.0.s8 %v2779
      %v2781 = vlaneseq
      %v2782 = vshrl.u32 %v2781, 7
      %v2783 = vsub.s32 %v2780, %v2782
      %v2784 = vrot.slane %v2776, %v2783
      %v2786 = vunpack.c.l.s4 1934713408
      %v2787 = vunpack.c.0.s8 %v2786
      %v2788 = vlaneseq
      %v2789 = vshrl.u32 %v2788, 7
      %v2790 = vsub.s32 %v2787, %v2789
      %v2791 = vrot.slane %v2777, %v2790
      %v2792 = vcombine.low %v2768, %v2784
      %v2793 = vcombine.high %v2768, %v2784
      %v2794 = vcombine.low %v2775, %v2791
      %v2795 = vcombine.high %v2775, %v2791
      %2804 = vrot.lane.b32.xlu0 %v380, 120
      %v2805 = vpop.permute.xlu0 %2804
      %2806 = vrot.lane.b32.xlu0 %v381, 120
      %v2807 = vpop.permute.xlu0 %2806
      %2808 = vrot.lane.b32.xlu0 %v382, 120
      %v2809 = vpop.permute.xlu0 %2808
      %2810 = vrot.lane.b32.xlu0 %v383, 120
      %v2811 = vpop.permute.xlu0 %2810
      %2812 = vrot.lane.b32.xlu0 %v384, 120
      %v2813 = vpop.permute.xlu0 %2812
      %2814 = vrot.lane.b32.xlu0 %v385, 120
      %v2815 = vpop.permute.xlu0 %2814
      %2816 = vrot.lane.b32.xlu0 %v386, 120
      %v2817 = vpop.permute.xlu0 %2816
      %2818 = vrot.lane.b32.xlu0 %v387, 120
      %v2819 = vpop.permute.xlu0 %2818
      %2820 = vrot.lane.b32.xlu0 %v380, 112
      %v2821 = vpop.permute.xlu0 %2820
      %2822 = vrot.lane.b32.xlu0 %v381, 112
      %v2823 = vpop.permute.xlu0 %2822
      %2824 = vrot.lane.b32.xlu0 %v382, 112
      %v2825 = vpop.permute.xlu0 %2824
      %2826 = vrot.lane.b32.xlu0 %v383, 112
      %v2827 = vpop.permute.xlu0 %2826
      %2828 = vrot.lane.b32.xlu0 %v384, 112
      %v2829 = vpop.permute.xlu0 %2828
      %2830 = vrot.lane.b32.xlu0 %v385, 112
      %v2831 = vpop.permute.xlu0 %2830
      %2832 = vrot.lane.b32.xlu0 %v386, 112
      %v2833 = vpop.permute.xlu0 %2832
      %2834 = vrot.lane.b32.xlu0 %v387, 112
      %v2835 = vpop.permute.xlu0 %2834
      %2836 = vrot.lane.b32.xlu0 %v380, 104
      %v2837 = vpop.permute.xlu0 %2836
      %2838 = vrot.lane.b32.xlu0 %v381, 104
      %v2839 = vpop.permute.xlu0 %2838
      %2840 = vrot.lane.b32.xlu0 %v382, 104
      %v2841 = vpop.permute.xlu0 %2840
      %2842 = vrot.lane.b32.xlu0 %v383, 104
      %v2843 = vpop.permute.xlu0 %2842
      %2844 = vrot.lane.b32.xlu0 %v384, 104
      %v2845 = vpop.permute.xlu0 %2844
      %2846 = vrot.lane.b32.xlu0 %v385, 104
      %v2847 = vpop.permute.xlu0 %2846
      %2848 = vrot.lane.b32.xlu0 %v386, 104
      %v2849 = vpop.permute.xlu0 %2848
      %2850 = vrot.lane.b32.xlu0 %v387, 104
      %v2851 = vpop.permute.xlu0 %2850
      %2852 = vrot.lane.b32.xlu0 %v380, 64
      %v2853 = vpop.permute.xlu0 %2852
      %2854 = vrot.lane.b32.xlu0 %v381, 64
      %v2855 = vpop.permute.xlu0 %2854
      %2856 = vrot.lane.b32.xlu0 %v382, 64
      %v2857 = vpop.permute.xlu0 %2856
      %2858 = vrot.lane.b32.xlu0 %v383, 64
      %v2859 = vpop.permute.xlu0 %2858
      %2860 = vrot.lane.b32.xlu0 %v384, 64
      %v2861 = vpop.permute.xlu0 %2860
      %2862 = vrot.lane.b32.xlu0 %v385, 64
      %v2863 = vpop.permute.xlu0 %2862
      %2864 = vrot.lane.b32.xlu0 %v386, 64
      %v2865 = vpop.permute.xlu0 %2864
      %2866 = vrot.lane.b32.xlu0 %v387, 64
      %v2867 = vpop.permute.xlu0 %2866
      %2868 = vrot.lane.b32.xlu0 %v2805, 64
      %v2869 = vpop.permute.xlu0 %2868
      %2870 = vrot.lane.b32.xlu0 %v2807, 64
      %v2871 = vpop.permute.xlu0 %2870
      %2872 = vrot.lane.b32.xlu0 %v2809, 64
      %v2873 = vpop.permute.xlu0 %2872
      %2874 = vrot.lane.b32.xlu0 %v2811, 64
      %v2875 = vpop.permute.xlu0 %2874
      %2876 = vrot.lane.b32.xlu0 %v2813, 64
      %v2877 = vpop.permute.xlu0 %2876
      %2878 = vrot.lane.b32.xlu0 %v2815, 64
      %v2879 = vpop.permute.xlu0 %2878
      %2880 = vrot.lane.b32.xlu0 %v2817, 64
      %v2881 = vpop.permute.xlu0 %2880
      %2882 = vrot.lane.b32.xlu0 %v2819, 64
      %v2883 = vpop.permute.xlu0 %2882
      %2884 = vrot.lane.b32.xlu0 %v2821, 64
      %v2885 = vpop.permute.xlu0 %2884
      %2886 = vrot.lane.b32.xlu0 %v2823, 64
      %v2887 = vpop.permute.xlu0 %2886
      %2888 = vrot.lane.b32.xlu0 %v2825, 64
      %v2889 = vpop.permute.xlu0 %2888
      %2890 = vrot.lane.b32.xlu0 %v2827, 64
      %v2891 = vpop.permute.xlu0 %2890
      %2892 = vrot.lane.b32.xlu0 %v2829, 64
      %v2893 = vpop.permute.xlu0 %2892
      %2894 = vrot.lane.b32.xlu0 %v2831, 64
      %v2895 = vpop.permute.xlu0 %2894
      %2896 = vrot.lane.b32.xlu0 %v2833, 64
      %v2897 = vpop.permute.xlu0 %2896
      %2898 = vrot.lane.b32.xlu0 %v2835, 64
      %v2899 = vpop.permute.xlu0 %2898
      %2900 = vrot.lane.b32.xlu0 %v2837, 64
      %v2901 = vpop.permute.xlu0 %2900
      %2902 = vrot.lane.b32.xlu0 %v2839, 64
      %v2903 = vpop.permute.xlu0 %2902
      %2904 = vrot.lane.b32.xlu0 %v2841, 64
      %v2905 = vpop.permute.xlu0 %2904
      %2906 = vrot.lane.b32.xlu0 %v2843, 64
      %v2907 = vpop.permute.xlu0 %2906
      %2908 = vrot.lane.b32.xlu0 %v2845, 64
      %v2909 = vpop.permute.xlu0 %2908
      %2910 = vrot.lane.b32.xlu0 %v2847, 64
      %v2911 = vpop.permute.xlu0 %2910
      %2912 = vrot.lane.b32.xlu0 %v2849, 64
      %v2913 = vpop.permute.xlu0 %2912
      %2914 = vrot.lane.b32.xlu0 %v2851, 64
      %v2915 = vpop.permute.xlu0 %2914
      %v2948 = vcombine.low %v2853, %v2885
      %v2949 = vcombine.high %v2853, %v2885
      %v2951 = vunpack.c.l.s4 1983009808
      %v2952 = vunpack.c.0.s8 %v2951
      %v2953 = vlaneseq
      %v2954 = vshrl.u32 %v2953, 7
      %v2955 = vsub.s32 %v2952, %v2954
      %v2956 = vrot.slane %v2948, %v2955
      %v2958 = vunpack.c.l.s4 1983009808
      %v2959 = vunpack.c.0.s8 %v2958
      %v2960 = vlaneseq
      %v2961 = vshrl.u32 %v2960, 7
      %v2962 = vsub.s32 %v2959, %v2961
      %v2963 = vrot.slane %v2949, %v2962
      %v2964 = vcombine.low %v2869, %v2901
      %v2965 = vcombine.high %v2869, %v2901
      %v2967 = vunpack.c.l.s4 1983009808
      %v2968 = vunpack.c.0.s8 %v2967
      %v2969 = vlaneseq
      %v2970 = vshrl.u32 %v2969, 7
      %v2971 = vsub.s32 %v2968, %v2970
      %v2972 = vrot.slane %v2964, %v2971
      %v2974 = vunpack.c.l.s4 1983009808
      %v2975 = vunpack.c.0.s8 %v2974
      %v2976 = vlaneseq
      %v2977 = vshrl.u32 %v2976, 7
      %v2978 = vsub.s32 %v2975, %v2977
      %v2979 = vrot.slane %v2965, %v2978
      %v2980 = vcombine.low %v2956, %v2972
      %v2981 = vcombine.high %v2956, %v2972
      %v2983 = vunpack.c.l.s4 1934713408
      %v2984 = vunpack.c.0.s8 %v2983
      %v2985 = vlaneseq
      %v2986 = vshrl.u32 %v2985, 7
      %v2987 = vsub.s32 %v2984, %v2986
      %v2988 = vrot.slane %v2980, %v2987
      %v2990 = vunpack.c.l.s4 1934713408
      %v2991 = vunpack.c.0.s8 %v2990
      %v2992 = vlaneseq
      %v2993 = vshrl.u32 %v2992, 7
      %v2994 = vsub.s32 %v2991, %v2993
      %v2995 = vrot.slane %v2981, %v2994
      %v2996 = vcombine.low %v2963, %v2979
      %v2997 = vcombine.high %v2963, %v2979
      %v2999 = vunpack.c.l.s4 1934713408
      %v3000 = vunpack.c.0.s8 %v2999
      %v3001 = vlaneseq
      %v3002 = vshrl.u32 %v3001, 7
      %v3003 = vsub.s32 %v3000, %v3002
      %v3004 = vrot.slane %v2996, %v3003
      %v3006 = vunpack.c.l.s4 1934713408
      %v3007 = vunpack.c.0.s8 %v3006
      %v3008 = vlaneseq
      %v3009 = vshrl.u32 %v3008, 7
      %v3010 = vsub.s32 %v3007, %v3009
      %v3011 = vrot.slane %v2997, %v3010
      %v3012 = vcombine.high %v2988, 0.0
      %v3013 = vcombine.high %v2995, 0.0
      %v3014 = vcombine.high %v3004, 0.0
      %v3015 = vcombine.high %v3011, 0.0
      %v3016 = vcombine.low %v2855, %v2887
      %v3017 = vcombine.high %v2855, %v2887
      %v3019 = vunpack.c.l.s4 1983009808
      %v3020 = vunpack.c.0.s8 %v3019
      %v3021 = vlaneseq
      %v3022 = vshrl.u32 %v3021, 7
      %v3023 = vsub.s32 %v3020, %v3022
      %v3024 = vrot.slane %v3016, %v3023
      %v3026 = vunpack.c.l.s4 1983009808
      %v3027 = vunpack.c.0.s8 %v3026
      %v3028 = vlaneseq
      %v3029 = vshrl.u32 %v3028, 7
      %v3030 = vsub.s32 %v3027, %v3029
      %v3031 = vrot.slane %v3017, %v3030
      %v3032 = vcombine.low %v2871, %v2903
      %v3033 = vcombine.high %v2871, %v2903
      %v3035 = vunpack.c.l.s4 1983009808
      %v3036 = vunpack.c.0.s8 %v3035
      %v3037 = vlaneseq
      %v3038 = vshrl.u32 %v3037, 7
      %v3039 = vsub.s32 %v3036, %v3038
      %v3040 = vrot.slane %v3032, %v3039
      %v3042 = vunpack.c.l.s4 1983009808
      %v3043 = vunpack.c.0.s8 %v3042
      %v3044 = vlaneseq
      %v3045 = vshrl.u32 %v3044, 7
      %v3046 = vsub.s32 %v3043, %v3045
      %v3047 = vrot.slane %v3033, %v3046
      %v3048 = vcombine.low %v3024, %v3040
      %v3049 = vcombine.high %v3024, %v3040
      %v3051 = vunpack.c.l.s4 1934713408
      %v3052 = vunpack.c.0.s8 %v3051
      %v3053 = vlaneseq
      %v3054 = vshrl.u32 %v3053, 7
      %v3055 = vsub.s32 %v3052, %v3054
      %v3056 = vrot.slane %v3048, %v3055
      %v3058 = vunpack.c.l.s4 1934713408
      %v3059 = vunpack.c.0.s8 %v3058
      %v3060 = vlaneseq
      %v3061 = vshrl.u32 %v3060, 7
      %v3062 = vsub.s32 %v3059, %v3061
      %v3063 = vrot.slane %v3049, %v3062
      %v3064 = vcombine.low %v3031, %v3047
      %v3065 = vcombine.high %v3031, %v3047
      %v3067 = vunpack.c.l.s4 1934713408
      %v3068 = vunpack.c.0.s8 %v3067
      %v3069 = vlaneseq
      %v3070 = vshrl.u32 %v3069, 7
      %v3071 = vsub.s32 %v3068, %v3070
      %v3072 = vrot.slane %v3064, %v3071
      %v3074 = vunpack.c.l.s4 1934713408
      %v3075 = vunpack.c.0.s8 %v3074
      %v3076 = vlaneseq
      %v3077 = vshrl.u32 %v3076, 7
      %v3078 = vsub.s32 %v3075, %v3077
      %v3079 = vrot.slane %v3065, %v3078
      %v3080 = vcombine.high %v3056, 0.0
      %v3081 = vcombine.high %v3063, 0.0
      %v3082 = vcombine.high %v3072, 0.0
      %v3083 = vcombine.high %v3079, 0.0
      %v3084 = vcombine.low %v2857, %v2889
      %v3085 = vcombine.high %v2857, %v2889
      %v3087 = vunpack.c.l.s4 1983009808
      %v3088 = vunpack.c.0.s8 %v3087
      %v3089 = vlaneseq
      %v3090 = vshrl.u32 %v3089, 7
      %v3091 = vsub.s32 %v3088, %v3090
      %v3092 = vrot.slane %v3084, %v3091
      %v3094 = vunpack.c.l.s4 1983009808
      %v3095 = vunpack.c.0.s8 %v3094
      %v3096 = vlaneseq
      %v3097 = vshrl.u32 %v3096, 7
      %v3098 = vsub.s32 %v3095, %v3097
      %v3099 = vrot.slane %v3085, %v3098
      %v3100 = vcombine.low %v2873, %v2905
      %v3101 = vcombine.high %v2873, %v2905
      %v3103 = vunpack.c.l.s4 1983009808
      %v3104 = vunpack.c.0.s8 %v3103
      %v3105 = vlaneseq
      %v3106 = vshrl.u32 %v3105, 7
      %v3107 = vsub.s32 %v3104, %v3106
      %v3108 = vrot.slane %v3100, %v3107
      %v3110 = vunpack.c.l.s4 1983009808
      %v3111 = vunpack.c.0.s8 %v3110
      %v3112 = vlaneseq
      %v3113 = vshrl.u32 %v3112, 7
      %v3114 = vsub.s32 %v3111, %v3113
      %v3115 = vrot.slane %v3101, %v3114
      %v3116 = vcombine.low %v3092, %v3108
      %v3117 = vcombine.high %v3092, %v3108
      %v3119 = vunpack.c.l.s4 1934713408
      %v3120 = vunpack.c.0.s8 %v3119
      %v3121 = vlaneseq
      %v3122 = vshrl.u32 %v3121, 7
      %v3123 = vsub.s32 %v3120, %v3122
      %v3124 = vrot.slane %v3116, %v3123
      %v3126 = vunpack.c.l.s4 1934713408
      %v3127 = vunpack.c.0.s8 %v3126
      %v3128 = vlaneseq
      %v3129 = vshrl.u32 %v3128, 7
      %v3130 = vsub.s32 %v3127, %v3129
      %v3131 = vrot.slane %v3117, %v3130
      %v3132 = vcombine.low %v3099, %v3115
      %v3133 = vcombine.high %v3099, %v3115
      %v3135 = vunpack.c.l.s4 1934713408
      %v3136 = vunpack.c.0.s8 %v3135
      %v3137 = vlaneseq
      %v3138 = vshrl.u32 %v3137, 7
      %v3139 = vsub.s32 %v3136, %v3138
      %v3140 = vrot.slane %v3132, %v3139
      %v3142 = vunpack.c.l.s4 1934713408
      %v3143 = vunpack.c.0.s8 %v3142
      %v3144 = vlaneseq
      %v3145 = vshrl.u32 %v3144, 7
      %v3146 = vsub.s32 %v3143, %v3145
      %v3147 = vrot.slane %v3133, %v3146
      %v3148 = vcombine.high %v3124, 0.0
      %v3149 = vcombine.high %v3131, 0.0
      %v3150 = vcombine.high %v3140, 0.0
      %v3151 = vcombine.high %v3147, 0.0
      %v3152 = vcombine.low %v2859, %v2891
      %v3153 = vcombine.high %v2859, %v2891
      %v3155 = vunpack.c.l.s4 1983009808
      %v3156 = vunpack.c.0.s8 %v3155
      %v3157 = vlaneseq
      %v3158 = vshrl.u32 %v3157, 7
      %v3159 = vsub.s32 %v3156, %v3158
      %v3160 = vrot.slane %v3152, %v3159
      %v3162 = vunpack.c.l.s4 1983009808
      %v3163 = vunpack.c.0.s8 %v3162
      %v3164 = vlaneseq
      %v3165 = vshrl.u32 %v3164, 7
      %v3166 = vsub.s32 %v3163, %v3165
      %v3167 = vrot.slane %v3153, %v3166
      %v3168 = vcombine.low %v2875, %v2907
      %v3169 = vcombine.high %v2875, %v2907
      %v3171 = vunpack.c.l.s4 1983009808
      %v3172 = vunpack.c.0.s8 %v3171
      %v3173 = vlaneseq
      %v3174 = vshrl.u32 %v3173, 7
      %v3175 = vsub.s32 %v3172, %v3174
      %v3176 = vrot.slane %v3168, %v3175
      %v3178 = vunpack.c.l.s4 1983009808
      %v3179 = vunpack.c.0.s8 %v3178
      %v3180 = vlaneseq
      %v3181 = vshrl.u32 %v3180, 7
      %v3182 = vsub.s32 %v3179, %v3181
      %v3183 = vrot.slane %v3169, %v3182
      %v3184 = vcombine.low %v3160, %v3176
      %v3185 = vcombine.high %v3160, %v3176
      %v3187 = vunpack.c.l.s4 1934713408
      %v3188 = vunpack.c.0.s8 %v3187
      %v3189 = vlaneseq
      %v3190 = vshrl.u32 %v3189, 7
      %v3191 = vsub.s32 %v3188, %v3190
      %v3192 = vrot.slane %v3184, %v3191
      %v3194 = vunpack.c.l.s4 1934713408
      %v3195 = vunpack.c.0.s8 %v3194
      %v3196 = vlaneseq
      %v3197 = vshrl.u32 %v3196, 7
      %v3198 = vsub.s32 %v3195, %v3197
      %v3199 = vrot.slane %v3185, %v3198
      %v3200 = vcombine.low %v3167, %v3183
      %v3201 = vcombine.high %v3167, %v3183
      %v3203 = vunpack.c.l.s4 1934713408
      %v3204 = vunpack.c.0.s8 %v3203
      %v3205 = vlaneseq
      %v3206 = vshrl.u32 %v3205, 7
      %v3207 = vsub.s32 %v3204, %v3206
      %v3208 = vrot.slane %v3200, %v3207
      %v3210 = vunpack.c.l.s4 1934713408
      %v3211 = vunpack.c.0.s8 %v3210
      %v3212 = vlaneseq
      %v3213 = vshrl.u32 %v3212, 7
      %v3214 = vsub.s32 %v3211, %v3213
      %v3215 = vrot.slane %v3201, %v3214
      %v3216 = vcombine.high %v3192, 0.0
      %v3217 = vcombine.high %v3199, 0.0
      %v3218 = vcombine.high %v3208, 0.0
      %v3219 = vcombine.high %v3215, 0.0
      %v3220 = vcombine.low %v2861, %v2893
      %v3221 = vcombine.high %v2861, %v2893
      %v3223 = vunpack.c.l.s4 1983009808
      %v3224 = vunpack.c.0.s8 %v3223
      %v3225 = vlaneseq
      %v3226 = vshrl.u32 %v3225, 7
      %v3227 = vsub.s32 %v3224, %v3226
      %v3228 = vrot.slane %v3220, %v3227
      %v3230 = vunpack.c.l.s4 1983009808
      %v3231 = vunpack.c.0.s8 %v3230
      %v3232 = vlaneseq
      %v3233 = vshrl.u32 %v3232, 7
      %v3234 = vsub.s32 %v3231, %v3233
      %v3235 = vrot.slane %v3221, %v3234
      %v3236 = vcombine.low %v2877, %v2909
      %v3237 = vcombine.high %v2877, %v2909
      %v3239 = vunpack.c.l.s4 1983009808
      %v3240 = vunpack.c.0.s8 %v3239
      %v3241 = vlaneseq
      %v3242 = vshrl.u32 %v3241, 7
      %v3243 = vsub.s32 %v3240, %v3242
      %v3244 = vrot.slane %v3236, %v3243
      %v3246 = vunpack.c.l.s4 1983009808
      %v3247 = vunpack.c.0.s8 %v3246
      %v3248 = vlaneseq
      %v3249 = vshrl.u32 %v3248, 7
      %v3250 = vsub.s32 %v3247, %v3249
      %v3251 = vrot.slane %v3237, %v3250
      %v3252 = vcombine.low %v3228, %v3244
      %v3253 = vcombine.high %v3228, %v3244
      %v3255 = vunpack.c.l.s4 1934713408
      %v3256 = vunpack.c.0.s8 %v3255
      %v3257 = vlaneseq
      %v3258 = vshrl.u32 %v3257, 7
      %v3259 = vsub.s32 %v3256, %v3258
      %v3260 = vrot.slane %v3252, %v3259
      %v3262 = vunpack.c.l.s4 1934713408
      %v3263 = vunpack.c.0.s8 %v3262
      %v3264 = vlaneseq
      %v3265 = vshrl.u32 %v3264, 7
      %v3266 = vsub.s32 %v3263, %v3265
      %v3267 = vrot.slane %v3253, %v3266
      %v3268 = vcombine.low %v3235, %v3251
      %v3269 = vcombine.high %v3235, %v3251
      %v3271 = vunpack.c.l.s4 1934713408
      %v3272 = vunpack.c.0.s8 %v3271
      %v3273 = vlaneseq
      %v3274 = vshrl.u32 %v3273, 7
      %v3275 = vsub.s32 %v3272, %v3274
      %v3276 = vrot.slane %v3268, %v3275
      %v3278 = vunpack.c.l.s4 1934713408
      %v3279 = vunpack.c.0.s8 %v3278
      %v3280 = vlaneseq
      %v3281 = vshrl.u32 %v3280, 7
      %v3282 = vsub.s32 %v3279, %v3281
      %v3283 = vrot.slane %v3269, %v3282
      %v3284 = vcombine.high %v3260, 0.0
      %v3285 = vcombine.high %v3267, 0.0
      %v3286 = vcombine.high %v3276, 0.0
      %v3287 = vcombine.high %v3283, 0.0
      %v3288 = vcombine.low %v2863, %v2895
      %v3289 = vcombine.high %v2863, %v2895
      %v3291 = vunpack.c.l.s4 1983009808
      %v3292 = vunpack.c.0.s8 %v3291
      %v3293 = vlaneseq
      %v3294 = vshrl.u32 %v3293, 7
      %v3295 = vsub.s32 %v3292, %v3294
      %v3296 = vrot.slane %v3288, %v3295
      %v3298 = vunpack.c.l.s4 1983009808
      %v3299 = vunpack.c.0.s8 %v3298
      %v3300 = vlaneseq
      %v3301 = vshrl.u32 %v3300, 7
      %v3302 = vsub.s32 %v3299, %v3301
      %v3303 = vrot.slane %v3289, %v3302
      %v3304 = vcombine.low %v2879, %v2911
      %v3305 = vcombine.high %v2879, %v2911
      %v3307 = vunpack.c.l.s4 1983009808
      %v3308 = vunpack.c.0.s8 %v3307
      %v3309 = vlaneseq
      %v3310 = vshrl.u32 %v3309, 7
      %v3311 = vsub.s32 %v3308, %v3310
      %v3312 = vrot.slane %v3304, %v3311
      %v3314 = vunpack.c.l.s4 1983009808
      %v3315 = vunpack.c.0.s8 %v3314
      %v3316 = vlaneseq
      %v3317 = vshrl.u32 %v3316, 7
      %v3318 = vsub.s32 %v3315, %v3317
      %v3319 = vrot.slane %v3305, %v3318
      %v3320 = vcombine.low %v3296, %v3312
      %v3321 = vcombine.high %v3296, %v3312
      %v3323 = vunpack.c.l.s4 1934713408
      %v3324 = vunpack.c.0.s8 %v3323
      %v3325 = vlaneseq
      %v3326 = vshrl.u32 %v3325, 7
      %v3327 = vsub.s32 %v3324, %v3326
      %v3328 = vrot.slane %v3320, %v3327
      %v3330 = vunpack.c.l.s4 1934713408
      %v3331 = vunpack.c.0.s8 %v3330
      %v3332 = vlaneseq
      %v3333 = vshrl.u32 %v3332, 7
      %v3334 = vsub.s32 %v3331, %v3333
      %v3335 = vrot.slane %v3321, %v3334
      %v3336 = vcombine.low %v3303, %v3319
      %v3337 = vcombine.high %v3303, %v3319
      %v3339 = vunpack.c.l.s4 1934713408
      %v3340 = vunpack.c.0.s8 %v3339
      %v3341 = vlaneseq
      %v3342 = vshrl.u32 %v3341, 7
      %v3343 = vsub.s32 %v3340, %v3342
      %v3344 = vrot.slane %v3336, %v3343
      %v3346 = vunpack.c.l.s4 1934713408
      %v3347 = vunpack.c.0.s8 %v3346
      %v3348 = vlaneseq
      %v3349 = vshrl.u32 %v3348, 7
      %v3350 = vsub.s32 %v3347, %v3349
      %v3351 = vrot.slane %v3337, %v3350
      %v3352 = vcombine.high %v3328, 0.0
      %v3353 = vcombine.high %v3335, 0.0
      %v3354 = vcombine.high %v3344, 0.0
      %v3355 = vcombine.high %v3351, 0.0
      %v3356 = vcombine.low %v2865, %v2897
      %v3357 = vcombine.high %v2865, %v2897
      %v3359 = vunpack.c.l.s4 1983009808
      %v3360 = vunpack.c.0.s8 %v3359
      %v3361 = vlaneseq
      %v3362 = vshrl.u32 %v3361, 7
      %v3363 = vsub.s32 %v3360, %v3362
      %v3364 = vrot.slane %v3356, %v3363
      %v3366 = vunpack.c.l.s4 1983009808
      %v3367 = vunpack.c.0.s8 %v3366
      %v3368 = vlaneseq
      %v3369 = vshrl.u32 %v3368, 7
      %v3370 = vsub.s32 %v3367, %v3369
      %v3371 = vrot.slane %v3357, %v3370
      %v3372 = vcombine.low %v2881, %v2913
      %v3373 = vcombine.high %v2881, %v2913
      %v3375 = vunpack.c.l.s4 1983009808
      %v3376 = vunpack.c.0.s8 %v3375
      %v3377 = vlaneseq
      %v3378 = vshrl.u32 %v3377, 7
      %v3379 = vsub.s32 %v3376, %v3378
      %v3380 = vrot.slane %v3372, %v3379
      %v3382 = vunpack.c.l.s4 1983009808
      %v3383 = vunpack.c.0.s8 %v3382
      %v3384 = vlaneseq
      %v3385 = vshrl.u32 %v3384, 7
      %v3386 = vsub.s32 %v3383, %v3385
      %v3387 = vrot.slane %v3373, %v3386
      %v3388 = vcombine.low %v3364, %v3380
      %v3389 = vcombine.high %v3364, %v3380
      %v3391 = vunpack.c.l.s4 1934713408
      %v3392 = vunpack.c.0.s8 %v3391
      %v3393 = vlaneseq
      %v3394 = vshrl.u32 %v3393, 7
      %v3395 = vsub.s32 %v3392, %v3394
      %v3396 = vrot.slane %v3388, %v3395
      %v3398 = vunpack.c.l.s4 1934713408
      %v3399 = vunpack.c.0.s8 %v3398
      %v3400 = vlaneseq
      %v3401 = vshrl.u32 %v3400, 7
      %v3402 = vsub.s32 %v3399, %v3401
      %v3403 = vrot.slane %v3389, %v3402
      %v3404 = vcombine.low %v3371, %v3387
      %v3405 = vcombine.high %v3371, %v3387
      %v3407 = vunpack.c.l.s4 1934713408
      %v3408 = vunpack.c.0.s8 %v3407
      %v3409 = vlaneseq
      %v3410 = vshrl.u32 %v3409, 7
      %v3411 = vsub.s32 %v3408, %v3410
      %v3412 = vrot.slane %v3404, %v3411
      %v3414 = vunpack.c.l.s4 1934713408
      %v3415 = vunpack.c.0.s8 %v3414
      %v3416 = vlaneseq
      %v3417 = vshrl.u32 %v3416, 7
      %v3418 = vsub.s32 %v3415, %v3417
      %v3419 = vrot.slane %v3405, %v3418
      %v3420 = vcombine.high %v3396, 0.0
      %v3421 = vcombine.high %v3403, 0.0
      %v3422 = vcombine.high %v3412, 0.0
      %v3423 = vcombine.high %v3419, 0.0
      %v3424 = vcombine.low %v2867, %v2899
      %v3425 = vcombine.high %v2867, %v2899
      %v3427 = vunpack.c.l.s4 1983009808
      %v3428 = vunpack.c.0.s8 %v3427
      %v3429 = vlaneseq
      %v3430 = vshrl.u32 %v3429, 7
      %v3431 = vsub.s32 %v3428, %v3430
      %v3432 = vrot.slane %v3424, %v3431
      %v3434 = vunpack.c.l.s4 1983009808
      %v3435 = vunpack.c.0.s8 %v3434
      %v3436 = vlaneseq
      %v3437 = vshrl.u32 %v3436, 7
      %v3438 = vsub.s32 %v3435, %v3437
      %v3439 = vrot.slane %v3425, %v3438
      %v3440 = vcombine.low %v2883, %v2915
      %v3441 = vcombine.high %v2883, %v2915
      %v3443 = vunpack.c.l.s4 1983009808
      %v3444 = vunpack.c.0.s8 %v3443
      %v3445 = vlaneseq
      %v3446 = vshrl.u32 %v3445, 7
      %v3447 = vsub.s32 %v3444, %v3446
      %v3448 = vrot.slane %v3440, %v3447
      %v3450 = vunpack.c.l.s4 1983009808
      %v3451 = vunpack.c.0.s8 %v3450
      %v3452 = vlaneseq
      %v3453 = vshrl.u32 %v3452, 7
      %v3454 = vsub.s32 %v3451, %v3453
      %v3455 = vrot.slane %v3441, %v3454
      %v3456 = vcombine.low %v3432, %v3448
      %v3457 = vcombine.high %v3432, %v3448
      %v3459 = vunpack.c.l.s4 1934713408
      %v3460 = vunpack.c.0.s8 %v3459
      %v3461 = vlaneseq
      %v3462 = vshrl.u32 %v3461, 7
      %v3463 = vsub.s32 %v3460, %v3462
      %v3464 = vrot.slane %v3456, %v3463
      %v3466 = vunpack.c.l.s4 1934713408
      %v3467 = vunpack.c.0.s8 %v3466
      %v3468 = vlaneseq
      %v3469 = vshrl.u32 %v3468, 7
      %v3470 = vsub.s32 %v3467, %v3469
      %v3471 = vrot.slane %v3457, %v3470
      %v3472 = vcombine.low %v3439, %v3455
      %v3473 = vcombine.high %v3439, %v3455
      %v3475 = vunpack.c.l.s4 1934713408
      %v3476 = vunpack.c.0.s8 %v3475
      %v3477 = vlaneseq
      %v3478 = vshrl.u32 %v3477, 7
      %v3479 = vsub.s32 %v3476, %v3478
      %v3480 = vrot.slane %v3472, %v3479
      %v3482 = vunpack.c.l.s4 1934713408
      %v3483 = vunpack.c.0.s8 %v3482
      %v3484 = vlaneseq
      %v3485 = vshrl.u32 %v3484, 7
      %v3486 = vsub.s32 %v3483, %v3485
      %v3487 = vrot.slane %v3473, %v3486
      %v3488 = vcombine.high %v3464, 0.0
      %v3489 = vcombine.high %v3471, 0.0
      %v3490 = vcombine.high %v3480, 0.0
      %v3491 = vcombine.high %v3487, 0.0
      %v3492 = vcombine.low %v2988, %v2995
      %v3494 = vunpack.c.l.s4 1983009808
      %v3495 = vunpack.c.0.s8 %v3494
      %v3496 = vlaneseq
      %v3497 = vshrl.u32 %v3496, 7
      %v3498 = vsub.s32 %v3495, %v3497
      %v3499 = vrot.slane %v3492, %v3498
      %v3500 = vcombine.low %v3012, %v3013
      %v3502 = vunpack.c.l.s4 1983009808
      %v3503 = vunpack.c.0.s8 %v3502
      %v3504 = vlaneseq
      %v3505 = vshrl.u32 %v3504, 7
      %v3506 = vsub.s32 %v3503, %v3505
      %v3507 = vrot.slane %v3500, %v3506
      %v3508 = vcombine.low %v3004, %v3011
      %v3510 = vunpack.c.l.s4 1983009808
      %v3511 = vunpack.c.0.s8 %v3510
      %v3512 = vlaneseq
      %v3513 = vshrl.u32 %v3512, 7
      %v3514 = vsub.s32 %v3511, %v3513
      %v3515 = vrot.slane %v3508, %v3514
      %v3516 = vcombine.low %v3014, %v3015
      %v3518 = vunpack.c.l.s4 1983009808
      %v3519 = vunpack.c.0.s8 %v3518
      %v3520 = vlaneseq
      %v3521 = vshrl.u32 %v3520, 7
      %v3522 = vsub.s32 %v3519, %v3521
      %v3523 = vrot.slane %v3516, %v3522
      %v3524 = vcombine.low %v3499, %v3507
      %v3525 = vcombine.high %v3499, %v3507
      %v3527 = vunpack.c.l.s4 1934713408
      %v3528 = vunpack.c.0.s8 %v3527
      %v3529 = vlaneseq
      %v3530 = vshrl.u32 %v3529, 7
      %v3531 = vsub.s32 %v3528, %v3530
      %v3532 = vrot.slane %v3524, %v3531
      %v3534 = vunpack.c.l.s4 1934713408
      %v3535 = vunpack.c.0.s8 %v3534
      %v3536 = vlaneseq
      %v3537 = vshrl.u32 %v3536, 7
      %v3538 = vsub.s32 %v3535, %v3537
      %v3539 = vrot.slane %v3525, %v3538
      %v3540 = vcombine.low %v3515, %v3523
      %v3541 = vcombine.high %v3515, %v3523
      %v3543 = vunpack.c.l.s4 1934713408
      %v3544 = vunpack.c.0.s8 %v3543
      %v3545 = vlaneseq
      %v3546 = vshrl.u32 %v3545, 7
      %v3547 = vsub.s32 %v3544, %v3546
      %v3548 = vrot.slane %v3540, %v3547
      %v3550 = vunpack.c.l.s4 1934713408
      %v3551 = vunpack.c.0.s8 %v3550
      %v3552 = vlaneseq
      %v3553 = vshrl.u32 %v3552, 7
      %v3554 = vsub.s32 %v3551, %v3553
      %v3555 = vrot.slane %v3541, %v3554
      %v3556 = vcombine.low %v3532, %v3548
      %v3557 = vcombine.high %v3532, %v3548
      %v3558 = vcombine.low %v3539, %v3555
      %v3559 = vcombine.high %v3539, %v3555
      %v3560 = vcombine.low %v3056, %v3063
      %v3562 = vunpack.c.l.s4 1983009808
      %v3563 = vunpack.c.0.s8 %v3562
      %v3564 = vlaneseq
      %v3565 = vshrl.u32 %v3564, 7
      %v3566 = vsub.s32 %v3563, %v3565
      %v3567 = vrot.slane %v3560, %v3566
      %v3568 = vcombine.low %v3080, %v3081
      %v3570 = vunpack.c.l.s4 1983009808
      %v3571 = vunpack.c.0.s8 %v3570
      %v3572 = vlaneseq
      %v3573 = vshrl.u32 %v3572, 7
      %v3574 = vsub.s32 %v3571, %v3573
      %v3575 = vrot.slane %v3568, %v3574
      %v3576 = vcombine.low %v3072, %v3079
      %v3578 = vunpack.c.l.s4 1983009808
      %v3579 = vunpack.c.0.s8 %v3578
      %v3580 = vlaneseq
      %v3581 = vshrl.u32 %v3580, 7
      %v3582 = vsub.s32 %v3579, %v3581
      %v3583 = vrot.slane %v3576, %v3582
      %v3584 = vcombine.low %v3082, %v3083
      %v3586 = vunpack.c.l.s4 1983009808
      %v3587 = vunpack.c.0.s8 %v3586
      %v3588 = vlaneseq
      %v3589 = vshrl.u32 %v3588, 7
      %v3590 = vsub.s32 %v3587, %v3589
      %v3591 = vrot.slane %v3584, %v3590
      %v3592 = vcombine.low %v3567, %v3575
      %v3593 = vcombine.high %v3567, %v3575
      %v3595 = vunpack.c.l.s4 1934713408
      %v3596 = vunpack.c.0.s8 %v3595
      %v3597 = vlaneseq
      %v3598 = vshrl.u32 %v3597, 7
      %v3599 = vsub.s32 %v3596, %v3598
      %v3600 = vrot.slane %v3592, %v3599
      %v3602 = vunpack.c.l.s4 1934713408
      %v3603 = vunpack.c.0.s8 %v3602
      %v3604 = vlaneseq
      %v3605 = vshrl.u32 %v3604, 7
      %v3606 = vsub.s32 %v3603, %v3605
      %v3607 = vrot.slane %v3593, %v3606
      %v3608 = vcombine.low %v3583, %v3591
      %v3609 = vcombine.high %v3583, %v3591
      %v3611 = vunpack.c.l.s4 1934713408
      %v3612 = vunpack.c.0.s8 %v3611
      %v3613 = vlaneseq
      %v3614 = vshrl.u32 %v3613, 7
      %v3615 = vsub.s32 %v3612, %v3614
      %v3616 = vrot.slane %v3608, %v3615
      %v3618 = vunpack.c.l.s4 1934713408
      %v3619 = vunpack.c.0.s8 %v3618
      %v3620 = vlaneseq
      %v3621 = vshrl.u32 %v3620, 7
      %v3622 = vsub.s32 %v3619, %v3621
      %v3623 = vrot.slane %v3609, %v3622
      %v3624 = vcombine.low %v3600, %v3616
      %v3625 = vcombine.high %v3600, %v3616
      %v3626 = vcombine.low %v3607, %v3623
      %v3627 = vcombine.high %v3607, %v3623
      %v3628 = vcombine.low %v3124, %v3131
      %v3630 = vunpack.c.l.s4 1983009808
      %v3631 = vunpack.c.0.s8 %v3630
      %v3632 = vlaneseq
      %v3633 = vshrl.u32 %v3632, 7
      %v3634 = vsub.s32 %v3631, %v3633
      %v3635 = vrot.slane %v3628, %v3634
      %v3636 = vcombine.low %v3148, %v3149
      %v3638 = vunpack.c.l.s4 1983009808
      %v3639 = vunpack.c.0.s8 %v3638
      %v3640 = vlaneseq
      %v3641 = vshrl.u32 %v3640, 7
      %v3642 = vsub.s32 %v3639, %v3641
      %v3643 = vrot.slane %v3636, %v3642
      %v3644 = vcombine.low %v3140, %v3147
      %v3646 = vunpack.c.l.s4 1983009808
      %v3647 = vunpack.c.0.s8 %v3646
      %v3648 = vlaneseq
      %v3649 = vshrl.u32 %v3648, 7
      %v3650 = vsub.s32 %v3647, %v3649
      %v3651 = vrot.slane %v3644, %v3650
      %v3652 = vcombine.low %v3150, %v3151
      %v3654 = vunpack.c.l.s4 1983009808
      %v3655 = vunpack.c.0.s8 %v3654
      %v3656 = vlaneseq
      %v3657 = vshrl.u32 %v3656, 7
      %v3658 = vsub.s32 %v3655, %v3657
      %v3659 = vrot.slane %v3652, %v3658
      %v3660 = vcombine.low %v3635, %v3643
      %v3661 = vcombine.high %v3635, %v3643
      %v3663 = vunpack.c.l.s4 1934713408
      %v3664 = vunpack.c.0.s8 %v3663
      %v3665 = vlaneseq
      %v3666 = vshrl.u32 %v3665, 7
      %v3667 = vsub.s32 %v3664, %v3666
      %v3668 = vrot.slane %v3660, %v3667
      %v3670 = vunpack.c.l.s4 1934713408
      %v3671 = vunpack.c.0.s8 %v3670
      %v3672 = vlaneseq
      %v3673 = vshrl.u32 %v3672, 7
      %v3674 = vsub.s32 %v3671, %v3673
      %v3675 = vrot.slane %v3661, %v3674
      %v3676 = vcombine.low %v3651, %v3659
      %v3677 = vcombine.high %v3651, %v3659
      %v3679 = vunpack.c.l.s4 1934713408
      %v3680 = vunpack.c.0.s8 %v3679
      %v3681 = vlaneseq
      %v3682 = vshrl.u32 %v3681, 7
      %v3683 = vsub.s32 %v3680, %v3682
      %v3684 = vrot.slane %v3676, %v3683
      %v3686 = vunpack.c.l.s4 1934713408
      %v3687 = vunpack.c.0.s8 %v3686
      %v3688 = vlaneseq
      %v3689 = vshrl.u32 %v3688, 7
      %v3690 = vsub.s32 %v3687, %v3689
      %v3691 = vrot.slane %v3677, %v3690
      %v3692 = vcombine.low %v3668, %v3684
      %v3693 = vcombine.high %v3668, %v3684
      %v3694 = vcombine.low %v3675, %v3691
      %v3695 = vcombine.high %v3675, %v3691
      %v3696 = vcombine.low %v3192, %v3199
      %v3698 = vunpack.c.l.s4 1983009808
      %v3699 = vunpack.c.0.s8 %v3698
      %v3700 = vlaneseq
      %v3701 = vshrl.u32 %v3700, 7
      %v3702 = vsub.s32 %v3699, %v3701
      %v3703 = vrot.slane %v3696, %v3702
      %v3704 = vcombine.low %v3216, %v3217
      %v3706 = vunpack.c.l.s4 1983009808
      %v3707 = vunpack.c.0.s8 %v3706
      %v3708 = vlaneseq
      %v3709 = vshrl.u32 %v3708, 7
      %v3710 = vsub.s32 %v3707, %v3709
      %v3711 = vrot.slane %v3704, %v3710
      %v3712 = vcombine.low %v3208, %v3215
      %v3714 = vunpack.c.l.s4 1983009808
      %v3715 = vunpack.c.0.s8 %v3714
      %v3716 = vlaneseq
      %v3717 = vshrl.u32 %v3716, 7
      %v3718 = vsub.s32 %v3715, %v3717
      %v3719 = vrot.slane %v3712, %v3718
      %v3720 = vcombine.low %v3218, %v3219
      %v3722 = vunpack.c.l.s4 1983009808
      %v3723 = vunpack.c.0.s8 %v3722
      %v3724 = vlaneseq
      %v3725 = vshrl.u32 %v3724, 7
      %v3726 = vsub.s32 %v3723, %v3725
      %v3727 = vrot.slane %v3720, %v3726
      %v3728 = vcombine.low %v3703, %v3711
      %v3729 = vcombine.high %v3703, %v3711
      %v3731 = vunpack.c.l.s4 1934713408
      %v3732 = vunpack.c.0.s8 %v3731
      %v3733 = vlaneseq
      %v3734 = vshrl.u32 %v3733, 7
      %v3735 = vsub.s32 %v3732, %v3734
      %v3736 = vrot.slane %v3728, %v3735
      %v3738 = vunpack.c.l.s4 1934713408
      %v3739 = vunpack.c.0.s8 %v3738
      %v3740 = vlaneseq
      %v3741 = vshrl.u32 %v3740, 7
      %v3742 = vsub.s32 %v3739, %v3741
      %v3743 = vrot.slane %v3729, %v3742
      %v3744 = vcombine.low %v3719, %v3727
      %v3745 = vcombine.high %v3719, %v3727
      %v3747 = vunpack.c.l.s4 1934713408
      %v3748 = vunpack.c.0.s8 %v3747
      %v3749 = vlaneseq
      %v3750 = vshrl.u32 %v3749, 7
      %v3751 = vsub.s32 %v3748, %v3750
      %v3752 = vrot.slane %v3744, %v3751
      %v3754 = vunpack.c.l.s4 1934713408
      %v3755 = vunpack.c.0.s8 %v3754
      %v3756 = vlaneseq
      %v3757 = vshrl.u32 %v3756, 7
      %v3758 = vsub.s32 %v3755, %v3757
      %v3759 = vrot.slane %v3745, %v3758
      %v3760 = vcombine.low %v3736, %v3752
      %v3761 = vcombine.high %v3736, %v3752
      %v3762 = vcombine.low %v3743, %v3759
      %v3763 = vcombine.high %v3743, %v3759
      %v3764 = vcombine.low %v3260, %v3267
      %v3766 = vunpack.c.l.s4 1983009808
      %v3767 = vunpack.c.0.s8 %v3766
      %v3768 = vlaneseq
      %v3769 = vshrl.u32 %v3768, 7
      %v3770 = vsub.s32 %v3767, %v3769
      %v3771 = vrot.slane %v3764, %v3770
      %v3772 = vcombine.low %v3284, %v3285
      %v3774 = vunpack.c.l.s4 1983009808
      %v3775 = vunpack.c.0.s8 %v3774
      %v3776 = vlaneseq
      %v3777 = vshrl.u32 %v3776, 7
      %v3778 = vsub.s32 %v3775, %v3777
      %v3779 = vrot.slane %v3772, %v3778
      %v3780 = vcombine.low %v3276, %v3283
      %v3782 = vunpack.c.l.s4 1983009808
      %v3783 = vunpack.c.0.s8 %v3782
      %v3784 = vlaneseq
      %v3785 = vshrl.u32 %v3784, 7
      %v3786 = vsub.s32 %v3783, %v3785
      %v3787 = vrot.slane %v3780, %v3786
      %v3788 = vcombine.low %v3286, %v3287
      %v3790 = vunpack.c.l.s4 1983009808
      %v3791 = vunpack.c.0.s8 %v3790
      %v3792 = vlaneseq
      %v3793 = vshrl.u32 %v3792, 7
      %v3794 = vsub.s32 %v3791, %v3793
      %v3795 = vrot.slane %v3788, %v3794
      %v3796 = vcombine.low %v3771, %v3779
      %v3797 = vcombine.high %v3771, %v3779
      %v3799 = vunpack.c.l.s4 1934713408
      %v3800 = vunpack.c.0.s8 %v3799
      %v3801 = vlaneseq
      %v3802 = vshrl.u32 %v3801, 7
      %v3803 = vsub.s32 %v3800, %v3802
      %v3804 = vrot.slane %v3796, %v3803
      %v3806 = vunpack.c.l.s4 1934713408
      %v3807 = vunpack.c.0.s8 %v3806
      %v3808 = vlaneseq
      %v3809 = vshrl.u32 %v3808, 7
      %v3810 = vsub.s32 %v3807, %v3809
      %v3811 = vrot.slane %v3797, %v3810
      %v3812 = vcombine.low %v3787, %v3795
      %v3813 = vcombine.high %v3787, %v3795
      %v3815 = vunpack.c.l.s4 1934713408
      %v3816 = vunpack.c.0.s8 %v3815
      %v3817 = vlaneseq
      %v3818 = vshrl.u32 %v3817, 7
      %v3819 = vsub.s32 %v3816, %v3818
      %v3820 = vrot.slane %v3812, %v3819
      %v3822 = vunpack.c.l.s4 1934713408
      %v3823 = vunpack.c.0.s8 %v3822
      %v3824 = vlaneseq
      %v3825 = vshrl.u32 %v3824, 7
      %v3826 = vsub.s32 %v3823, %v3825
      %v3827 = vrot.slane %v3813, %v3826
      %v3828 = vcombine.low %v3804, %v3820
      %v3829 = vcombine.high %v3804, %v3820
      %v3830 = vcombine.low %v3811, %v3827
      %v3831 = vcombine.high %v3811, %v3827
      %v3832 = vcombine.low %v3328, %v3335
      %v3834 = vunpack.c.l.s4 1983009808
      %v3835 = vunpack.c.0.s8 %v3834
      %v3836 = vlaneseq
      %v3837 = vshrl.u32 %v3836, 7
      %v3838 = vsub.s32 %v3835, %v3837
      %v3839 = vrot.slane %v3832, %v3838
      %v3840 = vcombine.low %v3352, %v3353
      %v3842 = vunpack.c.l.s4 1983009808
      %v3843 = vunpack.c.0.s8 %v3842
      %v3844 = vlaneseq
      %v3845 = vshrl.u32 %v3844, 7
      %v3846 = vsub.s32 %v3843, %v3845
      %v3847 = vrot.slane %v3840, %v3846
      %v3848 = vcombine.low %v3344, %v3351
      %v3850 = vunpack.c.l.s4 1983009808
      %v3851 = vunpack.c.0.s8 %v3850
      %v3852 = vlaneseq
      %v3853 = vshrl.u32 %v3852, 7
      %v3854 = vsub.s32 %v3851, %v3853
      %v3855 = vrot.slane %v3848, %v3854
      %v3856 = vcombine.low %v3354, %v3355
      %v3858 = vunpack.c.l.s4 1983009808
      %v3859 = vunpack.c.0.s8 %v3858
      %v3860 = vlaneseq
      %v3861 = vshrl.u32 %v3860, 7
      %v3862 = vsub.s32 %v3859, %v3861
      %v3863 = vrot.slane %v3856, %v3862
      %v3864 = vcombine.low %v3839, %v3847
      %v3865 = vcombine.high %v3839, %v3847
      %v3867 = vunpack.c.l.s4 1934713408
      %v3868 = vunpack.c.0.s8 %v3867
      %v3869 = vlaneseq
      %v3870 = vshrl.u32 %v3869, 7
      %v3871 = vsub.s32 %v3868, %v3870
      %v3872 = vrot.slane %v3864, %v3871
      %v3874 = vunpack.c.l.s4 1934713408
      %v3875 = vunpack.c.0.s8 %v3874
      %v3876 = vlaneseq
      %v3877 = vshrl.u32 %v3876, 7
      %v3878 = vsub.s32 %v3875, %v3877
      %v3879 = vrot.slane %v3865, %v3878
      %v3880 = vcombine.low %v3855, %v3863
      %v3881 = vcombine.high %v3855, %v3863
      %v3883 = vunpack.c.l.s4 1934713408
      %v3884 = vunpack.c.0.s8 %v3883
      %v3885 = vlaneseq
      %v3886 = vshrl.u32 %v3885, 7
      %v3887 = vsub.s32 %v3884, %v3886
      %v3888 = vrot.slane %v3880, %v3887
      %v3890 = vunpack.c.l.s4 1934713408
      %v3891 = vunpack.c.0.s8 %v3890
      %v3892 = vlaneseq
      %v3893 = vshrl.u32 %v3892, 7
      %v3894 = vsub.s32 %v3891, %v3893
      %v3895 = vrot.slane %v3881, %v3894
      %v3896 = vcombine.low %v3872, %v3888
      %v3897 = vcombine.high %v3872, %v3888
      %v3898 = vcombine.low %v3879, %v3895
      %v3899 = vcombine.high %v3879, %v3895
      %v3900 = vcombine.low %v3396, %v3403
      %v3902 = vunpack.c.l.s4 1983009808
      %v3903 = vunpack.c.0.s8 %v3902
      %v3904 = vlaneseq
      %v3905 = vshrl.u32 %v3904, 7
      %v3906 = vsub.s32 %v3903, %v3905
      %v3907 = vrot.slane %v3900, %v3906
      %v3908 = vcombine.low %v3420, %v3421
      %v3910 = vunpack.c.l.s4 1983009808
      %v3911 = vunpack.c.0.s8 %v3910
      %v3912 = vlaneseq
      %v3913 = vshrl.u32 %v3912, 7
      %v3914 = vsub.s32 %v3911, %v3913
      %v3915 = vrot.slane %v3908, %v3914
      %v3916 = vcombine.low %v3412, %v3419
      %v3918 = vunpack.c.l.s4 1983009808
      %v3919 = vunpack.c.0.s8 %v3918
      %v3920 = vlaneseq
      %v3921 = vshrl.u32 %v3920, 7
      %v3922 = vsub.s32 %v3919, %v3921
      %v3923 = vrot.slane %v3916, %v3922
      %v3924 = vcombine.low %v3422, %v3423
      %v3926 = vunpack.c.l.s4 1983009808
      %v3927 = vunpack.c.0.s8 %v3926
      %v3928 = vlaneseq
      %v3929 = vshrl.u32 %v3928, 7
      %v3930 = vsub.s32 %v3927, %v3929
      %v3931 = vrot.slane %v3924, %v3930
      %v3932 = vcombine.low %v3907, %v3915
      %v3933 = vcombine.high %v3907, %v3915
      %v3935 = vunpack.c.l.s4 1934713408
      %v3936 = vunpack.c.0.s8 %v3935
      %v3937 = vlaneseq
      %v3938 = vshrl.u32 %v3937, 7
      %v3939 = vsub.s32 %v3936, %v3938
      %v3940 = vrot.slane %v3932, %v3939
      %v3942 = vunpack.c.l.s4 1934713408
      %v3943 = vunpack.c.0.s8 %v3942
      %v3944 = vlaneseq
      %v3945 = vshrl.u32 %v3944, 7
      %v3946 = vsub.s32 %v3943, %v3945
      %v3947 = vrot.slane %v3933, %v3946
      %v3948 = vcombine.low %v3923, %v3931
      %v3949 = vcombine.high %v3923, %v3931
      %v3951 = vunpack.c.l.s4 1934713408
      %v3952 = vunpack.c.0.s8 %v3951
      %v3953 = vlaneseq
      %v3954 = vshrl.u32 %v3953, 7
      %v3955 = vsub.s32 %v3952, %v3954
      %v3956 = vrot.slane %v3948, %v3955
      %v3958 = vunpack.c.l.s4 1934713408
      %v3959 = vunpack.c.0.s8 %v3958
      %v3960 = vlaneseq
      %v3961 = vshrl.u32 %v3960, 7
      %v3962 = vsub.s32 %v3959, %v3961
      %v3963 = vrot.slane %v3949, %v3962
      %v3964 = vcombine.low %v3940, %v3956
      %v3965 = vcombine.high %v3940, %v3956
      %v3966 = vcombine.low %v3947, %v3963
      %v3967 = vcombine.high %v3947, %v3963
      %v3968 = vcombine.low %v3464, %v3471
      %v3970 = vunpack.c.l.s4 1983009808
      %v3971 = vunpack.c.0.s8 %v3970
      %v3972 = vlaneseq
      %v3973 = vshrl.u32 %v3972, 7
      %v3974 = vsub.s32 %v3971, %v3973
      %v3975 = vrot.slane %v3968, %v3974
      %v3976 = vcombine.low %v3488, %v3489
      %v3978 = vunpack.c.l.s4 1983009808
      %v3979 = vunpack.c.0.s8 %v3978
      %v3980 = vlaneseq
      %v3981 = vshrl.u32 %v3980, 7
      %v3982 = vsub.s32 %v3979, %v3981
      %v3983 = vrot.slane %v3976, %v3982
      %v3984 = vcombine.low %v3480, %v3487
      %v3986 = vunpack.c.l.s4 1983009808
      %v3987 = vunpack.c.0.s8 %v3986
      %v3988 = vlaneseq
      %v3989 = vshrl.u32 %v3988, 7
      %v3990 = vsub.s32 %v3987, %v3989
      %v3991 = vrot.slane %v3984, %v3990
      %v3992 = vcombine.low %v3490, %v3491
      %v3994 = vunpack.c.l.s4 1983009808
      %v3995 = vunpack.c.0.s8 %v3994
      %v3996 = vlaneseq
      %v3997 = vshrl.u32 %v3996, 7
      %v3998 = vsub.s32 %v3995, %v3997
      %v3999 = vrot.slane %v3992, %v3998
      %v4000 = vcombine.low %v3975, %v3983
      %v4001 = vcombine.high %v3975, %v3983
      %v4003 = vunpack.c.l.s4 1934713408
      %v4004 = vunpack.c.0.s8 %v4003
      %v4005 = vlaneseq
      %v4006 = vshrl.u32 %v4005, 7
      %v4007 = vsub.s32 %v4004, %v4006
      %v4008 = vrot.slane %v4000, %v4007
      %v4010 = vunpack.c.l.s4 1934713408
      %v4011 = vunpack.c.0.s8 %v4010
      %v4012 = vlaneseq
      %v4013 = vshrl.u32 %v4012, 7
      %v4014 = vsub.s32 %v4011, %v4013
      %v4015 = vrot.slane %v4001, %v4014
      %v4016 = vcombine.low %v3991, %v3999
      %v4017 = vcombine.high %v3991, %v3999
      %v4019 = vunpack.c.l.s4 1934713408
      %v4020 = vunpack.c.0.s8 %v4019
      %v4021 = vlaneseq
      %v4022 = vshrl.u32 %v4021, 7
      %v4023 = vsub.s32 %v4020, %v4022
      %v4024 = vrot.slane %v4016, %v4023
      %v4026 = vunpack.c.l.s4 1934713408
      %v4027 = vunpack.c.0.s8 %v4026
      %v4028 = vlaneseq
      %v4029 = vshrl.u32 %v4028, 7
      %v4030 = vsub.s32 %v4027, %v4029
      %v4031 = vrot.slane %v4017, %v4030
      %v4032 = vcombine.low %v4008, %v4024
      %v4033 = vcombine.high %v4008, %v4024
      %v4034 = vcombine.low %v4015, %v4031
      %v4035 = vcombine.high %v4015, %v4031
      %vm4036 = vcmask 64512
      %v4038 = vsel %vm4036, %v1076, 0
      %v4041 = vsel %vm4036, %v1144, 0
      %v4044 = vsel %vm4036, %v1212, 0
      %v4047 = vsel %vm4036, %v1280, 0
      %v4050 = vsel %vm4036, %v1348, 0
      %v4053 = vsel %vm4036, %v1416, 0
      %v4056 = vsel %vm4036, %v1484, 0
      %v4059 = vsel %vm4036, %v1552, 0
      %v4062 = vsel %vm4036, %v2316, 0
      %v4065 = vsel %vm4036, %v2384, 0
      %v4068 = vsel %vm4036, %v2452, 0
      %v4071 = vsel %vm4036, %v2520, 0
      %v4074 = vsel %vm4036, %v2588, 0
      %v4077 = vsel %vm4036, %v2656, 0
      %v4080 = vsel %vm4036, %v2724, 0
      %v4083 = vsel %vm4036, %v2792, 0
      %4085 = vmatprep.subr.mxu0 0.0
      %4086 = vmatpush1.xpose.msra.mxu0 0.0
      %4087 = vmatprep.subr.mxu0 0.0
      %4088 = vmatpush1.xpose.msra.mxu0 0.0
      %4089 = vmatprep.subr.mxu0 0.0
      %4090 = vmatpush1.xpose.msra.mxu0 0.0
      %4091 = vmatprep.subr.mxu0 0.0
      %4092 = vmatpush1.xpose.msra.mxu0 0.0
      %4093 = vmatprep.subr.mxu0 0.0
      %4094 = vmatpush1.xpose.msra.mxu0 0.0
      %4095 = vmatprep.subr.mxu0 0.0
      %4096 = vmatpush1.xpose.msra.mxu0 0.0
      %4097 = vmatprep.subr.mxu0 0.0
      %4098 = vmatpush1.xpose.msra.mxu0 0.0
      %4099 = vmatprep.subr.mxu0 0.0
      %4100 = vmatpush1.xpose.msra.mxu0 0.0
      %4101 = vmatprep.subr.mxu0 0.0
      %4102 = vmatpush1.xpose.msra.mxu0 %v4083
      %4103 = vmatprep.subr.mxu0 0.0
      %4104 = vmatpush1.xpose.msra.mxu0 %v4080
      %4105 = vmatprep.subr.mxu0 0.0
      %4106 = vmatpush1.xpose.msra.mxu0 %v4077
      %4107 = vmatprep.subr.mxu0 0.0
      %4108 = vmatpush1.xpose.msra.mxu0 %v4074
      %4109 = vmatprep.subr.mxu0 0.0
      %4110 = vmatpush1.xpose.msra.mxu0 %v4071
      %4111 = vmatprep.subr.mxu0 0.0
      %4112 = vmatpush1.xpose.msra.mxu0 %v4068
      %4113 = vmatprep.subr.mxu0 0.0
      %4114 = vmatpush1.xpose.msra.mxu0 %v4065
      %4115 = vmatprep.subr.mxu0 0.0
      %4116 = vmatpush1.xpose.msra.mxu0 %v4062
      %4117 = vmatprep.subr.mxu0 0.0
      %4118 = vmatpush2.xpose.msra.mxu0 0.0
      %4119 = vmatprep.subr.mxu0 0.0
      %4120 = vmatpush2.xpose.msra.mxu0 0.0
      %4121 = vmatprep.subr.mxu0 0.0
      %4122 = vmatpush2.xpose.msra.mxu0 0.0
      %4123 = vmatprep.subr.mxu0 0.0
      %4124 = vmatpush2.xpose.msra.mxu0 0.0
      %4125 = vmatprep.subr.mxu0 0.0
      %4126 = vmatpush2.xpose.msra.mxu0 0.0
      %4127 = vmatprep.subr.mxu0 0.0
      %4128 = vmatpush2.xpose.msra.mxu0 0.0
      %4129 = vmatprep.subr.mxu0 0.0
      %4130 = vmatpush2.xpose.msra.mxu0 0.0
      %4131 = vmatprep.subr.mxu0 0.0
      %4132 = vmatpush2.xpose.msra.mxu0 0.0
      %4133 = vmatprep.subr.mxu0 0.0
      %4134 = vmatpush2.xpose.msra.mxu0 0.0
      %4135 = vmatprep.subr.mxu0 0.0
      %4136 = vmatpush2.xpose.msra.mxu0 0.0
      %4137 = vmatprep.subr.mxu0 0.0
      %4138 = vmatpush2.xpose.msra.mxu0 0.0
      %4139 = vmatprep.subr.mxu0 0.0
      %4140 = vmatpush2.xpose.msra.mxu0 0.0
      %4141 = vmatprep.subr.mxu0 0.0
      %4142 = vmatpush2.xpose.msra.mxu0 0.0
      %4143 = vmatprep.subr.mxu0 0.0
      %4144 = vmatpush2.xpose.msra.mxu0 0.0
      %4145 = vmatprep.subr.mxu0 0.0
      %4146 = vmatpush2.xpose.msra.mxu0 0.0
      %4147 = vmatprep.subr.mxu0 0.0
      %4148 = vmatpush2.xpose.msra.mxu0 0.0
      %4149 = vmatprep.mubr.f32.mxu0 0.0
      %4150 = vmatmul.mubr.f32.gmra.mxu0 %v4038
      %v4151 = vpop.f32.mrf.mxu0
      %v4152 = vadd.f32 0.0, %v4151
      %v4153 = vpop.f32.mrf.mxu0
      %4154 = vmatprep.mubr.f32.mxu0 0.0
      %4155 = vmatmul.mubr.f32.gmra.mxu0 %v4041
      %v4156 = vpop.f32.mrf.mxu0
      %v4157 = vadd.f32 0.0, %v4156
      %v4158 = vpop.f32.mrf.mxu0
      %4159 = vmatprep.mubr.f32.mxu0 0.0
      %4160 = vmatmul.mubr.f32.gmra.mxu0 %v4044
      %v4161 = vpop.f32.mrf.mxu0
      %v4162 = vadd.f32 0.0, %v4161
      %v4163 = vpop.f32.mrf.mxu0
      %4164 = vmatprep.mubr.f32.mxu0 0.0
      %4165 = vmatmul.mubr.f32.gmra.mxu0 %v4047
      %v4166 = vpop.f32.mrf.mxu0
      %v4167 = vadd.f32 0.0, %v4166
      %v4168 = vpop.f32.mrf.mxu0
      %4169 = vmatprep.mubr.f32.mxu0 0.0
      %4170 = vmatmul.mubr.f32.gmra.mxu0 %v4050
      %v4171 = vpop.f32.mrf.mxu0
      %v4172 = vadd.f32 0.0, %v4171
      %v4173 = vpop.f32.mrf.mxu0
      %4174 = vmatprep.mubr.f32.mxu0 0.0
      %4175 = vmatmul.mubr.f32.gmra.mxu0 %v4053
      %v4176 = vpop.f32.mrf.mxu0
      %v4177 = vadd.f32 0.0, %v4176
      %v4178 = vpop.f32.mrf.mxu0
      %4179 = vmatprep.mubr.f32.mxu0 0.0
      %4180 = vmatmul.mubr.f32.gmra.mxu0 %v4056
      %v4181 = vpop.f32.mrf.mxu0
      %v4182 = vadd.f32 0.0, %v4181
      %v4183 = vpop.f32.mrf.mxu0
      %4184 = vmatprep.mubr.f32.mxu0 0.0
      %4185 = vmatmul.mubr.f32.gmra.mxu0 %v4059
      %v4186 = vpop.f32.mrf.mxu0
      %v4187 = vadd.f32 0.0, %v4186
      %v4188 = vpop.f32.mrf.mxu0
      %4189 = vdwg.mxu0
      %v4191 = vsel %vm4036, %v1077, 0
      %v4194 = vsel %vm4036, %v1145, 0
      %v4197 = vsel %vm4036, %v1213, 0
      %v4200 = vsel %vm4036, %v1281, 0
      %v4203 = vsel %vm4036, %v1349, 0
      %v4206 = vsel %vm4036, %v1417, 0
      %v4209 = vsel %vm4036, %v1485, 0
      %v4212 = vsel %vm4036, %v1553, 0
      %v4215 = vsel %vm4036, %v2317, 0
      %v4218 = vsel %vm4036, %v2385, 0
      %v4221 = vsel %vm4036, %v2453, 0
      %v4224 = vsel %vm4036, %v2521, 0
      %v4227 = vsel %vm4036, %v2589, 0
      %v4230 = vsel %vm4036, %v2657, 0
      %v4233 = vsel %vm4036, %v2725, 0
      %v4236 = vsel %vm4036, %v2793, 0
      %4238 = vmatprep.subr.mxu0 0.0
      %4239 = vmatpush1.xpose.msra.mxu0 0.0
      %4240 = vmatprep.subr.mxu0 0.0
      %4241 = vmatpush1.xpose.msra.mxu0 0.0
      %4242 = vmatprep.subr.mxu0 0.0
      %4243 = vmatpush1.xpose.msra.mxu0 0.0
      %4244 = vmatprep.subr.mxu0 0.0
      %4245 = vmatpush1.xpose.msra.mxu0 0.0
      %4246 = vmatprep.subr.mxu0 0.0
      %4247 = vmatpush1.xpose.msra.mxu0 0.0
      %4248 = vmatprep.subr.mxu0 0.0
      %4249 = vmatpush1.xpose.msra.mxu0 0.0
      %4250 = vmatprep.subr.mxu0 0.0
      %4251 = vmatpush1.xpose.msra.mxu0 0.0
      %4252 = vmatprep.subr.mxu0 0.0
      %4253 = vmatpush1.xpose.msra.mxu0 0.0
      %4254 = vmatprep.subr.mxu0 0.0
      %4255 = vmatpush1.xpose.msra.mxu0 %v4236
      %4256 = vmatprep.subr.mxu0 0.0
      %4257 = vmatpush1.xpose.msra.mxu0 %v4233
      %4258 = vmatprep.subr.mxu0 0.0
      %4259 = vmatpush1.xpose.msra.mxu0 %v4230
      %4260 = vmatprep.subr.mxu0 0.0
      %4261 = vmatpush1.xpose.msra.mxu0 %v4227
      %4262 = vmatprep.subr.mxu0 0.0
      %4263 = vmatpush1.xpose.msra.mxu0 %v4224
      %4264 = vmatprep.subr.mxu0 0.0
      %4265 = vmatpush1.xpose.msra.mxu0 %v4221
      %4266 = vmatprep.subr.mxu0 0.0
      %4267 = vmatpush1.xpose.msra.mxu0 %v4218
      %4268 = vmatprep.subr.mxu0 0.0
      %4269 = vmatpush1.xpose.msra.mxu0 %v4215
      %4270 = vmatprep.subr.mxu0 0.0
      %4271 = vmatpush2.xpose.msra.mxu0 0.0
      %4272 = vmatprep.subr.mxu0 0.0
      %4273 = vmatpush2.xpose.msra.mxu0 0.0
      %4274 = vmatprep.subr.mxu0 0.0
      %4275 = vmatpush2.xpose.msra.mxu0 0.0
      %4276 = vmatprep.subr.mxu0 0.0
      %4277 = vmatpush2.xpose.msra.mxu0 0.0
      %4278 = vmatprep.subr.mxu0 0.0
      %4279 = vmatpush2.xpose.msra.mxu0 0.0
      %4280 = vmatprep.subr.mxu0 0.0
      %4281 = vmatpush2.xpose.msra.mxu0 0.0
      %4282 = vmatprep.subr.mxu0 0.0
      %4283 = vmatpush2.xpose.msra.mxu0 0.0
      %4284 = vmatprep.subr.mxu0 0.0
      %4285 = vmatpush2.xpose.msra.mxu0 0.0
      %4286 = vmatprep.subr.mxu0 0.0
      %4287 = vmatpush2.xpose.msra.mxu0 0.0
      %4288 = vmatprep.subr.mxu0 0.0
      %4289 = vmatpush2.xpose.msra.mxu0 0.0
      %4290 = vmatprep.subr.mxu0 0.0
      %4291 = vmatpush2.xpose.msra.mxu0 0.0
      %4292 = vmatprep.subr.mxu0 0.0
      %4293 = vmatpush2.xpose.msra.mxu0 0.0
      %4294 = vmatprep.subr.mxu0 0.0
      %4295 = vmatpush2.xpose.msra.mxu0 0.0
      %4296 = vmatprep.subr.mxu0 0.0
      %4297 = vmatpush2.xpose.msra.mxu0 0.0
      %4298 = vmatprep.subr.mxu0 0.0
      %4299 = vmatpush2.xpose.msra.mxu0 0.0
      %4300 = vmatprep.subr.mxu0 0.0
      %4301 = vmatpush2.xpose.msra.mxu0 0.0
      %4302 = vmatprep.mubr.f32.mxu0 0.0
      %4303 = vmatmul.mubr.f32.gmra.mxu0 %v4191
      %v4304 = vpop.f32.mrf.mxu0
      %v4305 = vadd.f32 0.0, %v4304
      %v4306 = vpop.f32.mrf.mxu0
      %4307 = vmatprep.mubr.f32.mxu0 0.0
      %4308 = vmatmul.mubr.f32.gmra.mxu0 %v4194
      %v4309 = vpop.f32.mrf.mxu0
      %v4310 = vadd.f32 0.0, %v4309
      %v4311 = vpop.f32.mrf.mxu0
      %4312 = vmatprep.mubr.f32.mxu0 0.0
      %4313 = vmatmul.mubr.f32.gmra.mxu0 %v4197
      %v4314 = vpop.f32.mrf.mxu0
      %v4315 = vadd.f32 0.0, %v4314
      %v4316 = vpop.f32.mrf.mxu0
      %4317 = vmatprep.mubr.f32.mxu0 0.0
      %4318 = vmatmul.mubr.f32.gmra.mxu0 %v4200
      %v4319 = vpop.f32.mrf.mxu0
      %v4320 = vadd.f32 0.0, %v4319
      %v4321 = vpop.f32.mrf.mxu0
      %4322 = vmatprep.mubr.f32.mxu0 0.0
      %4323 = vmatmul.mubr.f32.gmra.mxu0 %v4203
      %v4324 = vpop.f32.mrf.mxu0
      %v4325 = vadd.f32 0.0, %v4324
      %v4326 = vpop.f32.mrf.mxu0
      %4327 = vmatprep.mubr.f32.mxu0 0.0
      %4328 = vmatmul.mubr.f32.gmra.mxu0 %v4206
      %v4329 = vpop.f32.mrf.mxu0
      %v4330 = vadd.f32 0.0, %v4329
      %v4331 = vpop.f32.mrf.mxu0
      %4332 = vmatprep.mubr.f32.mxu0 0.0
      %4333 = vmatmul.mubr.f32.gmra.mxu0 %v4209
      %v4334 = vpop.f32.mrf.mxu0
      %v4335 = vadd.f32 0.0, %v4334
      %v4336 = vpop.f32.mrf.mxu0
      %4337 = vmatprep.mubr.f32.mxu0 0.0
      %4338 = vmatmul.mubr.f32.gmra.mxu0 %v4212
      %v4339 = vpop.f32.mrf.mxu0
      %v4340 = vadd.f32 0.0, %v4339
      %v4341 = vpop.f32.mrf.mxu0
      %4342 = vdwg.mxu0
      %v4344 = vsel %vm4036, %v1078, 0
      %v4347 = vsel %vm4036, %v1146, 0
      %v4350 = vsel %vm4036, %v1214, 0
      %v4353 = vsel %vm4036, %v1282, 0
      %v4356 = vsel %vm4036, %v1350, 0
      %v4359 = vsel %vm4036, %v1418, 0
      %v4362 = vsel %vm4036, %v1486, 0
      %v4365 = vsel %vm4036, %v1554, 0
      %v4368 = vsel %vm4036, %v2318, 0
      %v4371 = vsel %vm4036, %v2386, 0
      %v4374 = vsel %vm4036, %v2454, 0
      %v4377 = vsel %vm4036, %v2522, 0
      %v4380 = vsel %vm4036, %v2590, 0
      %v4383 = vsel %vm4036, %v2658, 0
      %v4386 = vsel %vm4036, %v2726, 0
      %v4389 = vsel %vm4036, %v2794, 0
      %4391 = vmatprep.subr.mxu0 0.0
      %4392 = vmatpush1.xpose.msra.mxu0 0.0
      %4393 = vmatprep.subr.mxu0 0.0
      %4394 = vmatpush1.xpose.msra.mxu0 0.0
      %4395 = vmatprep.subr.mxu0 0.0
      %4396 = vmatpush1.xpose.msra.mxu0 0.0
      %4397 = vmatprep.subr.mxu0 0.0
      %4398 = vmatpush1.xpose.msra.mxu0 0.0
      %4399 = vmatprep.subr.mxu0 0.0
      %4400 = vmatpush1.xpose.msra.mxu0 0.0
      %4401 = vmatprep.subr.mxu0 0.0
      %4402 = vmatpush1.xpose.msra.mxu0 0.0
      %4403 = vmatprep.subr.mxu0 0.0
      %4404 = vmatpush1.xpose.msra.mxu0 0.0
      %4405 = vmatprep.subr.mxu0 0.0
      %4406 = vmatpush1.xpose.msra.mxu0 0.0
      %4407 = vmatprep.subr.mxu0 0.0
      %4408 = vmatpush1.xpose.msra.mxu0 %v4389
      %4409 = vmatprep.subr.mxu0 0.0
      %4410 = vmatpush1.xpose.msra.mxu0 %v4386
      %4411 = vmatprep.subr.mxu0 0.0
      %4412 = vmatpush1.xpose.msra.mxu0 %v4383
      %4413 = vmatprep.subr.mxu0 0.0
      %4414 = vmatpush1.xpose.msra.mxu0 %v4380
      %4415 = vmatprep.subr.mxu0 0.0
      %4416 = vmatpush1.xpose.msra.mxu0 %v4377
      %4417 = vmatprep.subr.mxu0 0.0
      %4418 = vmatpush1.xpose.msra.mxu0 %v4374
      %4419 = vmatprep.subr.mxu0 0.0
      %4420 = vmatpush1.xpose.msra.mxu0 %v4371
      %4421 = vmatprep.subr.mxu0 0.0
      %4422 = vmatpush1.xpose.msra.mxu0 %v4368
      %4423 = vmatprep.subr.mxu0 0.0
      %4424 = vmatpush2.xpose.msra.mxu0 0.0
      %4425 = vmatprep.subr.mxu0 0.0
      %4426 = vmatpush2.xpose.msra.mxu0 0.0
      %4427 = vmatprep.subr.mxu0 0.0
      %4428 = vmatpush2.xpose.msra.mxu0 0.0
      %4429 = vmatprep.subr.mxu0 0.0
      %4430 = vmatpush2.xpose.msra.mxu0 0.0
      %4431 = vmatprep.subr.mxu0 0.0
      %4432 = vmatpush2.xpose.msra.mxu0 0.0
      %4433 = vmatprep.subr.mxu0 0.0
      %4434 = vmatpush2.xpose.msra.mxu0 0.0
      %4435 = vmatprep.subr.mxu0 0.0
      %4436 = vmatpush2.xpose.msra.mxu0 0.0
      %4437 = vmatprep.subr.mxu0 0.0
      %4438 = vmatpush2.xpose.msra.mxu0 0.0
      %4439 = vmatprep.subr.mxu0 0.0
      %4440 = vmatpush2.xpose.msra.mxu0 0.0
      %4441 = vmatprep.subr.mxu0 0.0
      %4442 = vmatpush2.xpose.msra.mxu0 0.0
      %4443 = vmatprep.subr.mxu0 0.0
      %4444 = vmatpush2.xpose.msra.mxu0 0.0
      %4445 = vmatprep.subr.mxu0 0.0
      %4446 = vmatpush2.xpose.msra.mxu0 0.0
      %4447 = vmatprep.subr.mxu0 0.0
      %4448 = vmatpush2.xpose.msra.mxu0 0.0
      %4449 = vmatprep.subr.mxu0 0.0
      %4450 = vmatpush2.xpose.msra.mxu0 0.0
      %4451 = vmatprep.subr.mxu0 0.0
      %4452 = vmatpush2.xpose.msra.mxu0 0.0
      %4453 = vmatprep.subr.mxu0 0.0
      %4454 = vmatpush2.xpose.msra.mxu0 0.0
      %4455 = vmatprep.mubr.f32.mxu0 0.0
      %4456 = vmatmul.mubr.f32.gmra.mxu0 %v4344
      %v4457 = vpop.f32.mrf.mxu0
      %v4458 = vadd.f32 0.0, %v4457
      %v4459 = vpop.f32.mrf.mxu0
      %4460 = vmatprep.mubr.f32.mxu0 0.0
      %4461 = vmatmul.mubr.f32.gmra.mxu0 %v4347
      %v4462 = vpop.f32.mrf.mxu0
      %v4463 = vadd.f32 0.0, %v4462
      %v4464 = vpop.f32.mrf.mxu0
      %4465 = vmatprep.mubr.f32.mxu0 0.0
      %4466 = vmatmul.mubr.f32.gmra.mxu0 %v4350
      %v4467 = vpop.f32.mrf.mxu0
      %v4468 = vadd.f32 0.0, %v4467
      %v4469 = vpop.f32.mrf.mxu0
      %4470 = vmatprep.mubr.f32.mxu0 0.0
      %4471 = vmatmul.mubr.f32.gmra.mxu0 %v4353
      %v4472 = vpop.f32.mrf.mxu0
      %v4473 = vadd.f32 0.0, %v4472
      %v4474 = vpop.f32.mrf.mxu0
      %4475 = vmatprep.mubr.f32.mxu0 0.0
      %4476 = vmatmul.mubr.f32.gmra.mxu0 %v4356
      %v4477 = vpop.f32.mrf.mxu0
      %v4478 = vadd.f32 0.0, %v4477
      %v4479 = vpop.f32.mrf.mxu0
      %4480 = vmatprep.mubr.f32.mxu0 0.0
      %4481 = vmatmul.mubr.f32.gmra.mxu0 %v4359
      %v4482 = vpop.f32.mrf.mxu0
      %v4483 = vadd.f32 0.0, %v4482
      %v4484 = vpop.f32.mrf.mxu0
      %4485 = vmatprep.mubr.f32.mxu0 0.0
      %4486 = vmatmul.mubr.f32.gmra.mxu0 %v4362
      %v4487 = vpop.f32.mrf.mxu0
      %v4488 = vadd.f32 0.0, %v4487
      %v4489 = vpop.f32.mrf.mxu0
      %4490 = vmatprep.mubr.f32.mxu0 0.0
      %4491 = vmatmul.mubr.f32.gmra.mxu0 %v4365
      %v4492 = vpop.f32.mrf.mxu0
      %v4493 = vadd.f32 0.0, %v4492
      %v4494 = vpop.f32.mrf.mxu0
      %4495 = vdwg.mxu0
      %v4497 = vsel %vm4036, %v1079, 0
      %v4500 = vsel %vm4036, %v1147, 0
      %v4503 = vsel %vm4036, %v1215, 0
      %v4506 = vsel %vm4036, %v1283, 0
      %v4509 = vsel %vm4036, %v1351, 0
      %v4512 = vsel %vm4036, %v1419, 0
      %v4515 = vsel %vm4036, %v1487, 0
      %v4518 = vsel %vm4036, %v1555, 0
      %v4521 = vsel %vm4036, %v2319, 0
      %v4524 = vsel %vm4036, %v2387, 0
      %v4527 = vsel %vm4036, %v2455, 0
      %v4530 = vsel %vm4036, %v2523, 0
      %v4533 = vsel %vm4036, %v2591, 0
      %v4536 = vsel %vm4036, %v2659, 0
      %v4539 = vsel %vm4036, %v2727, 0
      %v4542 = vsel %vm4036, %v2795, 0
      %4544 = vmatprep.subr.mxu0 0.0
      %4545 = vmatpush1.xpose.msra.mxu0 0.0
      %4546 = vmatprep.subr.mxu0 0.0
      %4547 = vmatpush1.xpose.msra.mxu0 0.0
      %4548 = vmatprep.subr.mxu0 0.0
      %4549 = vmatpush1.xpose.msra.mxu0 0.0
      %4550 = vmatprep.subr.mxu0 0.0
      %4551 = vmatpush1.xpose.msra.mxu0 0.0
      %4552 = vmatprep.subr.mxu0 0.0
      %4553 = vmatpush1.xpose.msra.mxu0 0.0
      %4554 = vmatprep.subr.mxu0 0.0
      %4555 = vmatpush1.xpose.msra.mxu0 0.0
      %4556 = vmatprep.subr.mxu0 0.0
      %4557 = vmatpush1.xpose.msra.mxu0 0.0
      %4558 = vmatprep.subr.mxu0 0.0
      %4559 = vmatpush1.xpose.msra.mxu0 0.0
      %4560 = vmatprep.subr.mxu0 0.0
      %4561 = vmatpush1.xpose.msra.mxu0 %v4542
      %4562 = vmatprep.subr.mxu0 0.0
      %4563 = vmatpush1.xpose.msra.mxu0 %v4539
      %4564 = vmatprep.subr.mxu0 0.0
      %4565 = vmatpush1.xpose.msra.mxu0 %v4536
      %4566 = vmatprep.subr.mxu0 0.0
      %4567 = vmatpush1.xpose.msra.mxu0 %v4533
      %4568 = vmatprep.subr.mxu0 0.0
      %4569 = vmatpush1.xpose.msra.mxu0 %v4530
      %4570 = vmatprep.subr.mxu0 0.0
      %4571 = vmatpush1.xpose.msra.mxu0 %v4527
      %4572 = vmatprep.subr.mxu0 0.0
      %4573 = vmatpush1.xpose.msra.mxu0 %v4524
      %4574 = vmatprep.subr.mxu0 0.0
      %4575 = vmatpush1.xpose.msra.mxu0 %v4521
      %4576 = vmatprep.subr.mxu0 0.0
      %4577 = vmatpush2.xpose.msra.mxu0 0.0
      %4578 = vmatprep.subr.mxu0 0.0
      %4579 = vmatpush2.xpose.msra.mxu0 0.0
      %4580 = vmatprep.subr.mxu0 0.0
      %4581 = vmatpush2.xpose.msra.mxu0 0.0
      %4582 = vmatprep.subr.mxu0 0.0
      %4583 = vmatpush2.xpose.msra.mxu0 0.0
      %4584 = vmatprep.subr.mxu0 0.0
      %4585 = vmatpush2.xpose.msra.mxu0 0.0
      %4586 = vmatprep.subr.mxu0 0.0
      %4587 = vmatpush2.xpose.msra.mxu0 0.0
      %4588 = vmatprep.subr.mxu0 0.0
      %4589 = vmatpush2.xpose.msra.mxu0 0.0
      %4590 = vmatprep.subr.mxu0 0.0
      %4591 = vmatpush2.xpose.msra.mxu0 0.0
      %4592 = vmatprep.subr.mxu0 0.0
      %4593 = vmatpush2.xpose.msra.mxu0 0.0
      %4594 = vmatprep.subr.mxu0 0.0
      %4595 = vmatpush2.xpose.msra.mxu0 0.0
      %4596 = vmatprep.subr.mxu0 0.0
      %4597 = vmatpush2.xpose.msra.mxu0 0.0
      %4598 = vmatprep.subr.mxu0 0.0
      %4599 = vmatpush2.xpose.msra.mxu0 0.0
      %4600 = vmatprep.subr.mxu0 0.0
      %4601 = vmatpush2.xpose.msra.mxu0 0.0
      %4602 = vmatprep.subr.mxu0 0.0
      %4603 = vmatpush2.xpose.msra.mxu0 0.0
      %4604 = vmatprep.subr.mxu0 0.0
      %4605 = vmatpush2.xpose.msra.mxu0 0.0
      %4606 = vmatprep.subr.mxu0 0.0
      %4607 = vmatpush2.xpose.msra.mxu0 0.0
      %4608 = vmatprep.mubr.f32.mxu0 0.0
      %4609 = vmatmul.mubr.f32.gmra.mxu0 %v4497
      %v4610 = vpop.f32.mrf.mxu0
      %v4611 = vadd.f32 0.0, %v4610
      %v4612 = vpop.f32.mrf.mxu0
      %4613 = vmatprep.mubr.f32.mxu0 0.0
      %4614 = vmatmul.mubr.f32.gmra.mxu0 %v4500
      %v4615 = vpop.f32.mrf.mxu0
      %v4616 = vadd.f32 0.0, %v4615
      %v4617 = vpop.f32.mrf.mxu0
      %4618 = vmatprep.mubr.f32.mxu0 0.0
      %4619 = vmatmul.mubr.f32.gmra.mxu0 %v4503
      %v4620 = vpop.f32.mrf.mxu0
      %v4621 = vadd.f32 0.0, %v4620
      %v4622 = vpop.f32.mrf.mxu0
      %4623 = vmatprep.mubr.f32.mxu0 0.0
      %4624 = vmatmul.mubr.f32.gmra.mxu0 %v4506
      %v4625 = vpop.f32.mrf.mxu0
      %v4626 = vadd.f32 0.0, %v4625
      %v4627 = vpop.f32.mrf.mxu0
      %4628 = vmatprep.mubr.f32.mxu0 0.0
      %4629 = vmatmul.mubr.f32.gmra.mxu0 %v4509
      %v4630 = vpop.f32.mrf.mxu0
      %v4631 = vadd.f32 0.0, %v4630
      %v4632 = vpop.f32.mrf.mxu0
      %4633 = vmatprep.mubr.f32.mxu0 0.0
      %4634 = vmatmul.mubr.f32.gmra.mxu0 %v4512
      %v4635 = vpop.f32.mrf.mxu0
      %v4636 = vadd.f32 0.0, %v4635
      %v4637 = vpop.f32.mrf.mxu0
      %4638 = vmatprep.mubr.f32.mxu0 0.0
      %4639 = vmatmul.mubr.f32.gmra.mxu0 %v4515
      %v4640 = vpop.f32.mrf.mxu0
      %v4641 = vadd.f32 0.0, %v4640
      %v4642 = vpop.f32.mrf.mxu0
      %4643 = vmatprep.mubr.f32.mxu0 0.0
      %4644 = vmatmul.mubr.f32.gmra.mxu0 %v4518
      %v4645 = vpop.f32.mrf.mxu0
      %v4646 = vadd.f32 0.0, %v4645
      %v4647 = vpop.f32.mrf.mxu0
      %4648 = vdwg.mxu0
      %vm4649 = vcmask 523264
      %v4650 = vsel %vm4649, %v4152, -inf
      %4651 = vmax.xlane.f32.xlu0 %v4650
      %v4652 = vpop.xlane.xlu0 %4651
      %v4653 = vsel %vm4649, %v4157, -inf
      %4654 = vmax.xlane.f32.xlu0 %v4653
      %v4655 = vpop.xlane.xlu0 %4654
      %v4656 = vsel %vm4649, %v4162, -inf
      %4657 = vmax.xlane.f32.xlu0 %v4656
      %v4658 = vpop.xlane.xlu0 %4657
      %v4659 = vsel %vm4649, %v4167, -inf
      %4660 = vmax.xlane.f32.xlu0 %v4659
      %v4661 = vpop.xlane.xlu0 %4660
      %v4662 = vsel %vm4649, %v4172, -inf
      %4663 = vmax.xlane.f32.xlu0 %v4662
      %v4664 = vpop.xlane.xlu0 %4663
      %v4665 = vsel %vm4649, %v4177, -inf
      %4666 = vmax.xlane.f32.xlu0 %v4665
      %v4667 = vpop.xlane.xlu0 %4666
      %v4668 = vsel %vm4649, %v4182, -inf
      %4669 = vmax.xlane.f32.xlu0 %v4668
      %v4670 = vpop.xlane.xlu0 %4669
      %v4671 = vsel %vm4649, %v4187, -inf
      %4672 = vmax.xlane.f32.xlu0 %v4671
      %v4673 = vpop.xlane.xlu0 %4672
      %v4674 = vsel %vm4649, %v4305, -inf
      %4675 = vmax.xlane.f32.xlu0 %v4674
      %v4676 = vpop.xlane.xlu0 %4675
      %v4677 = vsel %vm4649, %v4310, -inf
      %4678 = vmax.xlane.f32.xlu0 %v4677
      %v4679 = vpop.xlane.xlu0 %4678
      %v4680 = vsel %vm4649, %v4315, -inf
      %4681 = vmax.xlane.f32.xlu0 %v4680
      %v4682 = vpop.xlane.xlu0 %4681
      %v4683 = vsel %vm4649, %v4320, -inf
      %4684 = vmax.xlane.f32.xlu0 %v4683
      %v4685 = vpop.xlane.xlu0 %4684
      %v4686 = vsel %vm4649, %v4325, -inf
      %4687 = vmax.xlane.f32.xlu0 %v4686
      %v4688 = vpop.xlane.xlu0 %4687
      %v4689 = vsel %vm4649, %v4330, -inf
      %4690 = vmax.xlane.f32.xlu0 %v4689
      %v4691 = vpop.xlane.xlu0 %4690
      %v4692 = vsel %vm4649, %v4335, -inf
      %4693 = vmax.xlane.f32.xlu0 %v4692
      %v4694 = vpop.xlane.xlu0 %4693
      %v4695 = vsel %vm4649, %v4340, -inf
      %4696 = vmax.xlane.f32.xlu0 %v4695
      %v4697 = vpop.xlane.xlu0 %4696
      %v4698 = vsel %vm4649, %v4458, -inf
      %4699 = vmax.xlane.f32.xlu0 %v4698
      %v4700 = vpop.xlane.xlu0 %4699
      %v4701 = vsel %vm4649, %v4463, -inf
      %4702 = vmax.xlane.f32.xlu0 %v4701
      %v4703 = vpop.xlane.xlu0 %4702
      %v4704 = vsel %vm4649, %v4468, -inf
      %4705 = vmax.xlane.f32.xlu0 %v4704
      %v4706 = vpop.xlane.xlu0 %4705
      %v4707 = vsel %vm4649, %v4473, -inf
      %4708 = vmax.xlane.f32.xlu0 %v4707
      %v4709 = vpop.xlane.xlu0 %4708
      %v4710 = vsel %vm4649, %v4478, -inf
      %4711 = vmax.xlane.f32.xlu0 %v4710
      %v4712 = vpop.xlane.xlu0 %4711
      %v4713 = vsel %vm4649, %v4483, -inf
      %4714 = vmax.xlane.f32.xlu0 %v4713
      %v4715 = vpop.xlane.xlu0 %4714
      %v4716 = vsel %vm4649, %v4488, -inf
      %4717 = vmax.xlane.f32.xlu0 %v4716
      %v4718 = vpop.xlane.xlu0 %4717
      %v4719 = vsel %vm4649, %v4493, -inf
      %4720 = vmax.xlane.f32.xlu0 %v4719
      %v4721 = vpop.xlane.xlu0 %4720
      %v4722 = vsel %vm4649, %v4611, -inf
      %4723 = vmax.xlane.f32.xlu0 %v4722
      %v4724 = vpop.xlane.xlu0 %4723
      %v4725 = vsel %vm4649, %v4616, -inf
      %4726 = vmax.xlane.f32.xlu0 %v4725
      %v4727 = vpop.xlane.xlu0 %4726
      %v4728 = vsel %vm4649, %v4621, -inf
      %4729 = vmax.xlane.f32.xlu0 %v4728
      %v4730 = vpop.xlane.xlu0 %4729
      %v4731 = vsel %vm4649, %v4626, -inf
      %4732 = vmax.xlane.f32.xlu0 %v4731
      %v4733 = vpop.xlane.xlu0 %4732
      %v4734 = vsel %vm4649, %v4631, -inf
      %4735 = vmax.xlane.f32.xlu0 %v4734
      %v4736 = vpop.xlane.xlu0 %4735
      %v4737 = vsel %vm4649, %v4636, -inf
      %4738 = vmax.xlane.f32.xlu0 %v4737
      %v4739 = vpop.xlane.xlu0 %4738
      %v4740 = vsel %vm4649, %v4641, -inf
      %4741 = vmax.xlane.f32.xlu0 %v4740
      %v4742 = vpop.xlane.xlu0 %4741
      %v4743 = vsel %vm4649, %v4646, -inf
      %4744 = vmax.xlane.f32.xlu0 %v4743
      %v4745 = vpop.xlane.xlu0 %4744
      %v4746 = vsub.f32 %v4152, %v4652
      %v4747 = vsub.f32 %v4157, %v4655
      %v4748 = vsub.f32 %v4162, %v4658
      %v4749 = vsub.f32 %v4167, %v4661
      %v4750 = vsub.f32 %v4172, %v4664
      %v4751 = vsub.f32 %v4177, %v4667
      %v4752 = vsub.f32 %v4182, %v4670
      %v4753 = vsub.f32 %v4187, %v4673
      %v4754 = vsub.f32 %v4305, %v4676
      %v4755 = vsub.f32 %v4310, %v4679
      %v4756 = vsub.f32 %v4315, %v4682
      %v4757 = vsub.f32 %v4320, %v4685
      %v4758 = vsub.f32 %v4325, %v4688
      %v4759 = vsub.f32 %v4330, %v4691
      %v4760 = vsub.f32 %v4335, %v4694
      %v4761 = vsub.f32 %v4340, %v4697
      %v4762 = vsub.f32 %v4458, %v4700
      %v4763 = vsub.f32 %v4463, %v4703
      %v4764 = vsub.f32 %v4468, %v4706
      %v4765 = vsub.f32 %v4473, %v4709
      %v4766 = vsub.f32 %v4478, %v4712
      %v4767 = vsub.f32 %v4483, %v4715
      %v4768 = vsub.f32 %v4488, %v4718
      %v4769 = vsub.f32 %v4493, %v4721
      %v4770 = vsub.f32 %v4611, %v4724
      %v4771 = vsub.f32 %v4616, %v4727
      %v4772 = vsub.f32 %v4621, %v4730
      %v4773 = vsub.f32 %v4626, %v4733
      %v4774 = vsub.f32 %v4631, %v4736
      %v4775 = vsub.f32 %v4636, %v4739
      %v4776 = vsub.f32 %v4641, %v4742
      %v4777 = vsub.f32 %v4646, %v4745
      %v4778 = vmul.f32 %v4746, 1.442695
      %v4779 = vpow.pop %v4778
      %v4780 = vmul.f32 %v4747, 1.442695
      %v4781 = vpow.pop %v4780
      %v4782 = vmul.f32 %v4748, 1.442695
      %v4783 = vpow.pop %v4782
      %v4784 = vmul.f32 %v4749, 1.442695
      %v4785 = vpow.pop %v4784
      %v4786 = vmul.f32 %v4750, 1.442695
      %v4787 = vpow.pop %v4786
      %v4788 = vmul.f32 %v4751, 1.442695
      %v4789 = vpow.pop %v4788
      %v4790 = vmul.f32 %v4752, 1.442695
      %v4791 = vpow.pop %v4790
      %v4792 = vmul.f32 %v4753, 1.442695
      %v4793 = vpow.pop %v4792
      %v4794 = vmul.f32 %v4754, 1.442695
      %v4795 = vpow.pop %v4794
      %v4796 = vmul.f32 %v4755, 1.442695
      %v4797 = vpow.pop %v4796
      %v4798 = vmul.f32 %v4756, 1.442695
      %v4799 = vpow.pop %v4798
      %v4800 = vmul.f32 %v4757, 1.442695
      %v4801 = vpow.pop %v4800
      %v4802 = vmul.f32 %v4758, 1.442695
      %v4803 = vpow.pop %v4802
      %v4804 = vmul.f32 %v4759, 1.442695
      %v4805 = vpow.pop %v4804
      %v4806 = vmul.f32 %v4760, 1.442695
      %v4807 = vpow.pop %v4806
      %v4808 = vmul.f32 %v4761, 1.442695
      %v4809 = vpow.pop %v4808
      %v4810 = vmul.f32 %v4762, 1.442695
      %v4811 = vpow.pop %v4810
      %v4812 = vmul.f32 %v4763, 1.442695
      %v4813 = vpow.pop %v4812
      %v4814 = vmul.f32 %v4764, 1.442695
      %v4815 = vpow.pop %v4814
      %v4816 = vmul.f32 %v4765, 1.442695
      %v4817 = vpow.pop %v4816
      %v4818 = vmul.f32 %v4766, 1.442695
      %v4819 = vpow.pop %v4818
      %v4820 = vmul.f32 %v4767, 1.442695
      %v4821 = vpow.pop %v4820
      %v4822 = vmul.f32 %v4768, 1.442695
      %v4823 = vpow.pop %v4822
      %v4824 = vmul.f32 %v4769, 1.442695
      %v4825 = vpow.pop %v4824
      %v4826 = vmul.f32 %v4770, 1.442695
      %v4827 = vpow.pop %v4826
      %v4828 = vmul.f32 %v4771, 1.442695
      %v4829 = vpow.pop %v4828
      %v4830 = vmul.f32 %v4772, 1.442695
      %v4831 = vpow.pop %v4830
      %v4832 = vmul.f32 %v4773, 1.442695
      %v4833 = vpow.pop %v4832
      %v4834 = vmul.f32 %v4774, 1.442695
      %v4835 = vpow.pop %v4834
      %v4836 = vmul.f32 %v4775, 1.442695
      %v4837 = vpow.pop %v4836
      %v4838 = vmul.f32 %v4776, 1.442695
      %v4839 = vpow.pop %v4838
      %v4840 = vmul.f32 %v4777, 1.442695
      %v4841 = vpow.pop %v4840
      %v4842 = vsel %vm4649, %v4779, 0.0
      %4843 = vadd.xlane.f32.xlu0 %v4842
      %v4844 = vpop.xlane.xlu0 %4843
      %v4845 = vsel %vm4649, %v4781, 0.0
      %4846 = vadd.xlane.f32.xlu0 %v4845
      %v4847 = vpop.xlane.xlu0 %4846
      %v4848 = vsel %vm4649, %v4783, 0.0
      %4849 = vadd.xlane.f32.xlu0 %v4848
      %v4850 = vpop.xlane.xlu0 %4849
      %v4851 = vsel %vm4649, %v4785, 0.0
      %4852 = vadd.xlane.f32.xlu0 %v4851
      %v4853 = vpop.xlane.xlu0 %4852
      %v4854 = vsel %vm4649, %v4787, 0.0
      %4855 = vadd.xlane.f32.xlu0 %v4854
      %v4856 = vpop.xlane.xlu0 %4855
      %v4857 = vsel %vm4649, %v4789, 0.0
      %4858 = vadd.xlane.f32.xlu0 %v4857
      %v4859 = vpop.xlane.xlu0 %4858
      %v4860 = vsel %vm4649, %v4791, 0.0
      %4861 = vadd.xlane.f32.xlu0 %v4860
      %v4862 = vpop.xlane.xlu0 %4861
      %v4863 = vsel %vm4649, %v4793, 0.0
      %4864 = vadd.xlane.f32.xlu0 %v4863
      %v4865 = vpop.xlane.xlu0 %4864
      %v4866 = vsel %vm4649, %v4795, 0.0
      %4867 = vadd.xlane.f32.xlu0 %v4866
      %v4868 = vpop.xlane.xlu0 %4867
      %v4869 = vsel %vm4649, %v4797, 0.0
      %4870 = vadd.xlane.f32.xlu0 %v4869
      %v4871 = vpop.xlane.xlu0 %4870
      %v4872 = vsel %vm4649, %v4799, 0.0
      %4873 = vadd.xlane.f32.xlu0 %v4872
      %v4874 = vpop.xlane.xlu0 %4873
      %v4875 = vsel %vm4649, %v4801, 0.0
      %4876 = vadd.xlane.f32.xlu0 %v4875
      %v4877 = vpop.xlane.xlu0 %4876
      %v4878 = vsel %vm4649, %v4803, 0.0
      %4879 = vadd.xlane.f32.xlu0 %v4878
      %v4880 = vpop.xlane.xlu0 %4879
      %v4881 = vsel %vm4649, %v4805, 0.0
      %4882 = vadd.xlane.f32.xlu0 %v4881
      %v4883 = vpop.xlane.xlu0 %4882
      %v4884 = vsel %vm4649, %v4807, 0.0
      %4885 = vadd.xlane.f32.xlu0 %v4884
      %v4886 = vpop.xlane.xlu0 %4885
      %v4887 = vsel %vm4649, %v4809, 0.0
      %4888 = vadd.xlane.f32.xlu0 %v4887
      %v4889 = vpop.xlane.xlu0 %4888
      %v4890 = vsel %vm4649, %v4811, 0.0
      %4891 = vadd.xlane.f32.xlu0 %v4890
      %v4892 = vpop.xlane.xlu0 %4891
      %v4893 = vsel %vm4649, %v4813, 0.0
      %4894 = vadd.xlane.f32.xlu0 %v4893
      %v4895 = vpop.xlane.xlu0 %4894
      %v4896 = vsel %vm4649, %v4815, 0.0
      %4897 = vadd.xlane.f32.xlu0 %v4896
      %v4898 = vpop.xlane.xlu0 %4897
      %v4899 = vsel %vm4649, %v4817, 0.0
      %4900 = vadd.xlane.f32.xlu0 %v4899
      %v4901 = vpop.xlane.xlu0 %4900
      %v4902 = vsel %vm4649, %v4819, 0.0
      %4903 = vadd.xlane.f32.xlu0 %v4902
      %v4904 = vpop.xlane.xlu0 %4903
      %v4905 = vsel %vm4649, %v4821, 0.0
      %4906 = vadd.xlane.f32.xlu0 %v4905
      %v4907 = vpop.xlane.xlu0 %4906
      %v4908 = vsel %vm4649, %v4823, 0.0
      %4909 = vadd.xlane.f32.xlu0 %v4908
      %v4910 = vpop.xlane.xlu0 %4909
      %v4911 = vsel %vm4649, %v4825, 0.0
      %4912 = vadd.xlane.f32.xlu0 %v4911
      %v4913 = vpop.xlane.xlu0 %4912
      %v4914 = vsel %vm4649, %v4827, 0.0
      %4915 = vadd.xlane.f32.xlu0 %v4914
      %v4916 = vpop.xlane.xlu0 %4915
      %v4917 = vsel %vm4649, %v4829, 0.0
      %4918 = vadd.xlane.f32.xlu0 %v4917
      %v4919 = vpop.xlane.xlu0 %4918
      %v4920 = vsel %vm4649, %v4831, 0.0
      %4921 = vadd.xlane.f32.xlu0 %v4920
      %v4922 = vpop.xlane.xlu0 %4921
      %v4923 = vsel %vm4649, %v4833, 0.0
      %4924 = vadd.xlane.f32.xlu0 %v4923
      %v4925 = vpop.xlane.xlu0 %4924
      %v4926 = vsel %vm4649, %v4835, 0.0
      %4927 = vadd.xlane.f32.xlu0 %v4926
      %v4928 = vpop.xlane.xlu0 %4927
      %v4929 = vsel %vm4649, %v4837, 0.0
      %4930 = vadd.xlane.f32.xlu0 %v4929
      %v4931 = vpop.xlane.xlu0 %4930
      %v4932 = vsel %vm4649, %v4839, 0.0
      %4933 = vadd.xlane.f32.xlu0 %v4932
      %v4934 = vpop.xlane.xlu0 %4933
      %v4935 = vsel %vm4649, %v4841, 0.0
      %4936 = vadd.xlane.f32.xlu0 %v4935
      %v4937 = vpop.xlane.xlu0 %4936
      %v4938 = vrcp.pop %v4844
      %v4939 = vmul.f32 %v4779, %v4938
      %v4940 = vrcp.pop %v4847
      %v4941 = vmul.f32 %v4781, %v4940
      %v4942 = vrcp.pop %v4850
      %v4943 = vmul.f32 %v4783, %v4942
      %v4944 = vrcp.pop %v4853
      %v4945 = vmul.f32 %v4785, %v4944
      %v4946 = vrcp.pop %v4856
      %v4947 = vmul.f32 %v4787, %v4946
      %v4948 = vrcp.pop %v4859
      %v4949 = vmul.f32 %v4789, %v4948
      %v4950 = vrcp.pop %v4862
      %v4951 = vmul.f32 %v4791, %v4950
      %v4952 = vrcp.pop %v4865
      %v4953 = vmul.f32 %v4793, %v4952
      %v4954 = vrcp.pop %v4868
      %v4955 = vmul.f32 %v4795, %v4954
      %v4956 = vrcp.pop %v4871
      %v4957 = vmul.f32 %v4797, %v4956
      %v4958 = vrcp.pop %v4874
      %v4959 = vmul.f32 %v4799, %v4958
      %v4960 = vrcp.pop %v4877
      %v4961 = vmul.f32 %v4801, %v4960
      %v4962 = vrcp.pop %v4880
      %v4963 = vmul.f32 %v4803, %v4962
      %v4964 = vrcp.pop %v4883
      %v4965 = vmul.f32 %v4805, %v4964
      %v4966 = vrcp.pop %v4886
      %v4967 = vmul.f32 %v4807, %v4966
      %v4968 = vrcp.pop %v4889
      %v4969 = vmul.f32 %v4809, %v4968
      %v4970 = vrcp.pop %v4892
      %v4971 = vmul.f32 %v4811, %v4970
      %v4972 = vrcp.pop %v4895
      %v4973 = vmul.f32 %v4813, %v4972
      %v4974 = vrcp.pop %v4898
      %v4975 = vmul.f32 %v4815, %v4974
      %v4976 = vrcp.pop %v4901
      %v4977 = vmul.f32 %v4817, %v4976
      %v4978 = vrcp.pop %v4904
      %v4979 = vmul.f32 %v4819, %v4978
      %v4980 = vrcp.pop %v4907
      %v4981 = vmul.f32 %v4821, %v4980
      %v4982 = vrcp.pop %v4910
      %v4983 = vmul.f32 %v4823, %v4982
      %v4984 = vrcp.pop %v4913
      %v4985 = vmul.f32 %v4825, %v4984
      %v4986 = vrcp.pop %v4916
      %v4987 = vmul.f32 %v4827, %v4986
      %v4988 = vrcp.pop %v4919
      %v4989 = vmul.f32 %v4829, %v4988
      %v4990 = vrcp.pop %v4922
      %v4991 = vmul.f32 %v4831, %v4990
      %v4992 = vrcp.pop %v4925
      %v4993 = vmul.f32 %v4833, %v4992
      %v4994 = vrcp.pop %v4928
      %v4995 = vmul.f32 %v4835, %v4994
      %v4996 = vrcp.pop %v4931
      %v4997 = vmul.f32 %v4837, %v4996
      %v4998 = vrcp.pop %v4934
      %v4999 = vmul.f32 %v4839, %v4998
      %v5000 = vrcp.pop %v4937
      %v5001 = vmul.f32 %v4841, %v5000
      %v5003 = vsel %vm4649, %v4939, 0
      %v5006 = vsel %vm4649, %v4941, 0
      %v5009 = vsel %vm4649, %v4943, 0
      %v5012 = vsel %vm4649, %v4945, 0
      %v5015 = vsel %vm4649, %v4947, 0
      %v5018 = vsel %vm4649, %v4949, 0
      %v5021 = vsel %vm4649, %v4951, 0
      %v5024 = vsel %vm4649, %v4953, 0
      %5026 = vmatprep.subr.mxu0 0.0
      %5027 = vmatpush1.msra.mxu0 0.0
      %5028 = vmatprep.subr.mxu0 0.0
      %5029 = vmatpush1.msra.mxu0 0.0
      %5030 = vmatprep.subr.mxu0 0.0
      %5031 = vmatpush1.msra.mxu0 0.0
      %5032 = vmatprep.subr.mxu0 0.0
      %5033 = vmatpush1.msra.mxu0 0.0
      %5034 = vmatprep.subr.mxu0 0.0
      %5035 = vmatpush1.msra.mxu0 0.0
      %5036 = vmatprep.subr.mxu0 0.0
      %5037 = vmatpush1.msra.mxu0 0.0
      %5038 = vmatprep.subr.mxu0 0.0
      %5039 = vmatpush1.msra.mxu0 0.0
      %5040 = vmatprep.subr.mxu0 0.0
      %5041 = vmatpush1.msra.mxu0 0.0
      %5042 = vmatprep.subr.mxu0 0.0
      %5043 = vmatpush1.msra.mxu0 %v4032
      %5044 = vmatprep.subr.mxu0 0.0
      %5045 = vmatpush1.msra.mxu0 %v3964
      %5046 = vmatprep.subr.mxu0 0.0
      %5047 = vmatpush1.msra.mxu0 %v3896
      %5048 = vmatprep.subr.mxu0 0.0
      %5049 = vmatpush1.msra.mxu0 %v3828
      %5050 = vmatprep.subr.mxu0 0.0
      %5051 = vmatpush1.msra.mxu0 %v3760
      %5052 = vmatprep.subr.mxu0 0.0
      %5053 = vmatpush1.msra.mxu0 %v3692
      %5054 = vmatprep.subr.mxu0 0.0
      %5055 = vmatpush1.msra.mxu0 %v3624
      %5056 = vmatprep.subr.mxu0 0.0
      %5057 = vmatpush1.msra.mxu0 %v3556
      %5058 = vmatprep.subr.mxu0 0.0
      %5059 = vmatpush2.msra.mxu0 0.0
      %5060 = vmatprep.subr.mxu0 0.0
      %5061 = vmatpush2.msra.mxu0 0.0
      %5062 = vmatprep.subr.mxu0 0.0
      %5063 = vmatpush2.msra.mxu0 0.0
      %5064 = vmatprep.subr.mxu0 0.0
      %5065 = vmatpush2.msra.mxu0 0.0
      %5066 = vmatprep.subr.mxu0 0.0
      %5067 = vmatpush2.msra.mxu0 0.0
      %5068 = vmatprep.subr.mxu0 0.0
      %5069 = vmatpush2.msra.mxu0 0.0
      %5070 = vmatprep.subr.mxu0 0.0
      %5071 = vmatpush2.msra.mxu0 0.0
      %5072 = vmatprep.subr.mxu0 0.0
      %5073 = vmatpush2.msra.mxu0 0.0
      %5074 = vmatprep.subr.mxu0 0.0
      %5075 = vmatpush2.msra.mxu0 0.0
      %5076 = vmatprep.subr.mxu0 0.0
      %5077 = vmatpush2.msra.mxu0 0.0
      %5078 = vmatprep.subr.mxu0 0.0
      %5079 = vmatpush2.msra.mxu0 0.0
      %5080 = vmatprep.subr.mxu0 0.0
      %5081 = vmatpush2.msra.mxu0 0.0
      %5082 = vmatprep.subr.mxu0 0.0
      %5083 = vmatpush2.msra.mxu0 0.0
      %5084 = vmatprep.subr.mxu0 0.0
      %5085 = vmatpush2.msra.mxu0 0.0
      %5086 = vmatprep.subr.mxu0 0.0
      %5087 = vmatpush2.msra.mxu0 0.0
      %5088 = vmatprep.subr.mxu0 0.0
      %5089 = vmatpush2.msra.mxu0 0.0
      %5090 = vmatprep.mubr.f32.mxu0 0.0
      %5091 = vmatmul.mubr.f32.gmra.mxu0 %v5003
      %v5092 = vpop.f32.mrf.mxu0
      %v5093 = vadd.f32 0.0, %v5092
      %v5094 = vpop.f32.mrf.mxu0
      %5095 = vmatprep.mubr.f32.mxu0 0.0
      %5096 = vmatmul.mubr.f32.gmra.mxu0 %v5006
      %v5097 = vpop.f32.mrf.mxu0
      %v5098 = vadd.f32 0.0, %v5097
      %v5099 = vpop.f32.mrf.mxu0
      %5100 = vmatprep.mubr.f32.mxu0 0.0
      %5101 = vmatmul.mubr.f32.gmra.mxu0 %v5009
      %v5102 = vpop.f32.mrf.mxu0
      %v5103 = vadd.f32 0.0, %v5102
      %v5104 = vpop.f32.mrf.mxu0
      %5105 = vmatprep.mubr.f32.mxu0 0.0
      %5106 = vmatmul.mubr.f32.gmra.mxu0 %v5012
      %v5107 = vpop.f32.mrf.mxu0
      %v5108 = vadd.f32 0.0, %v5107
      %v5109 = vpop.f32.mrf.mxu0
      %5110 = vmatprep.mubr.f32.mxu0 0.0
      %5111 = vmatmul.mubr.f32.gmra.mxu0 %v5015
      %v5112 = vpop.f32.mrf.mxu0
      %v5113 = vadd.f32 0.0, %v5112
      %v5114 = vpop.f32.mrf.mxu0
      %5115 = vmatprep.mubr.f32.mxu0 0.0
      %5116 = vmatmul.mubr.f32.gmra.mxu0 %v5018
      %v5117 = vpop.f32.mrf.mxu0
      %v5118 = vadd.f32 0.0, %v5117
      %v5119 = vpop.f32.mrf.mxu0
      %5120 = vmatprep.mubr.f32.mxu0 0.0
      %5121 = vmatmul.mubr.f32.gmra.mxu0 %v5021
      %v5122 = vpop.f32.mrf.mxu0
      %v5123 = vadd.f32 0.0, %v5122
      %v5124 = vpop.f32.mrf.mxu0
      %5125 = vmatprep.mubr.f32.mxu0 0.0
      %5126 = vmatmul.mubr.f32.gmra.mxu0 %v5024
      %v5127 = vpop.f32.mrf.mxu0
      %v5128 = vadd.f32 0.0, %v5127
      %v5129 = vpop.f32.mrf.mxu0
      %5130 = vdwg.mxu0
      %v5132 = vsel %vm4649, %v4955, 0
      %v5135 = vsel %vm4649, %v4957, 0
      %v5138 = vsel %vm4649, %v4959, 0
      %v5141 = vsel %vm4649, %v4961, 0
      %v5144 = vsel %vm4649, %v4963, 0
      %v5147 = vsel %vm4649, %v4965, 0
      %v5150 = vsel %vm4649, %v4967, 0
      %v5153 = vsel %vm4649, %v4969, 0
      %5155 = vmatprep.subr.mxu0 0.0
      %5156 = vmatpush1.msra.mxu0 0.0
      %5157 = vmatprep.subr.mxu0 0.0
      %5158 = vmatpush1.msra.mxu0 0.0
      %5159 = vmatprep.subr.mxu0 0.0
      %5160 = vmatpush1.msra.mxu0 0.0
      %5161 = vmatprep.subr.mxu0 0.0
      %5162 = vmatpush1.msra.mxu0 0.0
      %5163 = vmatprep.subr.mxu0 0.0
      %5164 = vmatpush1.msra.mxu0 0.0
      %5165 = vmatprep.subr.mxu0 0.0
      %5166 = vmatpush1.msra.mxu0 0.0
      %5167 = vmatprep.subr.mxu0 0.0
      %5168 = vmatpush1.msra.mxu0 0.0
      %5169 = vmatprep.subr.mxu0 0.0
      %5170 = vmatpush1.msra.mxu0 0.0
      %5171 = vmatprep.subr.mxu0 0.0
      %5172 = vmatpush1.msra.mxu0 %v4033
      %5173 = vmatprep.subr.mxu0 0.0
      %5174 = vmatpush1.msra.mxu0 %v3965
      %5175 = vmatprep.subr.mxu0 0.0
      %5176 = vmatpush1.msra.mxu0 %v3897
      %5177 = vmatprep.subr.mxu0 0.0
      %5178 = vmatpush1.msra.mxu0 %v3829
      %5179 = vmatprep.subr.mxu0 0.0
      %5180 = vmatpush1.msra.mxu0 %v3761
      %5181 = vmatprep.subr.mxu0 0.0
      %5182 = vmatpush1.msra.mxu0 %v3693
      %5183 = vmatprep.subr.mxu0 0.0
      %5184 = vmatpush1.msra.mxu0 %v3625
      %5185 = vmatprep.subr.mxu0 0.0
      %5186 = vmatpush1.msra.mxu0 %v3557
      %5187 = vmatprep.subr.mxu0 0.0
      %5188 = vmatpush2.msra.mxu0 0.0
      %5189 = vmatprep.subr.mxu0 0.0
      %5190 = vmatpush2.msra.mxu0 0.0
      %5191 = vmatprep.subr.mxu0 0.0
      %5192 = vmatpush2.msra.mxu0 0.0
      %5193 = vmatprep.subr.mxu0 0.0
      %5194 = vmatpush2.msra.mxu0 0.0
      %5195 = vmatprep.subr.mxu0 0.0
      %5196 = vmatpush2.msra.mxu0 0.0
      %5197 = vmatprep.subr.mxu0 0.0
      %5198 = vmatpush2.msra.mxu0 0.0
      %5199 = vmatprep.subr.mxu0 0.0
      %5200 = vmatpush2.msra.mxu0 0.0
      %5201 = vmatprep.subr.mxu0 0.0
      %5202 = vmatpush2.msra.mxu0 0.0
      %5203 = vmatprep.subr.mxu0 0.0
      %5204 = vmatpush2.msra.mxu0 0.0
      %5205 = vmatprep.subr.mxu0 0.0
      %5206 = vmatpush2.msra.mxu0 0.0
      %5207 = vmatprep.subr.mxu0 0.0
      %5208 = vmatpush2.msra.mxu0 0.0
      %5209 = vmatprep.subr.mxu0 0.0
      %5210 = vmatpush2.msra.mxu0 0.0
      %5211 = vmatprep.subr.mxu0 0.0
      %5212 = vmatpush2.msra.mxu0 0.0
      %5213 = vmatprep.subr.mxu0 0.0
      %5214 = vmatpush2.msra.mxu0 0.0
      %5215 = vmatprep.subr.mxu0 0.0
      %5216 = vmatpush2.msra.mxu0 0.0
      %5217 = vmatprep.subr.mxu0 0.0
      %5218 = vmatpush2.msra.mxu0 0.0
      %5219 = vmatprep.mubr.f32.mxu0 0.0
      %5220 = vmatmul.mubr.f32.gmra.mxu0 %v5132
      %v5221 = vpop.f32.mrf.mxu0
      %v5222 = vadd.f32 0.0, %v5221
      %v5223 = vpop.f32.mrf.mxu0
      %5224 = vmatprep.mubr.f32.mxu0 0.0
      %5225 = vmatmul.mubr.f32.gmra.mxu0 %v5135
      %v5226 = vpop.f32.mrf.mxu0
      %v5227 = vadd.f32 0.0, %v5226
      %v5228 = vpop.f32.mrf.mxu0
      %5229 = vmatprep.mubr.f32.mxu0 0.0
      %5230 = vmatmul.mubr.f32.gmra.mxu0 %v5138
      %v5231 = vpop.f32.mrf.mxu0
      %v5232 = vadd.f32 0.0, %v5231
      %v5233 = vpop.f32.mrf.mxu0
      %5234 = vmatprep.mubr.f32.mxu0 0.0
      %5235 = vmatmul.mubr.f32.gmra.mxu0 %v5141
      %v5236 = vpop.f32.mrf.mxu0
      %v5237 = vadd.f32 0.0, %v5236
      %v5238 = vpop.f32.mrf.mxu0
      %5239 = vmatprep.mubr.f32.mxu0 0.0
      %5240 = vmatmul.mubr.f32.gmra.mxu0 %v5144
      %v5241 = vpop.f32.mrf.mxu0
      %v5242 = vadd.f32 0.0, %v5241
      %v5243 = vpop.f32.mrf.mxu0
      %5244 = vmatprep.mubr.f32.mxu0 0.0
      %5245 = vmatmul.mubr.f32.gmra.mxu0 %v5147
      %v5246 = vpop.f32.mrf.mxu0
      %v5247 = vadd.f32 0.0, %v5246
      %v5248 = vpop.f32.mrf.mxu0
      %5249 = vmatprep.mubr.f32.mxu0 0.0
      %5250 = vmatmul.mubr.f32.gmra.mxu0 %v5150
      %v5251 = vpop.f32.mrf.mxu0
      %v5252 = vadd.f32 0.0, %v5251
      %v5253 = vpop.f32.mrf.mxu0
      %5254 = vmatprep.mubr.f32.mxu0 0.0
      %5255 = vmatmul.mubr.f32.gmra.mxu0 %v5153
      %v5256 = vpop.f32.mrf.mxu0
      %v5257 = vadd.f32 0.0, %v5256
      %v5258 = vpop.f32.mrf.mxu0
      %5259 = vdwg.mxu0
      %v5261 = vsel %vm4649, %v4971, 0
      %v5264 = vsel %vm4649, %v4973, 0
      %v5267 = vsel %vm4649, %v4975, 0
      %v5270 = vsel %vm4649, %v4977, 0
      %v5273 = vsel %vm4649, %v4979, 0
      %v5276 = vsel %vm4649, %v4981, 0
      %v5279 = vsel %vm4649, %v4983, 0
      %v5282 = vsel %vm4649, %v4985, 0
      %5284 = vmatprep.subr.mxu0 0.0
      %5285 = vmatpush1.msra.mxu0 0.0
      %5286 = vmatprep.subr.mxu0 0.0
      %5287 = vmatpush1.msra.mxu0 0.0
      %5288 = vmatprep.subr.mxu0 0.0
      %5289 = vmatpush1.msra.mxu0 0.0
      %5290 = vmatprep.subr.mxu0 0.0
      %5291 = vmatpush1.msra.mxu0 0.0
      %5292 = vmatprep.subr.mxu0 0.0
      %5293 = vmatpush1.msra.mxu0 0.0
      %5294 = vmatprep.subr.mxu0 0.0
      %5295 = vmatpush1.msra.mxu0 0.0
      %5296 = vmatprep.subr.mxu0 0.0
      %5297 = vmatpush1.msra.mxu0 0.0
      %5298 = vmatprep.subr.mxu0 0.0
      %5299 = vmatpush1.msra.mxu0 0.0
      %5300 = vmatprep.subr.mxu0 0.0
      %5301 = vmatpush1.msra.mxu0 %v4034
      %5302 = vmatprep.subr.mxu0 0.0
      %5303 = vmatpush1.msra.mxu0 %v3966
      %5304 = vmatprep.subr.mxu0 0.0
      %5305 = vmatpush1.msra.mxu0 %v3898
      %5306 = vmatprep.subr.mxu0 0.0
      %5307 = vmatpush1.msra.mxu0 %v3830
      %5308 = vmatprep.subr.mxu0 0.0
      %5309 = vmatpush1.msra.mxu0 %v3762
      %5310 = vmatprep.subr.mxu0 0.0
      %5311 = vmatpush1.msra.mxu0 %v3694
      %5312 = vmatprep.subr.mxu0 0.0
      %5313 = vmatpush1.msra.mxu0 %v3626
      %5314 = vmatprep.subr.mxu0 0.0
      %5315 = vmatpush1.msra.mxu0 %v3558
      %5316 = vmatprep.subr.mxu0 0.0
      %5317 = vmatpush2.msra.mxu0 0.0
      %5318 = vmatprep.subr.mxu0 0.0
      %5319 = vmatpush2.msra.mxu0 0.0
      %5320 = vmatprep.subr.mxu0 0.0
      %5321 = vmatpush2.msra.mxu0 0.0
      %5322 = vmatprep.subr.mxu0 0.0
      %5323 = vmatpush2.msra.mxu0 0.0
      %5324 = vmatprep.subr.mxu0 0.0
      %5325 = vmatpush2.msra.mxu0 0.0
      %5326 = vmatprep.subr.mxu0 0.0
      %5327 = vmatpush2.msra.mxu0 0.0
      %5328 = vmatprep.subr.mxu0 0.0
      %5329 = vmatpush2.msra.mxu0 0.0
      %5330 = vmatprep.subr.mxu0 0.0
      %5331 = vmatpush2.msra.mxu0 0.0
      %5332 = vmatprep.subr.mxu0 0.0
      %5333 = vmatpush2.msra.mxu0 0.0
      %5334 = vmatprep.subr.mxu0 0.0
      %5335 = vmatpush2.msra.mxu0 0.0
      %5336 = vmatprep.subr.mxu0 0.0
      %5337 = vmatpush2.msra.mxu0 0.0
      %5338 = vmatprep.subr.mxu0 0.0
      %5339 = vmatpush2.msra.mxu0 0.0
      %5340 = vmatprep.subr.mxu0 0.0
      %5341 = vmatpush2.msra.mxu0 0.0
      %5342 = vmatprep.subr.mxu0 0.0
      %5343 = vmatpush2.msra.mxu0 0.0
      %5344 = vmatprep.subr.mxu0 0.0
      %5345 = vmatpush2.msra.mxu0 0.0
      %5346 = vmatprep.subr.mxu0 0.0
      %5347 = vmatpush2.msra.mxu0 0.0
      %5348 = vmatprep.mubr.f32.mxu0 0.0
      %5349 = vmatmul.mubr.f32.gmra.mxu0 %v5261
      %v5350 = vpop.f32.mrf.mxu0
      %v5351 = vadd.f32 0.0, %v5350
      %v5352 = vpop.f32.mrf.mxu0
      %5353 = vmatprep.mubr.f32.mxu0 0.0
      %5354 = vmatmul.mubr.f32.gmra.mxu0 %v5264
      %v5355 = vpop.f32.mrf.mxu0
      %v5356 = vadd.f32 0.0, %v5355
      %v5357 = vpop.f32.mrf.mxu0
      %5358 = vmatprep.mubr.f32.mxu0 0.0
      %5359 = vmatmul.mubr.f32.gmra.mxu0 %v5267
      %v5360 = vpop.f32.mrf.mxu0
      %v5361 = vadd.f32 0.0, %v5360
      %v5362 = vpop.f32.mrf.mxu0
      %5363 = vmatprep.mubr.f32.mxu0 0.0
      %5364 = vmatmul.mubr.f32.gmra.mxu0 %v5270
      %v5365 = vpop.f32.mrf.mxu0
      %v5366 = vadd.f32 0.0, %v5365
      %v5367 = vpop.f32.mrf.mxu0
      %5368 = vmatprep.mubr.f32.mxu0 0.0
      %5369 = vmatmul.mubr.f32.gmra.mxu0 %v5273
      %v5370 = vpop.f32.mrf.mxu0
      %v5371 = vadd.f32 0.0, %v5370
      %v5372 = vpop.f32.mrf.mxu0
      %5373 = vmatprep.mubr.f32.mxu0 0.0
      %5374 = vmatmul.mubr.f32.gmra.mxu0 %v5276
      %v5375 = vpop.f32.mrf.mxu0
      %v5376 = vadd.f32 0.0, %v5375
      %v5377 = vpop.f32.mrf.mxu0
      %5378 = vmatprep.mubr.f32.mxu0 0.0
      %5379 = vmatmul.mubr.f32.gmra.mxu0 %v5279
      %v5380 = vpop.f32.mrf.mxu0
      %v5381 = vadd.f32 0.0, %v5380
      %v5382 = vpop.f32.mrf.mxu0
      %5383 = vmatprep.mubr.f32.mxu0 0.0
      %5384 = vmatmul.mubr.f32.gmra.mxu0 %v5282
      %v5385 = vpop.f32.mrf.mxu0
      %v5386 = vadd.f32 0.0, %v5385
      %v5387 = vpop.f32.mrf.mxu0
      %5388 = vdwg.mxu0
      %v5390 = vsel %vm4649, %v4987, 0
      %v5393 = vsel %vm4649, %v4989, 0
      %v5396 = vsel %vm4649, %v4991, 0
      %v5399 = vsel %vm4649, %v4993, 0
      %v5402 = vsel %vm4649, %v4995, 0
      %v5405 = vsel %vm4649, %v4997, 0
      %v5408 = vsel %vm4649, %v4999, 0
      %v5411 = vsel %vm4649, %v5001, 0
      %5413 = vmatprep.subr.mxu0 0.0
      %5414 = vmatpush1.msra.mxu0 0.0
      %5415 = vmatprep.subr.mxu0 0.0
      %5416 = vmatpush1.msra.mxu0 0.0
      %5417 = vmatprep.subr.mxu0 0.0
      %5418 = vmatpush1.msra.mxu0 0.0
      %5419 = vmatprep.subr.mxu0 0.0
      %5420 = vmatpush1.msra.mxu0 0.0
      %5421 = vmatprep.subr.mxu0 0.0
      %5422 = vmatpush1.msra.mxu0 0.0
      %5423 = vmatprep.subr.mxu0 0.0
      %5424 = vmatpush1.msra.mxu0 0.0
      %5425 = vmatprep.subr.mxu0 0.0
      %5426 = vmatpush1.msra.mxu0 0.0
      %5427 = vmatprep.subr.mxu0 0.0
      %5428 = vmatpush1.msra.mxu0 0.0
      %5429 = vmatprep.subr.mxu0 0.0
      %5430 = vmatpush1.msra.mxu0 %v4035
      %5431 = vmatprep.subr.mxu0 0.0
      %5432 = vmatpush1.msra.mxu0 %v3967
      %5433 = vmatprep.subr.mxu0 0.0
      %5434 = vmatpush1.msra.mxu0 %v3899
      %5435 = vmatprep.subr.mxu0 0.0
      %5436 = vmatpush1.msra.mxu0 %v3831
      %5437 = vmatprep.subr.mxu0 0.0
      %5438 = vmatpush1.msra.mxu0 %v3763
      %5439 = vmatprep.subr.mxu0 0.0
      %5440 = vmatpush1.msra.mxu0 %v3695
      %5441 = vmatprep.subr.mxu0 0.0
      %5442 = vmatpush1.msra.mxu0 %v3627
      %5443 = vmatprep.subr.mxu0 0.0
      %5444 = vmatpush1.msra.mxu0 %v3559
      %5445 = vmatprep.subr.mxu0 0.0
      %5446 = vmatpush2.msra.mxu0 0.0
      %5447 = vmatprep.subr.mxu0 0.0
      %5448 = vmatpush2.msra.mxu0 0.0
      %5449 = vmatprep.subr.mxu0 0.0
      %5450 = vmatpush2.msra.mxu0 0.0
      %5451 = vmatprep.subr.mxu0 0.0
      %5452 = vmatpush2.msra.mxu0 0.0
      %5453 = vmatprep.subr.mxu0 0.0
      %5454 = vmatpush2.msra.mxu0 0.0
      %5455 = vmatprep.subr.mxu0 0.0
      %5456 = vmatpush2.msra.mxu0 0.0
      %5457 = vmatprep.subr.mxu0 0.0
      %5458 = vmatpush2.msra.mxu0 0.0
      %5459 = vmatprep.subr.mxu0 0.0
      %5460 = vmatpush2.msra.mxu0 0.0
      %5461 = vmatprep.subr.mxu0 0.0
      %5462 = vmatpush2.msra.mxu0 0.0
      %5463 = vmatprep.subr.mxu0 0.0
      %5464 = vmatpush2.msra.mxu0 0.0
      %5465 = vmatprep.subr.mxu0 0.0
      %5466 = vmatpush2.msra.mxu0 0.0
      %5467 = vmatprep.subr.mxu0 0.0
      %5468 = vmatpush2.msra.mxu0 0.0
      %5469 = vmatprep.subr.mxu0 0.0
      %5470 = vmatpush2.msra.mxu0 0.0
      %5471 = vmatprep.subr.mxu0 0.0
      %5472 = vmatpush2.msra.mxu0 0.0
      %5473 = vmatprep.subr.mxu0 0.0
      %5474 = vmatpush2.msra.mxu0 0.0
      %5475 = vmatprep.subr.mxu0 0.0
      %5476 = vmatpush2.msra.mxu0 0.0
      %5477 = vmatprep.mubr.f32.mxu0 0.0
      %5478 = vmatmul.mubr.f32.gmra.mxu0 %v5390
      %v5479 = vpop.f32.mrf.mxu0
      %v5480 = vadd.f32 0.0, %v5479
      %v5481 = vpop.f32.mrf.mxu0
      %5482 = vmatprep.mubr.f32.mxu0 0.0
      %5483 = vmatmul.mubr.f32.gmra.mxu0 %v5393
      %v5484 = vpop.f32.mrf.mxu0
      %v5485 = vadd.f32 0.0, %v5484
      %v5486 = vpop.f32.mrf.mxu0
      %5487 = vmatprep.mubr.f32.mxu0 0.0
      %5488 = vmatmul.mubr.f32.gmra.mxu0 %v5396
      %v5489 = vpop.f32.mrf.mxu0
      %v5490 = vadd.f32 0.0, %v5489
      %v5491 = vpop.f32.mrf.mxu0
      %5492 = vmatprep.mubr.f32.mxu0 0.0
      %5493 = vmatmul.mubr.f32.gmra.mxu0 %v5399
      %v5494 = vpop.f32.mrf.mxu0
      %v5495 = vadd.f32 0.0, %v5494
      %v5496 = vpop.f32.mrf.mxu0
      %5497 = vmatprep.mubr.f32.mxu0 0.0
      %5498 = vmatmul.mubr.f32.gmra.mxu0 %v5402
      %v5499 = vpop.f32.mrf.mxu0
      %v5500 = vadd.f32 0.0, %v5499
      %v5501 = vpop.f32.mrf.mxu0
      %5502 = vmatprep.mubr.f32.mxu0 0.0
      %5503 = vmatmul.mubr.f32.gmra.mxu0 %v5405
      %v5504 = vpop.f32.mrf.mxu0
      %v5505 = vadd.f32 0.0, %v5504
      %v5506 = vpop.f32.mrf.mxu0
      %5507 = vmatprep.mubr.f32.mxu0 0.0
      %5508 = vmatmul.mubr.f32.gmra.mxu0 %v5408
      %v5509 = vpop.f32.mrf.mxu0
      %v5510 = vadd.f32 0.0, %v5509
      %v5511 = vpop.f32.mrf.mxu0
      %5512 = vmatprep.mubr.f32.mxu0 0.0
      %5513 = vmatmul.mubr.f32.gmra.mxu0 %v5411
      %v5514 = vpop.f32.mrf.mxu0
      %v5515 = vadd.f32 0.0, %v5514
      %v5516 = vpop.f32.mrf.mxu0
      %5517 = vdwg.mxu0
      %v5518 = vcombine.low %v5093, %v5351
      %v5519 = vcombine.high %v5093, %v5351
      %v5521 = vunpack.c.l.s4 1983009808
      %v5522 = vunpack.c.0.s8 %v5521
      %v5523 = vlaneseq
      %v5524 = vshrl.u32 %v5523, 7
      %v5525 = vsub.s32 %v5522, %v5524
      %v5526 = vrot.slane %v5518, %v5525
      %v5528 = vunpack.c.l.s4 1983009808
      %v5529 = vunpack.c.0.s8 %v5528
      %v5530 = vlaneseq
      %v5531 = vshrl.u32 %v5530, 7
      %v5532 = vsub.s32 %v5529, %v5531
      %v5533 = vrot.slane %v5519, %v5532
      %v5534 = vcombine.low %v5222, %v5480
      %v5535 = vcombine.high %v5222, %v5480
      %v5537 = vunpack.c.l.s4 1983009808
      %v5538 = vunpack.c.0.s8 %v5537
      %v5539 = vlaneseq
      %v5540 = vshrl.u32 %v5539, 7
      %v5541 = vsub.s32 %v5538, %v5540
      %v5542 = vrot.slane %v5534, %v5541
      %v5544 = vunpack.c.l.s4 1983009808
      %v5545 = vunpack.c.0.s8 %v5544
      %v5546 = vlaneseq
      %v5547 = vshrl.u32 %v5546, 7
      %v5548 = vsub.s32 %v5545, %v5547
      %v5549 = vrot.slane %v5535, %v5548
      %v5550 = vcombine.low %v5526, %v5542
      %v5551 = vcombine.high %v5526, %v5542
      %v5553 = vunpack.c.l.s4 1934713408
      %v5554 = vunpack.c.0.s8 %v5553
      %v5555 = vlaneseq
      %v5556 = vshrl.u32 %v5555, 7
      %v5557 = vsub.s32 %v5554, %v5556
      %v5558 = vrot.slane %v5550, %v5557
      %v5560 = vunpack.c.l.s4 1934713408
      %v5561 = vunpack.c.0.s8 %v5560
      %v5562 = vlaneseq
      %v5563 = vshrl.u32 %v5562, 7
      %v5564 = vsub.s32 %v5561, %v5563
      %v5565 = vrot.slane %v5551, %v5564
      %v5566 = vcombine.low %v5533, %v5549
      %v5567 = vcombine.high %v5533, %v5549
      %v5569 = vunpack.c.l.s4 1934713408
      %v5570 = vunpack.c.0.s8 %v5569
      %v5571 = vlaneseq
      %v5572 = vshrl.u32 %v5571, 7
      %v5573 = vsub.s32 %v5570, %v5572
      %v5574 = vrot.slane %v5566, %v5573
      %v5576 = vunpack.c.l.s4 1934713408
      %v5577 = vunpack.c.0.s8 %v5576
      %v5578 = vlaneseq
      %v5579 = vshrl.u32 %v5578, 7
      %v5580 = vsub.s32 %v5577, %v5579
      %v5581 = vrot.slane %v5567, %v5580
      %v5582 = vcombine.high %v5558, 0.0
      %v5583 = vcombine.high %v5565, 0.0
      %v5584 = vcombine.high %v5574, 0.0
      %v5585 = vcombine.high %v5581, 0.0
      %v5586 = vcombine.low %v5098, %v5356
      %v5587 = vcombine.high %v5098, %v5356
      %v5589 = vunpack.c.l.s4 1983009808
      %v5590 = vunpack.c.0.s8 %v5589
      %v5591 = vlaneseq
      %v5592 = vshrl.u32 %v5591, 7
      %v5593 = vsub.s32 %v5590, %v5592
      %v5594 = vrot.slane %v5586, %v5593
      %v5596 = vunpack.c.l.s4 1983009808
      %v5597 = vunpack.c.0.s8 %v5596
      %v5598 = vlaneseq
      %v5599 = vshrl.u32 %v5598, 7
      %v5600 = vsub.s32 %v5597, %v5599
      %v5601 = vrot.slane %v5587, %v5600
      %v5602 = vcombine.low %v5227, %v5485
      %v5603 = vcombine.high %v5227, %v5485
      %v5605 = vunpack.c.l.s4 1983009808
      %v5606 = vunpack.c.0.s8 %v5605
      %v5607 = vlaneseq
      %v5608 = vshrl.u32 %v5607, 7
      %v5609 = vsub.s32 %v5606, %v5608
      %v5610 = vrot.slane %v5602, %v5609
      %v5612 = vunpack.c.l.s4 1983009808
      %v5613 = vunpack.c.0.s8 %v5612
      %v5614 = vlaneseq
      %v5615 = vshrl.u32 %v5614, 7
      %v5616 = vsub.s32 %v5613, %v5615
      %v5617 = vrot.slane %v5603, %v5616
      %v5618 = vcombine.low %v5594, %v5610
      %v5619 = vcombine.high %v5594, %v5610
      %v5621 = vunpack.c.l.s4 1934713408
      %v5622 = vunpack.c.0.s8 %v5621
      %v5623 = vlaneseq
      %v5624 = vshrl.u32 %v5623, 7
      %v5625 = vsub.s32 %v5622, %v5624
      %v5626 = vrot.slane %v5618, %v5625
      %v5628 = vunpack.c.l.s4 1934713408
      %v5629 = vunpack.c.0.s8 %v5628
      %v5630 = vlaneseq
      %v5631 = vshrl.u32 %v5630, 7
      %v5632 = vsub.s32 %v5629, %v5631
      %v5633 = vrot.slane %v5619, %v5632
      %v5634 = vcombine.low %v5601, %v5617
      %v5635 = vcombine.high %v5601, %v5617
      %v5637 = vunpack.c.l.s4 1934713408
      %v5638 = vunpack.c.0.s8 %v5637
      %v5639 = vlaneseq
      %v5640 = vshrl.u32 %v5639, 7
      %v5641 = vsub.s32 %v5638, %v5640
      %v5642 = vrot.slane %v5634, %v5641
      %v5644 = vunpack.c.l.s4 1934713408
      %v5645 = vunpack.c.0.s8 %v5644
      %v5646 = vlaneseq
      %v5647 = vshrl.u32 %v5646, 7
      %v5648 = vsub.s32 %v5645, %v5647
      %v5649 = vrot.slane %v5635, %v5648
      %v5650 = vcombine.high %v5626, 0.0
      %v5651 = vcombine.high %v5633, 0.0
      %v5652 = vcombine.high %v5642, 0.0
      %v5653 = vcombine.high %v5649, 0.0
      %v5654 = vcombine.low %v5103, %v5361
      %v5655 = vcombine.high %v5103, %v5361
      %v5657 = vunpack.c.l.s4 1983009808
      %v5658 = vunpack.c.0.s8 %v5657
      %v5659 = vlaneseq
      %v5660 = vshrl.u32 %v5659, 7
      %v5661 = vsub.s32 %v5658, %v5660
      %v5662 = vrot.slane %v5654, %v5661
      %v5664 = vunpack.c.l.s4 1983009808
      %v5665 = vunpack.c.0.s8 %v5664
      %v5666 = vlaneseq
      %v5667 = vshrl.u32 %v5666, 7
      %v5668 = vsub.s32 %v5665, %v5667
      %v5669 = vrot.slane %v5655, %v5668
      %v5670 = vcombine.low %v5232, %v5490
      %v5671 = vcombine.high %v5232, %v5490
      %v5673 = vunpack.c.l.s4 1983009808
      %v5674 = vunpack.c.0.s8 %v5673
      %v5675 = vlaneseq
      %v5676 = vshrl.u32 %v5675, 7
      %v5677 = vsub.s32 %v5674, %v5676
      %v5678 = vrot.slane %v5670, %v5677
      %v5680 = vunpack.c.l.s4 1983009808
      %v5681 = vunpack.c.0.s8 %v5680
      %v5682 = vlaneseq
      %v5683 = vshrl.u32 %v5682, 7
      %v5684 = vsub.s32 %v5681, %v5683
      %v5685 = vrot.slane %v5671, %v5684
      %v5686 = vcombine.low %v5662, %v5678
      %v5687 = vcombine.high %v5662, %v5678
      %v5689 = vunpack.c.l.s4 1934713408
      %v5690 = vunpack.c.0.s8 %v5689
      %v5691 = vlaneseq
      %v5692 = vshrl.u32 %v5691, 7
      %v5693 = vsub.s32 %v5690, %v5692
      %v5694 = vrot.slane %v5686, %v5693
      %v5696 = vunpack.c.l.s4 1934713408
      %v5697 = vunpack.c.0.s8 %v5696
      %v5698 = vlaneseq
      %v5699 = vshrl.u32 %v5698, 7
      %v5700 = vsub.s32 %v5697, %v5699
      %v5701 = vrot.slane %v5687, %v5700
      %v5702 = vcombine.low %v5669, %v5685
      %v5703 = vcombine.high %v5669, %v5685
      %v5705 = vunpack.c.l.s4 1934713408
      %v5706 = vunpack.c.0.s8 %v5705
      %v5707 = vlaneseq
      %v5708 = vshrl.u32 %v5707, 7
      %v5709 = vsub.s32 %v5706, %v5708
      %v5710 = vrot.slane %v5702, %v5709
      %v5712 = vunpack.c.l.s4 1934713408
      %v5713 = vunpack.c.0.s8 %v5712
      %v5714 = vlaneseq
      %v5715 = vshrl.u32 %v5714, 7
      %v5716 = vsub.s32 %v5713, %v5715
      %v5717 = vrot.slane %v5703, %v5716
      %v5718 = vcombine.high %v5694, 0.0
      %v5719 = vcombine.high %v5701, 0.0
      %v5720 = vcombine.high %v5710, 0.0
      %v5721 = vcombine.high %v5717, 0.0
      %v5722 = vcombine.low %v5108, %v5366
      %v5723 = vcombine.high %v5108, %v5366
      %v5725 = vunpack.c.l.s4 1983009808
      %v5726 = vunpack.c.0.s8 %v5725
      %v5727 = vlaneseq
      %v5728 = vshrl.u32 %v5727, 7
      %v5729 = vsub.s32 %v5726, %v5728
      %v5730 = vrot.slane %v5722, %v5729
      %v5732 = vunpack.c.l.s4 1983009808
      %v5733 = vunpack.c.0.s8 %v5732
      %v5734 = vlaneseq
      %v5735 = vshrl.u32 %v5734, 7
      %v5736 = vsub.s32 %v5733, %v5735
      %v5737 = vrot.slane %v5723, %v5736
      %v5738 = vcombine.low %v5237, %v5495
      %v5739 = vcombine.high %v5237, %v5495
      %v5741 = vunpack.c.l.s4 1983009808
      %v5742 = vunpack.c.0.s8 %v5741
      %v5743 = vlaneseq
      %v5744 = vshrl.u32 %v5743, 7
      %v5745 = vsub.s32 %v5742, %v5744
      %v5746 = vrot.slane %v5738, %v5745
      %v5748 = vunpack.c.l.s4 1983009808
      %v5749 = vunpack.c.0.s8 %v5748
      %v5750 = vlaneseq
      %v5751 = vshrl.u32 %v5750, 7
      %v5752 = vsub.s32 %v5749, %v5751
      %v5753 = vrot.slane %v5739, %v5752
      %v5754 = vcombine.low %v5730, %v5746
      %v5755 = vcombine.high %v5730, %v5746
      %v5757 = vunpack.c.l.s4 1934713408
      %v5758 = vunpack.c.0.s8 %v5757
      %v5759 = vlaneseq
      %v5760 = vshrl.u32 %v5759, 7
      %v5761 = vsub.s32 %v5758, %v5760
      %v5762 = vrot.slane %v5754, %v5761
      %v5764 = vunpack.c.l.s4 1934713408
      %v5765 = vunpack.c.0.s8 %v5764
      %v5766 = vlaneseq
      %v5767 = vshrl.u32 %v5766, 7
      %v5768 = vsub.s32 %v5765, %v5767
      %v5769 = vrot.slane %v5755, %v5768
      %v5770 = vcombine.low %v5737, %v5753
      %v5771 = vcombine.high %v5737, %v5753
      %v5773 = vunpack.c.l.s4 1934713408
      %v5774 = vunpack.c.0.s8 %v5773
      %v5775 = vlaneseq
      %v5776 = vshrl.u32 %v5775, 7
      %v5777 = vsub.s32 %v5774, %v5776
      %v5778 = vrot.slane %v5770, %v5777
      %v5780 = vunpack.c.l.s4 1934713408
      %v5781 = vunpack.c.0.s8 %v5780
      %v5782 = vlaneseq
      %v5783 = vshrl.u32 %v5782, 7
      %v5784 = vsub.s32 %v5781, %v5783
      %v5785 = vrot.slane %v5771, %v5784
      %v5786 = vcombine.high %v5762, 0.0
      %v5787 = vcombine.high %v5769, 0.0
      %v5788 = vcombine.high %v5778, 0.0
      %v5789 = vcombine.high %v5785, 0.0
      %v5790 = vcombine.low %v5113, %v5371
      %v5791 = vcombine.high %v5113, %v5371
      %v5793 = vunpack.c.l.s4 1983009808
      %v5794 = vunpack.c.0.s8 %v5793
      %v5795 = vlaneseq
      %v5796 = vshrl.u32 %v5795, 7
      %v5797 = vsub.s32 %v5794, %v5796
      %v5798 = vrot.slane %v5790, %v5797
      %v5800 = vunpack.c.l.s4 1983009808
      %v5801 = vunpack.c.0.s8 %v5800
      %v5802 = vlaneseq
      %v5803 = vshrl.u32 %v5802, 7
      %v5804 = vsub.s32 %v5801, %v5803
      %v5805 = vrot.slane %v5791, %v5804
      %v5806 = vcombine.low %v5242, %v5500
      %v5807 = vcombine.high %v5242, %v5500
      %v5809 = vunpack.c.l.s4 1983009808
      %v5810 = vunpack.c.0.s8 %v5809
      %v5811 = vlaneseq
      %v5812 = vshrl.u32 %v5811, 7
      %v5813 = vsub.s32 %v5810, %v5812
      %v5814 = vrot.slane %v5806, %v5813
      %v5816 = vunpack.c.l.s4 1983009808
      %v5817 = vunpack.c.0.s8 %v5816
      %v5818 = vlaneseq
      %v5819 = vshrl.u32 %v5818, 7
      %v5820 = vsub.s32 %v5817, %v5819
      %v5821 = vrot.slane %v5807, %v5820
      %v5822 = vcombine.low %v5798, %v5814
      %v5823 = vcombine.high %v5798, %v5814
      %v5825 = vunpack.c.l.s4 1934713408
      %v5826 = vunpack.c.0.s8 %v5825
      %v5827 = vlaneseq
      %v5828 = vshrl.u32 %v5827, 7
      %v5829 = vsub.s32 %v5826, %v5828
      %v5830 = vrot.slane %v5822, %v5829
      %v5832 = vunpack.c.l.s4 1934713408
      %v5833 = vunpack.c.0.s8 %v5832
      %v5834 = vlaneseq
      %v5835 = vshrl.u32 %v5834, 7
      %v5836 = vsub.s32 %v5833, %v5835
      %v5837 = vrot.slane %v5823, %v5836
      %v5838 = vcombine.low %v5805, %v5821
      %v5839 = vcombine.high %v5805, %v5821
      %v5841 = vunpack.c.l.s4 1934713408
      %v5842 = vunpack.c.0.s8 %v5841
      %v5843 = vlaneseq
      %v5844 = vshrl.u32 %v5843, 7
      %v5845 = vsub.s32 %v5842, %v5844
      %v5846 = vrot.slane %v5838, %v5845
      %v5848 = vunpack.c.l.s4 1934713408
      %v5849 = vunpack.c.0.s8 %v5848
      %v5850 = vlaneseq
      %v5851 = vshrl.u32 %v5850, 7
      %v5852 = vsub.s32 %v5849, %v5851
      %v5853 = vrot.slane %v5839, %v5852
      %v5854 = vcombine.high %v5830, 0.0
      %v5855 = vcombine.high %v5837, 0.0
      %v5856 = vcombine.high %v5846, 0.0
      %v5857 = vcombine.high %v5853, 0.0
      %v5858 = vcombine.low %v5118, %v5376
      %v5859 = vcombine.high %v5118, %v5376
      %v5861 = vunpack.c.l.s4 1983009808
      %v5862 = vunpack.c.0.s8 %v5861
      %v5863 = vlaneseq
      %v5864 = vshrl.u32 %v5863, 7
      %v5865 = vsub.s32 %v5862, %v5864
      %v5866 = vrot.slane %v5858, %v5865
      %v5868 = vunpack.c.l.s4 1983009808
      %v5869 = vunpack.c.0.s8 %v5868
      %v5870 = vlaneseq
      %v5871 = vshrl.u32 %v5870, 7
      %v5872 = vsub.s32 %v5869, %v5871
      %v5873 = vrot.slane %v5859, %v5872
      %v5874 = vcombine.low %v5247, %v5505
      %v5875 = vcombine.high %v5247, %v5505
      %v5877 = vunpack.c.l.s4 1983009808
      %v5878 = vunpack.c.0.s8 %v5877
      %v5879 = vlaneseq
      %v5880 = vshrl.u32 %v5879, 7
      %v5881 = vsub.s32 %v5878, %v5880
      %v5882 = vrot.slane %v5874, %v5881
      %v5884 = vunpack.c.l.s4 1983009808
      %v5885 = vunpack.c.0.s8 %v5884
      %v5886 = vlaneseq
      %v5887 = vshrl.u32 %v5886, 7
      %v5888 = vsub.s32 %v5885, %v5887
      %v5889 = vrot.slane %v5875, %v5888
      %v5890 = vcombine.low %v5866, %v5882
      %v5891 = vcombine.high %v5866, %v5882
      %v5893 = vunpack.c.l.s4 1934713408
      %v5894 = vunpack.c.0.s8 %v5893
      %v5895 = vlaneseq
      %v5896 = vshrl.u32 %v5895, 7
      %v5897 = vsub.s32 %v5894, %v5896
      %v5898 = vrot.slane %v5890, %v5897
      %v5900 = vunpack.c.l.s4 1934713408
      %v5901 = vunpack.c.0.s8 %v5900
      %v5902 = vlaneseq
      %v5903 = vshrl.u32 %v5902, 7
      %v5904 = vsub.s32 %v5901, %v5903
      %v5905 = vrot.slane %v5891, %v5904
      %v5906 = vcombine.low %v5873, %v5889
      %v5907 = vcombine.high %v5873, %v5889
      %v5909 = vunpack.c.l.s4 1934713408
      %v5910 = vunpack.c.0.s8 %v5909
      %v5911 = vlaneseq
      %v5912 = vshrl.u32 %v5911, 7
      %v5913 = vsub.s32 %v5910, %v5912
      %v5914 = vrot.slane %v5906, %v5913
      %v5916 = vunpack.c.l.s4 1934713408
      %v5917 = vunpack.c.0.s8 %v5916
      %v5918 = vlaneseq
      %v5919 = vshrl.u32 %v5918, 7
      %v5920 = vsub.s32 %v5917, %v5919
      %v5921 = vrot.slane %v5907, %v5920
      %v5922 = vcombine.high %v5898, 0.0
      %v5923 = vcombine.high %v5905, 0.0
      %v5924 = vcombine.high %v5914, 0.0
      %v5925 = vcombine.high %v5921, 0.0
      %v5926 = vcombine.low %v5123, %v5381
      %v5927 = vcombine.high %v5123, %v5381
      %v5929 = vunpack.c.l.s4 1983009808
      %v5930 = vunpack.c.0.s8 %v5929
      %v5931 = vlaneseq
      %v5932 = vshrl.u32 %v5931, 7
      %v5933 = vsub.s32 %v5930, %v5932
      %v5934 = vrot.slane %v5926, %v5933
      %v5936 = vunpack.c.l.s4 1983009808
      %v5937 = vunpack.c.0.s8 %v5936
      %v5938 = vlaneseq
      %v5939 = vshrl.u32 %v5938, 7
      %v5940 = vsub.s32 %v5937, %v5939
      %v5941 = vrot.slane %v5927, %v5940
      %v5942 = vcombine.low %v5252, %v5510
      %v5943 = vcombine.high %v5252, %v5510
      %v5945 = vunpack.c.l.s4 1983009808
      %v5946 = vunpack.c.0.s8 %v5945
      %v5947 = vlaneseq
      %v5948 = vshrl.u32 %v5947, 7
      %v5949 = vsub.s32 %v5946, %v5948
      %v5950 = vrot.slane %v5942, %v5949
      %v5952 = vunpack.c.l.s4 1983009808
      %v5953 = vunpack.c.0.s8 %v5952
      %v5954 = vlaneseq
      %v5955 = vshrl.u32 %v5954, 7
      %v5956 = vsub.s32 %v5953, %v5955
      %v5957 = vrot.slane %v5943, %v5956
      %v5958 = vcombine.low %v5934, %v5950
      %v5959 = vcombine.high %v5934, %v5950
      %v5961 = vunpack.c.l.s4 1934713408
      %v5962 = vunpack.c.0.s8 %v5961
      %v5963 = vlaneseq
      %v5964 = vshrl.u32 %v5963, 7
      %v5965 = vsub.s32 %v5962, %v5964
      %v5966 = vrot.slane %v5958, %v5965
      %v5968 = vunpack.c.l.s4 1934713408
      %v5969 = vunpack.c.0.s8 %v5968
      %v5970 = vlaneseq
      %v5971 = vshrl.u32 %v5970, 7
      %v5972 = vsub.s32 %v5969, %v5971
      %v5973 = vrot.slane %v5959, %v5972
      %v5974 = vcombine.low %v5941, %v5957
      %v5975 = vcombine.high %v5941, %v5957
      %v5977 = vunpack.c.l.s4 1934713408
      %v5978 = vunpack.c.0.s8 %v5977
      %v5979 = vlaneseq
      %v5980 = vshrl.u32 %v5979, 7
      %v5981 = vsub.s32 %v5978, %v5980
      %v5982 = vrot.slane %v5974, %v5981
      %v5984 = vunpack.c.l.s4 1934713408
      %v5985 = vunpack.c.0.s8 %v5984
      %v5986 = vlaneseq
      %v5987 = vshrl.u32 %v5986, 7
      %v5988 = vsub.s32 %v5985, %v5987
      %v5989 = vrot.slane %v5975, %v5988
      %v5990 = vcombine.high %v5966, 0.0
      %v5991 = vcombine.high %v5973, 0.0
      %v5992 = vcombine.high %v5982, 0.0
      %v5993 = vcombine.high %v5989, 0.0
      %v5994 = vcombine.low %v5128, %v5386
      %v5995 = vcombine.high %v5128, %v5386
      %v5997 = vunpack.c.l.s4 1983009808
      %v5998 = vunpack.c.0.s8 %v5997
      %v5999 = vlaneseq
      %v6000 = vshrl.u32 %v5999, 7
      %v6001 = vsub.s32 %v5998, %v6000
      %v6002 = vrot.slane %v5994, %v6001
      %v6004 = vunpack.c.l.s4 1983009808
      %v6005 = vunpack.c.0.s8 %v6004
      %v6006 = vlaneseq
      %v6007 = vshrl.u32 %v6006, 7
      %v6008 = vsub.s32 %v6005, %v6007
      %v6009 = vrot.slane %v5995, %v6008
      %v6010 = vcombine.low %v5257, %v5515
      %v6011 = vcombine.high %v5257, %v5515
      %v6013 = vunpack.c.l.s4 1983009808
      %v6014 = vunpack.c.0.s8 %v6013
      %v6015 = vlaneseq
      %v6016 = vshrl.u32 %v6015, 7
      %v6017 = vsub.s32 %v6014, %v6016
      %v6018 = vrot.slane %v6010, %v6017
      %v6020 = vunpack.c.l.s4 1983009808
      %v6021 = vunpack.c.0.s8 %v6020
      %v6022 = vlaneseq
      %v6023 = vshrl.u32 %v6022, 7
      %v6024 = vsub.s32 %v6021, %v6023
      %v6025 = vrot.slane %v6011, %v6024
      %v6026 = vcombine.low %v6002, %v6018
      %v6027 = vcombine.high %v6002, %v6018
      %v6029 = vunpack.c.l.s4 1934713408
      %v6030 = vunpack.c.0.s8 %v6029
      %v6031 = vlaneseq
      %v6032 = vshrl.u32 %v6031, 7
      %v6033 = vsub.s32 %v6030, %v6032
      %v6034 = vrot.slane %v6026, %v6033
      %v6036 = vunpack.c.l.s4 1934713408
      %v6037 = vunpack.c.0.s8 %v6036
      %v6038 = vlaneseq
      %v6039 = vshrl.u32 %v6038, 7
      %v6040 = vsub.s32 %v6037, %v6039
      %v6041 = vrot.slane %v6027, %v6040
      %v6042 = vcombine.low %v6009, %v6025
      %v6043 = vcombine.high %v6009, %v6025
      %v6045 = vunpack.c.l.s4 1934713408
      %v6046 = vunpack.c.0.s8 %v6045
      %v6047 = vlaneseq
      %v6048 = vshrl.u32 %v6047, 7
      %v6049 = vsub.s32 %v6046, %v6048
      %v6050 = vrot.slane %v6042, %v6049
      %v6052 = vunpack.c.l.s4 1934713408
      %v6053 = vunpack.c.0.s8 %v6052
      %v6054 = vlaneseq
      %v6055 = vshrl.u32 %v6054, 7
      %v6056 = vsub.s32 %v6053, %v6055
      %v6057 = vrot.slane %v6043, %v6056
      %v6058 = vcombine.high %v6034, 0.0
      %v6059 = vcombine.high %v6041, 0.0
      %v6060 = vcombine.high %v6050, 0.0
      %v6061 = vcombine.high %v6057, 0.0
      %v6062 = vcombine.low %v5558, %v5565
      %v6064 = vunpack.c.l.s4 1983009808
      %v6065 = vunpack.c.0.s8 %v6064
      %v6066 = vlaneseq
      %v6067 = vshrl.u32 %v6066, 7
      %v6068 = vsub.s32 %v6065, %v6067
      %v6069 = vrot.slane %v6062, %v6068
      %v6070 = vcombine.low %v5582, %v5583
      %v6072 = vunpack.c.l.s4 1983009808
      %v6073 = vunpack.c.0.s8 %v6072
      %v6074 = vlaneseq
      %v6075 = vshrl.u32 %v6074, 7
      %v6076 = vsub.s32 %v6073, %v6075
      %v6077 = vrot.slane %v6070, %v6076
      %v6078 = vcombine.low %v5574, %v5581
      %v6080 = vunpack.c.l.s4 1983009808
      %v6081 = vunpack.c.0.s8 %v6080
      %v6082 = vlaneseq
      %v6083 = vshrl.u32 %v6082, 7
      %v6084 = vsub.s32 %v6081, %v6083
      %v6085 = vrot.slane %v6078, %v6084
      %v6086 = vcombine.low %v5584, %v5585
      %v6088 = vunpack.c.l.s4 1983009808
      %v6089 = vunpack.c.0.s8 %v6088
      %v6090 = vlaneseq
      %v6091 = vshrl.u32 %v6090, 7
      %v6092 = vsub.s32 %v6089, %v6091
      %v6093 = vrot.slane %v6086, %v6092
      %v6094 = vcombine.low %v6069, %v6077
      %v6095 = vcombine.high %v6069, %v6077
      %v6097 = vunpack.c.l.s4 1934713408
      %v6098 = vunpack.c.0.s8 %v6097
      %v6099 = vlaneseq
      %v6100 = vshrl.u32 %v6099, 7
      %v6101 = vsub.s32 %v6098, %v6100
      %v6102 = vrot.slane %v6094, %v6101
      %v6104 = vunpack.c.l.s4 1934713408
      %v6105 = vunpack.c.0.s8 %v6104
      %v6106 = vlaneseq
      %v6107 = vshrl.u32 %v6106, 7
      %v6108 = vsub.s32 %v6105, %v6107
      %v6109 = vrot.slane %v6095, %v6108
      %v6110 = vcombine.low %v6085, %v6093
      %v6111 = vcombine.high %v6085, %v6093
      %v6113 = vunpack.c.l.s4 1934713408
      %v6114 = vunpack.c.0.s8 %v6113
      %v6115 = vlaneseq
      %v6116 = vshrl.u32 %v6115, 7
      %v6117 = vsub.s32 %v6114, %v6116
      %v6118 = vrot.slane %v6110, %v6117
      %v6120 = vunpack.c.l.s4 1934713408
      %v6121 = vunpack.c.0.s8 %v6120
      %v6122 = vlaneseq
      %v6123 = vshrl.u32 %v6122, 7
      %v6124 = vsub.s32 %v6121, %v6123
      %v6125 = vrot.slane %v6111, %v6124
      %v6126 = vcombine.low %v6102, %v6118
      %v6127 = vcombine.high %v6102, %v6118
      %v6128 = vcombine.low %v6109, %v6125
      %v6129 = vcombine.high %v6109, %v6125
      %v6130 = vcombine.low %v5626, %v5633
      %v6132 = vunpack.c.l.s4 1983009808
      %v6133 = vunpack.c.0.s8 %v6132
      %v6134 = vlaneseq
      %v6135 = vshrl.u32 %v6134, 7
      %v6136 = vsub.s32 %v6133, %v6135
      %v6137 = vrot.slane %v6130, %v6136
      %v6138 = vcombine.low %v5650, %v5651
      %v6140 = vunpack.c.l.s4 1983009808
      %v6141 = vunpack.c.0.s8 %v6140
      %v6142 = vlaneseq
      %v6143 = vshrl.u32 %v6142, 7
      %v6144 = vsub.s32 %v6141, %v6143
      %v6145 = vrot.slane %v6138, %v6144
      %v6146 = vcombine.low %v5642, %v5649
      %v6148 = vunpack.c.l.s4 1983009808
      %v6149 = vunpack.c.0.s8 %v6148
      %v6150 = vlaneseq
      %v6151 = vshrl.u32 %v6150, 7
      %v6152 = vsub.s32 %v6149, %v6151
      %v6153 = vrot.slane %v6146, %v6152
      %v6154 = vcombine.low %v5652, %v5653
      %v6156 = vunpack.c.l.s4 1983009808
      %v6157 = vunpack.c.0.s8 %v6156
      %v6158 = vlaneseq
      %v6159 = vshrl.u32 %v6158, 7
      %v6160 = vsub.s32 %v6157, %v6159
      %v6161 = vrot.slane %v6154, %v6160
      %v6162 = vcombine.low %v6137, %v6145
      %v6163 = vcombine.high %v6137, %v6145
      %v6165 = vunpack.c.l.s4 1934713408
      %v6166 = vunpack.c.0.s8 %v6165
      %v6167 = vlaneseq
      %v6168 = vshrl.u32 %v6167, 7
      %v6169 = vsub.s32 %v6166, %v6168
      %v6170 = vrot.slane %v6162, %v6169
      %v6172 = vunpack.c.l.s4 1934713408
      %v6173 = vunpack.c.0.s8 %v6172
      %v6174 = vlaneseq
      %v6175 = vshrl.u32 %v6174, 7
      %v6176 = vsub.s32 %v6173, %v6175
      %v6177 = vrot.slane %v6163, %v6176
      %v6178 = vcombine.low %v6153, %v6161
      %v6179 = vcombine.high %v6153, %v6161
      %v6181 = vunpack.c.l.s4 1934713408
      %v6182 = vunpack.c.0.s8 %v6181
      %v6183 = vlaneseq
      %v6184 = vshrl.u32 %v6183, 7
      %v6185 = vsub.s32 %v6182, %v6184
      %v6186 = vrot.slane %v6178, %v6185
      %v6188 = vunpack.c.l.s4 1934713408
      %v6189 = vunpack.c.0.s8 %v6188
      %v6190 = vlaneseq
      %v6191 = vshrl.u32 %v6190, 7
      %v6192 = vsub.s32 %v6189, %v6191
      %v6193 = vrot.slane %v6179, %v6192
      %v6194 = vcombine.low %v6170, %v6186
      %v6195 = vcombine.high %v6170, %v6186
      %v6196 = vcombine.low %v6177, %v6193
      %v6197 = vcombine.high %v6177, %v6193
      %v6198 = vcombine.low %v5694, %v5701
      %v6200 = vunpack.c.l.s4 1983009808
      %v6201 = vunpack.c.0.s8 %v6200
      %v6202 = vlaneseq
      %v6203 = vshrl.u32 %v6202, 7
      %v6204 = vsub.s32 %v6201, %v6203
      %v6205 = vrot.slane %v6198, %v6204
      %v6206 = vcombine.low %v5718, %v5719
      %v6208 = vunpack.c.l.s4 1983009808
      %v6209 = vunpack.c.0.s8 %v6208
      %v6210 = vlaneseq
      %v6211 = vshrl.u32 %v6210, 7
      %v6212 = vsub.s32 %v6209, %v6211
      %v6213 = vrot.slane %v6206, %v6212
      %v6214 = vcombine.low %v5710, %v5717
      %v6216 = vunpack.c.l.s4 1983009808
      %v6217 = vunpack.c.0.s8 %v6216
      %v6218 = vlaneseq
      %v6219 = vshrl.u32 %v6218, 7
      %v6220 = vsub.s32 %v6217, %v6219
      %v6221 = vrot.slane %v6214, %v6220
      %v6222 = vcombine.low %v5720, %v5721
      %v6224 = vunpack.c.l.s4 1983009808
      %v6225 = vunpack.c.0.s8 %v6224
      %v6226 = vlaneseq
      %v6227 = vshrl.u32 %v6226, 7
      %v6228 = vsub.s32 %v6225, %v6227
      %v6229 = vrot.slane %v6222, %v6228
      %v6230 = vcombine.low %v6205, %v6213
      %v6231 = vcombine.high %v6205, %v6213
      %v6233 = vunpack.c.l.s4 1934713408
      %v6234 = vunpack.c.0.s8 %v6233
      %v6235 = vlaneseq
      %v6236 = vshrl.u32 %v6235, 7
      %v6237 = vsub.s32 %v6234, %v6236
      %v6238 = vrot.slane %v6230, %v6237
      %v6240 = vunpack.c.l.s4 1934713408
      %v6241 = vunpack.c.0.s8 %v6240
      %v6242 = vlaneseq
      %v6243 = vshrl.u32 %v6242, 7
      %v6244 = vsub.s32 %v6241, %v6243
      %v6245 = vrot.slane %v6231, %v6244
      %v6246 = vcombine.low %v6221, %v6229
      %v6247 = vcombine.high %v6221, %v6229
      %v6249 = vunpack.c.l.s4 1934713408
      %v6250 = vunpack.c.0.s8 %v6249
      %v6251 = vlaneseq
      %v6252 = vshrl.u32 %v6251, 7
      %v6253 = vsub.s32 %v6250, %v6252
      %v6254 = vrot.slane %v6246, %v6253
      %v6256 = vunpack.c.l.s4 1934713408
      %v6257 = vunpack.c.0.s8 %v6256
      %v6258 = vlaneseq
      %v6259 = vshrl.u32 %v6258, 7
      %v6260 = vsub.s32 %v6257, %v6259
      %v6261 = vrot.slane %v6247, %v6260
      %v6262 = vcombine.low %v6238, %v6254
      %v6263 = vcombine.high %v6238, %v6254
      %v6264 = vcombine.low %v6245, %v6261
      %v6265 = vcombine.high %v6245, %v6261
      %v6266 = vcombine.low %v5762, %v5769
      %v6268 = vunpack.c.l.s4 1983009808
      %v6269 = vunpack.c.0.s8 %v6268
      %v6270 = vlaneseq
      %v6271 = vshrl.u32 %v6270, 7
      %v6272 = vsub.s32 %v6269, %v6271
      %v6273 = vrot.slane %v6266, %v6272
      %v6274 = vcombine.low %v5786, %v5787
      %v6276 = vunpack.c.l.s4 1983009808
      %v6277 = vunpack.c.0.s8 %v6276
      %v6278 = vlaneseq
      %v6279 = vshrl.u32 %v6278, 7
      %v6280 = vsub.s32 %v6277, %v6279
      %v6281 = vrot.slane %v6274, %v6280
      %v6282 = vcombine.low %v5778, %v5785
      %v6284 = vunpack.c.l.s4 1983009808
      %v6285 = vunpack.c.0.s8 %v6284
      %v6286 = vlaneseq
      %v6287 = vshrl.u32 %v6286, 7
      %v6288 = vsub.s32 %v6285, %v6287
      %v6289 = vrot.slane %v6282, %v6288
      %v6290 = vcombine.low %v5788, %v5789
      %v6292 = vunpack.c.l.s4 1983009808
      %v6293 = vunpack.c.0.s8 %v6292
      %v6294 = vlaneseq
      %v6295 = vshrl.u32 %v6294, 7
      %v6296 = vsub.s32 %v6293, %v6295
      %v6297 = vrot.slane %v6290, %v6296
      %v6298 = vcombine.low %v6273, %v6281
      %v6299 = vcombine.high %v6273, %v6281
      %v6301 = vunpack.c.l.s4 1934713408
      %v6302 = vunpack.c.0.s8 %v6301
      %v6303 = vlaneseq
      %v6304 = vshrl.u32 %v6303, 7
      %v6305 = vsub.s32 %v6302, %v6304
      %v6306 = vrot.slane %v6298, %v6305
      %v6308 = vunpack.c.l.s4 1934713408
      %v6309 = vunpack.c.0.s8 %v6308
      %v6310 = vlaneseq
      %v6311 = vshrl.u32 %v6310, 7
      %v6312 = vsub.s32 %v6309, %v6311
      %v6313 = vrot.slane %v6299, %v6312
      %v6314 = vcombine.low %v6289, %v6297
      %v6315 = vcombine.high %v6289, %v6297
      %v6317 = vunpack.c.l.s4 1934713408
      %v6318 = vunpack.c.0.s8 %v6317
      %v6319 = vlaneseq
      %v6320 = vshrl.u32 %v6319, 7
      %v6321 = vsub.s32 %v6318, %v6320
      %v6322 = vrot.slane %v6314, %v6321
      %v6324 = vunpack.c.l.s4 1934713408
      %v6325 = vunpack.c.0.s8 %v6324
      %v6326 = vlaneseq
      %v6327 = vshrl.u32 %v6326, 7
      %v6328 = vsub.s32 %v6325, %v6327
      %v6329 = vrot.slane %v6315, %v6328
      %v6330 = vcombine.low %v6306, %v6322
      %v6331 = vcombine.high %v6306, %v6322
      %v6332 = vcombine.low %v6313, %v6329
      %v6333 = vcombine.high %v6313, %v6329
      %v6334 = vcombine.low %v5830, %v5837
      %v6336 = vunpack.c.l.s4 1983009808
      %v6337 = vunpack.c.0.s8 %v6336
      %v6338 = vlaneseq
      %v6339 = vshrl.u32 %v6338, 7
      %v6340 = vsub.s32 %v6337, %v6339
      %v6341 = vrot.slane %v6334, %v6340
      %v6342 = vcombine.low %v5854, %v5855
      %v6344 = vunpack.c.l.s4 1983009808
      %v6345 = vunpack.c.0.s8 %v6344
      %v6346 = vlaneseq
      %v6347 = vshrl.u32 %v6346, 7
      %v6348 = vsub.s32 %v6345, %v6347
      %v6349 = vrot.slane %v6342, %v6348
      %v6350 = vcombine.low %v5846, %v5853
      %v6352 = vunpack.c.l.s4 1983009808
      %v6353 = vunpack.c.0.s8 %v6352
      %v6354 = vlaneseq
      %v6355 = vshrl.u32 %v6354, 7
      %v6356 = vsub.s32 %v6353, %v6355
      %v6357 = vrot.slane %v6350, %v6356
      %v6358 = vcombine.low %v5856, %v5857
      %v6360 = vunpack.c.l.s4 1983009808
      %v6361 = vunpack.c.0.s8 %v6360
      %v6362 = vlaneseq
      %v6363 = vshrl.u32 %v6362, 7
      %v6364 = vsub.s32 %v6361, %v6363
      %v6365 = vrot.slane %v6358, %v6364
      %v6366 = vcombine.low %v6341, %v6349
      %v6367 = vcombine.high %v6341, %v6349
      %v6369 = vunpack.c.l.s4 1934713408
      %v6370 = vunpack.c.0.s8 %v6369
      %v6371 = vlaneseq
      %v6372 = vshrl.u32 %v6371, 7
      %v6373 = vsub.s32 %v6370, %v6372
      %v6374 = vrot.slane %v6366, %v6373
      %v6376 = vunpack.c.l.s4 1934713408
      %v6377 = vunpack.c.0.s8 %v6376
      %v6378 = vlaneseq
      %v6379 = vshrl.u32 %v6378, 7
      %v6380 = vsub.s32 %v6377, %v6379
      %v6381 = vrot.slane %v6367, %v6380
      %v6382 = vcombine.low %v6357, %v6365
      %v6383 = vcombine.high %v6357, %v6365
      %v6385 = vunpack.c.l.s4 1934713408
      %v6386 = vunpack.c.0.s8 %v6385
      %v6387 = vlaneseq
      %v6388 = vshrl.u32 %v6387, 7
      %v6389 = vsub.s32 %v6386, %v6388
      %v6390 = vrot.slane %v6382, %v6389
      %v6392 = vunpack.c.l.s4 1934713408
      %v6393 = vunpack.c.0.s8 %v6392
      %v6394 = vlaneseq
      %v6395 = vshrl.u32 %v6394, 7
      %v6396 = vsub.s32 %v6393, %v6395
      %v6397 = vrot.slane %v6383, %v6396
      %v6398 = vcombine.low %v6374, %v6390
      %v6399 = vcombine.high %v6374, %v6390
      %v6400 = vcombine.low %v6381, %v6397
      %v6401 = vcombine.high %v6381, %v6397
      %v6402 = vcombine.low %v5898, %v5905
      %v6404 = vunpack.c.l.s4 1983009808
      %v6405 = vunpack.c.0.s8 %v6404
      %v6406 = vlaneseq
      %v6407 = vshrl.u32 %v6406, 7
      %v6408 = vsub.s32 %v6405, %v6407
      %v6409 = vrot.slane %v6402, %v6408
      %v6410 = vcombine.low %v5922, %v5923
      %v6412 = vunpack.c.l.s4 1983009808
      %v6413 = vunpack.c.0.s8 %v6412
      %v6414 = vlaneseq
      %v6415 = vshrl.u32 %v6414, 7
      %v6416 = vsub.s32 %v6413, %v6415
      %v6417 = vrot.slane %v6410, %v6416
      %v6418 = vcombine.low %v5914, %v5921
      %v6420 = vunpack.c.l.s4 1983009808
      %v6421 = vunpack.c.0.s8 %v6420
      %v6422 = vlaneseq
      %v6423 = vshrl.u32 %v6422, 7
      %v6424 = vsub.s32 %v6421, %v6423
      %v6425 = vrot.slane %v6418, %v6424
      %v6426 = vcombine.low %v5924, %v5925
      %v6428 = vunpack.c.l.s4 1983009808
      %v6429 = vunpack.c.0.s8 %v6428
      %v6430 = vlaneseq
      %v6431 = vshrl.u32 %v6430, 7
      %v6432 = vsub.s32 %v6429, %v6431
      %v6433 = vrot.slane %v6426, %v6432
      %v6434 = vcombine.low %v6409, %v6417
      %v6435 = vcombine.high %v6409, %v6417
      %v6437 = vunpack.c.l.s4 1934713408
      %v6438 = vunpack.c.0.s8 %v6437
      %v6439 = vlaneseq
      %v6440 = vshrl.u32 %v6439, 7
      %v6441 = vsub.s32 %v6438, %v6440
      %v6442 = vrot.slane %v6434, %v6441
      %v6444 = vunpack.c.l.s4 1934713408
      %v6445 = vunpack.c.0.s8 %v6444
      %v6446 = vlaneseq
      %v6447 = vshrl.u32 %v6446, 7
      %v6448 = vsub.s32 %v6445, %v6447
      %v6449 = vrot.slane %v6435, %v6448
      %v6450 = vcombine.low %v6425, %v6433
      %v6451 = vcombine.high %v6425, %v6433
      %v6453 = vunpack.c.l.s4 1934713408
      %v6454 = vunpack.c.0.s8 %v6453
      %v6455 = vlaneseq
      %v6456 = vshrl.u32 %v6455, 7
      %v6457 = vsub.s32 %v6454, %v6456
      %v6458 = vrot.slane %v6450, %v6457
      %v6460 = vunpack.c.l.s4 1934713408
      %v6461 = vunpack.c.0.s8 %v6460
      %v6462 = vlaneseq
      %v6463 = vshrl.u32 %v6462, 7
      %v6464 = vsub.s32 %v6461, %v6463
      %v6465 = vrot.slane %v6451, %v6464
      %v6466 = vcombine.low %v6442, %v6458
      %v6467 = vcombine.high %v6442, %v6458
      %v6468 = vcombine.low %v6449, %v6465
      %v6469 = vcombine.high %v6449, %v6465
      %v6470 = vcombine.low %v5966, %v5973
      %v6472 = vunpack.c.l.s4 1983009808
      %v6473 = vunpack.c.0.s8 %v6472
      %v6474 = vlaneseq
      %v6475 = vshrl.u32 %v6474, 7
      %v6476 = vsub.s32 %v6473, %v6475
      %v6477 = vrot.slane %v6470, %v6476
      %v6478 = vcombine.low %v5990, %v5991
      %v6480 = vunpack.c.l.s4 1983009808
      %v6481 = vunpack.c.0.s8 %v6480
      %v6482 = vlaneseq
      %v6483 = vshrl.u32 %v6482, 7
      %v6484 = vsub.s32 %v6481, %v6483
      %v6485 = vrot.slane %v6478, %v6484
      %v6486 = vcombine.low %v5982, %v5989
      %v6488 = vunpack.c.l.s4 1983009808
      %v6489 = vunpack.c.0.s8 %v6488
      %v6490 = vlaneseq
      %v6491 = vshrl.u32 %v6490, 7
      %v6492 = vsub.s32 %v6489, %v6491
      %v6493 = vrot.slane %v6486, %v6492
      %v6494 = vcombine.low %v5992, %v5993
      %v6496 = vunpack.c.l.s4 1983009808
      %v6497 = vunpack.c.0.s8 %v6496
      %v6498 = vlaneseq
      %v6499 = vshrl.u32 %v6498, 7
      %v6500 = vsub.s32 %v6497, %v6499
      %v6501 = vrot.slane %v6494, %v6500
      %v6502 = vcombine.low %v6477, %v6485
      %v6503 = vcombine.high %v6477, %v6485
      %v6505 = vunpack.c.l.s4 1934713408
      %v6506 = vunpack.c.0.s8 %v6505
      %v6507 = vlaneseq
      %v6508 = vshrl.u32 %v6507, 7
      %v6509 = vsub.s32 %v6506, %v6508
      %v6510 = vrot.slane %v6502, %v6509
      %v6512 = vunpack.c.l.s4 1934713408
      %v6513 = vunpack.c.0.s8 %v6512
      %v6514 = vlaneseq
      %v6515 = vshrl.u32 %v6514, 7
      %v6516 = vsub.s32 %v6513, %v6515
      %v6517 = vrot.slane %v6503, %v6516
      %v6518 = vcombine.low %v6493, %v6501
      %v6519 = vcombine.high %v6493, %v6501
      %v6521 = vunpack.c.l.s4 1934713408
      %v6522 = vunpack.c.0.s8 %v6521
      %v6523 = vlaneseq
      %v6524 = vshrl.u32 %v6523, 7
      %v6525 = vsub.s32 %v6522, %v6524
      %v6526 = vrot.slane %v6518, %v6525
      %v6528 = vunpack.c.l.s4 1934713408
      %v6529 = vunpack.c.0.s8 %v6528
      %v6530 = vlaneseq
      %v6531 = vshrl.u32 %v6530, 7
      %v6532 = vsub.s32 %v6529, %v6531
      %v6533 = vrot.slane %v6519, %v6532
      %v6534 = vcombine.low %v6510, %v6526
      %v6535 = vcombine.high %v6510, %v6526
      %v6536 = vcombine.low %v6517, %v6533
      %v6537 = vcombine.high %v6517, %v6533
      %v6538 = vcombine.low %v6034, %v6041
      %v6540 = vunpack.c.l.s4 1983009808
      %v6541 = vunpack.c.0.s8 %v6540
      %v6542 = vlaneseq
      %v6543 = vshrl.u32 %v6542, 7
      %v6544 = vsub.s32 %v6541, %v6543
      %v6545 = vrot.slane %v6538, %v6544
      %v6546 = vcombine.low %v6058, %v6059
      %v6548 = vunpack.c.l.s4 1983009808
      %v6549 = vunpack.c.0.s8 %v6548
      %v6550 = vlaneseq
      %v6551 = vshrl.u32 %v6550, 7
      %v6552 = vsub.s32 %v6549, %v6551
      %v6553 = vrot.slane %v6546, %v6552
      %v6554 = vcombine.low %v6050, %v6057
      %v6556 = vunpack.c.l.s4 1983009808
      %v6557 = vunpack.c.0.s8 %v6556
      %v6558 = vlaneseq
      %v6559 = vshrl.u32 %v6558, 7
      %v6560 = vsub.s32 %v6557, %v6559
      %v6561 = vrot.slane %v6554, %v6560
      %v6562 = vcombine.low %v6060, %v6061
      %v6564 = vunpack.c.l.s4 1983009808
      %v6565 = vunpack.c.0.s8 %v6564
      %v6566 = vlaneseq
      %v6567 = vshrl.u32 %v6566, 7
      %v6568 = vsub.s32 %v6565, %v6567
      %v6569 = vrot.slane %v6562, %v6568
      %v6570 = vcombine.low %v6545, %v6553
      %v6571 = vcombine.high %v6545, %v6553
      %v6573 = vunpack.c.l.s4 1934713408
      %v6574 = vunpack.c.0.s8 %v6573
      %v6575 = vlaneseq
      %v6576 = vshrl.u32 %v6575, 7
      %v6577 = vsub.s32 %v6574, %v6576
      %v6578 = vrot.slane %v6570, %v6577
      %v6580 = vunpack.c.l.s4 1934713408
      %v6581 = vunpack.c.0.s8 %v6580
      %v6582 = vlaneseq
      %v6583 = vshrl.u32 %v6582, 7
      %v6584 = vsub.s32 %v6581, %v6583
      %v6585 = vrot.slane %v6571, %v6584
      %v6586 = vcombine.low %v6561, %v6569
      %v6587 = vcombine.high %v6561, %v6569
      %v6589 = vunpack.c.l.s4 1934713408
      %v6590 = vunpack.c.0.s8 %v6589
      %v6591 = vlaneseq
      %v6592 = vshrl.u32 %v6591, 7
      %v6593 = vsub.s32 %v6590, %v6592
      %v6594 = vrot.slane %v6586, %v6593
      %v6596 = vunpack.c.l.s4 1934713408
      %v6597 = vunpack.c.0.s8 %v6596
      %v6598 = vlaneseq
      %v6599 = vshrl.u32 %v6598, 7
      %v6600 = vsub.s32 %v6597, %v6599
      %v6601 = vrot.slane %v6587, %v6600
      %v6602 = vcombine.low %v6578, %v6594
      %v6603 = vcombine.high %v6578, %v6594
      %v6604 = vcombine.low %v6585, %v6601
      %v6605 = vcombine.high %v6585, %v6601
      %6614 = vrot.lane.b32.xlu0 %v6127, 8
      %v6615 = vpop.permute.xlu0 %6614
      %6616 = vrot.lane.b32.xlu0 %v6195, 8
      %v6617 = vpop.permute.xlu0 %6616
      %6618 = vrot.lane.b32.xlu0 %v6263, 8
      %v6619 = vpop.permute.xlu0 %6618
      %6620 = vrot.lane.b32.xlu0 %v6331, 8
      %v6621 = vpop.permute.xlu0 %6620
      %6622 = vrot.lane.b32.xlu0 %v6399, 8
      %v6623 = vpop.permute.xlu0 %6622
      %6624 = vrot.lane.b32.xlu0 %v6467, 8
      %v6625 = vpop.permute.xlu0 %6624
      %6626 = vrot.lane.b32.xlu0 %v6535, 8
      %v6627 = vpop.permute.xlu0 %6626
      %6628 = vrot.lane.b32.xlu0 %v6603, 8
      %v6629 = vpop.permute.xlu0 %6628
      %6646 = vrot.lane.b32.xlu0 %v6128, 16
      %v6647 = vpop.permute.xlu0 %6646
      %6648 = vrot.lane.b32.xlu0 %v6196, 16
      %v6649 = vpop.permute.xlu0 %6648
      %6650 = vrot.lane.b32.xlu0 %v6264, 16
      %v6651 = vpop.permute.xlu0 %6650
      %6652 = vrot.lane.b32.xlu0 %v6332, 16
      %v6653 = vpop.permute.xlu0 %6652
      %6654 = vrot.lane.b32.xlu0 %v6400, 16
      %v6655 = vpop.permute.xlu0 %6654
      %6656 = vrot.lane.b32.xlu0 %v6468, 16
      %v6657 = vpop.permute.xlu0 %6656
      %6658 = vrot.lane.b32.xlu0 %v6536, 16
      %v6659 = vpop.permute.xlu0 %6658
      %6660 = vrot.lane.b32.xlu0 %v6604, 16
      %v6661 = vpop.permute.xlu0 %6660
      %6678 = vrot.lane.b32.xlu0 %v6129, 24
      %v6679 = vpop.permute.xlu0 %6678
      %6680 = vrot.lane.b32.xlu0 %v6197, 24
      %v6681 = vpop.permute.xlu0 %6680
      %6682 = vrot.lane.b32.xlu0 %v6265, 24
      %v6683 = vpop.permute.xlu0 %6682
      %6684 = vrot.lane.b32.xlu0 %v6333, 24
      %v6685 = vpop.permute.xlu0 %6684
      %6686 = vrot.lane.b32.xlu0 %v6401, 24
      %v6687 = vpop.permute.xlu0 %6686
      %6688 = vrot.lane.b32.xlu0 %v6469, 24
      %v6689 = vpop.permute.xlu0 %6688
      %6690 = vrot.lane.b32.xlu0 %v6537, 24
      %v6691 = vpop.permute.xlu0 %6690
      %6692 = vrot.lane.b32.xlu0 %v6605, 24
      %v6693 = vpop.permute.xlu0 %6692
      %v6702 = vsel %vm4036, %v6126, %v6615
      %v6703 = vsel %vm4036, %v6194, %v6617
      %v6704 = vsel %vm4036, %v6262, %v6619
      %v6705 = vsel %vm4036, %v6330, %v6621
      %v6706 = vsel %vm4036, %v6398, %v6623
      %v6707 = vsel %vm4036, %v6466, %v6625
      %v6708 = vsel %vm4036, %v6534, %v6627
      %v6709 = vsel %vm4036, %v6602, %v6629
      %vm6710 = vcmask 130048
      %v6711 = vsel %vm6710, %v6702, %v6647
      %v6712 = vsel %vm6710, %v6703, %v6649
      %v6713 = vsel %vm6710, %v6704, %v6651
      %v6714 = vsel %vm6710, %v6705, %v6653
      %v6715 = vsel %vm6710, %v6706, %v6655
      %v6716 = vsel %vm6710, %v6707, %v6657
      %v6717 = vsel %vm6710, %v6708, %v6659
      %v6718 = vsel %vm6710, %v6709, %v6661
      %vm6719 = vcmask 195584
      %v6720 = vsel %vm6719, %v6711, %v6679
      %v6721 = vsel %vm6719, %v6712, %v6681
      %v6722 = vsel %vm6719, %v6713, %v6683
      %v6723 = vsel %vm6719, %v6714, %v6685
      %v6724 = vsel %vm6719, %v6715, %v6687
      %v6725 = vsel %vm6719, %v6716, %v6689
      %v6726 = vsel %vm6719, %v6717, %v6691
      %v6727 = vsel %vm6719, %v6718, %v6693
      %v6728 = vld [vmem:[%s1] sm:$0xff]
      %v6729 = vld [vmem:[%s1 + $0x8] sm:$0xff]
      %v6730 = vld [vmem:[%s1 + $0x10] sm:$0xff]
      %v6731 = vld [vmem:[%s1 + $0x18] sm:$0xff]
      %v6732 = vld [vmem:[%s2 + $0x3] sm:$0x1]
      %v6733 = vlaneseq
      %v6734 = vshrl.u32 %v6733, 7
      %v6735 = vsub.s32 0, %v6734
      %v6736 = vrot.slane %v6732, %v6735
      %6741 = vrot.lane.b32.xlu0 %v6728, 32
      %v6742 = vpop.permute.xlu0 %6741
      %6743 = vrot.lane.b32.xlu0 %v6729, 32
      %v6744 = vpop.permute.xlu0 %6743
      %6745 = vrot.lane.b32.xlu0 %v6730, 32
      %v6746 = vpop.permute.xlu0 %6745
      %6747 = vrot.lane.b32.xlu0 %v6731, 32
      %v6748 = vpop.permute.xlu0 %6747
      %v6754 = vsel %vm211, %v6720, 0
      %v6757 = vsel %vm211, %v6721, 0
      %v6760 = vsel %vm211, %v6722, 0
      %v6763 = vsel %vm211, %v6723, 0
      %v6766 = vsel %vm211, %v6724, 0
      %v6769 = vsel %vm211, %v6725, 0
      %v6772 = vsel %vm211, %v6726, 0
      %v6775 = vsel %vm211, %v6727, 0
      %6777 = vmatprep.subr.mxu0 0.0
      %6778 = vmatpush1.msra.mxu0 0.0
      %6779 = vmatprep.subr.mxu0 0.0
      %6780 = vmatpush1.msra.mxu0 0.0
      %6781 = vmatprep.subr.mxu0 0.0
      %6782 = vmatpush1.msra.mxu0 0.0
      %6783 = vmatprep.subr.mxu0 0.0
      %6784 = vmatpush1.msra.mxu0 0.0
      %6785 = vmatprep.subr.mxu0 0.0
      %6786 = vmatpush1.msra.mxu0 0.0
      %6787 = vmatprep.subr.mxu0 0.0
      %6788 = vmatpush1.msra.mxu0 0.0
      %6789 = vmatprep.subr.mxu0 0.0
      %6790 = vmatpush1.msra.mxu0 0.0
      %6791 = vmatprep.subr.mxu0 0.0
      %6792 = vmatpush1.msra.mxu0 0.0
      %6793 = vmatprep.subr.mxu0 0.0
      %6794 = vmatpush1.msra.mxu0 0.0
      %6795 = vmatprep.subr.mxu0 0.0
      %6796 = vmatpush1.msra.mxu0 0.0
      %6797 = vmatprep.subr.mxu0 0.0
      %6798 = vmatpush1.msra.mxu0 0.0
      %6799 = vmatprep.subr.mxu0 0.0
      %6800 = vmatpush1.msra.mxu0 0.0
      %6801 = vmatprep.subr.mxu0 0.0
      %6802 = vmatpush1.msra.mxu0 %v6748
      %6803 = vmatprep.subr.mxu0 0.0
      %6804 = vmatpush1.msra.mxu0 %v6746
      %6805 = vmatprep.subr.mxu0 0.0
      %6806 = vmatpush1.msra.mxu0 %v6744
      %6807 = vmatprep.subr.mxu0 0.0
      %6808 = vmatpush1.msra.mxu0 %v6742
      %6809 = vmatprep.subr.mxu0 0.0
      %6810 = vmatpush2.msra.mxu0 0.0
      %6811 = vmatprep.subr.mxu0 0.0
      %6812 = vmatpush2.msra.mxu0 0.0
      %6813 = vmatprep.subr.mxu0 0.0
      %6814 = vmatpush2.msra.mxu0 0.0
      %6815 = vmatprep.subr.mxu0 0.0
      %6816 = vmatpush2.msra.mxu0 0.0
      %6817 = vmatprep.subr.mxu0 0.0
      %6818 = vmatpush2.msra.mxu0 0.0
      %6819 = vmatprep.subr.mxu0 0.0
      %6820 = vmatpush2.msra.mxu0 0.0
      %6821 = vmatprep.subr.mxu0 0.0
      %6822 = vmatpush2.msra.mxu0 0.0
      %6823 = vmatprep.subr.mxu0 0.0
      %6824 = vmatpush2.msra.mxu0 0.0
      %6825 = vmatprep.subr.mxu0 0.0
      %6826 = vmatpush2.msra.mxu0 0.0
      %6827 = vmatprep.subr.mxu0 0.0
      %6828 = vmatpush2.msra.mxu0 0.0
      %6829 = vmatprep.subr.mxu0 0.0
      %6830 = vmatpush2.msra.mxu0 0.0
      %6831 = vmatprep.subr.mxu0 0.0
      %6832 = vmatpush2.msra.mxu0 0.0
      %6833 = vmatprep.subr.mxu0 0.0
      %6834 = vmatpush2.msra.mxu0 0.0
      %6835 = vmatprep.subr.mxu0 0.0
      %6836 = vmatpush2.msra.mxu0 0.0
      %6837 = vmatprep.subr.mxu0 0.0
      %6838 = vmatpush2.msra.mxu0 0.0
      %6839 = vmatprep.subr.mxu0 0.0
      %6840 = vmatpush2.msra.mxu0 0.0
      %6841 = vmatprep.mubr.f32.mxu0 0.0
      %6842 = vmatmul.mubr.f32.gmra.mxu0 %v6754
      %v6843 = vpop.f32.mrf.mxu0
      %v6844 = vadd.f32 %v6736, %v6843
      %v6845 = vpop.f32.mrf.mxu0
      %6846 = vmatprep.mubr.f32.mxu0 0.0
      %6847 = vmatmul.mubr.f32.gmra.mxu0 %v6757
      %v6848 = vpop.f32.mrf.mxu0
      %v6849 = vadd.f32 %v6736, %v6848
      %v6850 = vpop.f32.mrf.mxu0
      %6851 = vmatprep.mubr.f32.mxu0 0.0
      %6852 = vmatmul.mubr.f32.gmra.mxu0 %v6760
      %v6853 = vpop.f32.mrf.mxu0
      %v6854 = vadd.f32 %v6736, %v6853
      %v6855 = vpop.f32.mrf.mxu0
      %6856 = vmatprep.mubr.f32.mxu0 0.0
      %6857 = vmatmul.mubr.f32.gmra.mxu0 %v6763
      %v6858 = vpop.f32.mrf.mxu0
      %v6859 = vadd.f32 %v6736, %v6858
      %v6860 = vpop.f32.mrf.mxu0
      %6861 = vmatprep.mubr.f32.mxu0 0.0
      %6862 = vmatmul.mubr.f32.gmra.mxu0 %v6766
      %v6863 = vpop.f32.mrf.mxu0
      %v6864 = vadd.f32 %v6736, %v6863
      %v6865 = vpop.f32.mrf.mxu0
      %6866 = vmatprep.mubr.f32.mxu0 0.0
      %6867 = vmatmul.mubr.f32.gmra.mxu0 %v6769
      %v6868 = vpop.f32.mrf.mxu0
      %v6869 = vadd.f32 %v6736, %v6868
      %v6870 = vpop.f32.mrf.mxu0
      %6871 = vmatprep.mubr.f32.mxu0 0.0
      %6872 = vmatmul.mubr.f32.gmra.mxu0 %v6772
      %v6873 = vpop.f32.mrf.mxu0
      %v6874 = vadd.f32 %v6736, %v6873
      %v6875 = vpop.f32.mrf.mxu0
      %6876 = vmatprep.mubr.f32.mxu0 0.0
      %6877 = vmatmul.mubr.f32.gmra.mxu0 %v6775
      %v6878 = vpop.f32.mrf.mxu0
      %v6879 = vadd.f32 %v6736, %v6878
      %v6880 = vpop.f32.mrf.mxu0
      %6881 = vdwg.mxu0
      %v6882 = vadd.f32 %v6844, %v191
      %v6883 = vadd.f32 %v6849, %v192
      %v6884 = vadd.f32 %v6854, %v193
      %v6885 = vadd.f32 %v6859, %v194
      %v6886 = vadd.f32 %v6864, %v195
      %v6887 = vadd.f32 %v6869, %v196
      %v6888 = vadd.f32 %v6874, %v197
      %v6889 = vadd.f32 %v6879, %v198
      %6890 = vst.msk [vmem:[%s170] sm:$0xff] %vm211, %v6882
      %6891 = vst.msk [vmem:[%s170 + $0x8] sm:$0xff] %vm211, %v6883
      %6892 = vst.msk [vmem:[%s170 + $0x10] sm:$0xff] %vm211, %v6884
      %6893 = vst.msk [vmem:[%s170 + $0x18] sm:$0xff] %vm211, %v6885
      %6894 = vst.msk [vmem:[%s170 + $0x20] sm:$0xff] %vm211, %v6886
      %6895 = vst.msk [vmem:[%s170 + $0x28] sm:$0xff] %vm211, %v6887
      %6896 = vst.msk [vmem:[%s170 + $0x30] sm:$0xff] %vm211, %v6888
      %6897 = vst.msk [vmem:[%s170 + $0x38] sm:$0xff] %vm211, %v6889
      %p6898 = scmp.lt.s32.totalorder %s14, 1
      %s6899 = scalar_select %p6898, %s14, 1
      %s6900 = smul.addr %s6899, 8
      %s6901 = smul.addr %s6900, 8
      %s6902 = scalar_lea.vmem %s3, %s6901
      // Predicated region
      $region33: #{attention_forward.1} parent=31 // pred_check
        %p6903 = pneg %p100
      $region34: #{attention_forward.1} parent=31 // pred_check_branch
        %6905 = sbr.rel (%p6903) target = $region36
      $region35: #{attention_forward.1} parent=31 // pred_region
        _
      $region36: #{attention_forward.1} parent=31 // pred_fallthru
        _
    $region32: #{attention_forward.1} parent=5 // pred_fallthru
      _
    %p6906 = scmp.le.s32.totalorder 2, %s9
    // Predicated region
    $region37: #{attention_forward.1} parent=5 // pred_check
      %p6907 = pneg %p6906
    $region38: #{attention_forward.1} parent=5 // pred_check_branch
      %6909 = sbr.rel (%p6907) target = $region40
    $region39: #{attention_forward.1} parent=5 // pred_region
      %s6910 = ssub.s32 %s9, 2
      // Predicated region
      $region41: #{attention_forward.1} parent=39 // pred_check
        %p6911 = pneg %p106
      $region42: #{attention_forward.1} parent=39 // pred_check_branch
        %6913 = sbr.rel (%p6911) target = $region44
      $region43: #{attention_forward.1} parent=39 // pred_region
        %p6914 = scmp.lt.s32.totalorder %s15, 1
        %s6915 = scalar_select %p6914, %s15, 1
        %s6916 = smul.addr %s6915, 8
        %s6917 = smul.addr %s6916, 8
        %s6918 = scalar_lea.vmem %s3, %s6917
      $region44: #{attention_forward.1} parent=39 // pred_fallthru
        _
    $region40: #{attention_forward.1} parent=5 // pred_fallthru
      _
  $region6: #{attention_forward.1} parent=0 // loop_footer
    %s13 = sadd.s32 1, %s9
  $region7: #{attention_forward.1} parent=0 // loop_footer_branch
    %8 = sbr.rel target = $region3
  $region8: #{attention_forward.1} parent=0 // loop_exit
    _

</llo_original>
